<compile_context>
chip_gen: v7x
topology: tpu7x:2x2x1
jax: 0.10.0
libtpu: 0.0.40
codegen_flags: <defaults>
</compile_context>

<pallas_src>
import functools

import jax
import jax.numpy as jnp
from jax.experimental import pallas as pl
from jax.experimental.pallas import tpu as pltpu


def _round_up(x, m):
    return ((x + m - 1) // m) * m


def _focal_loss_kernel(x_ref, y_ref, *rest, gamma, ignore_index, reduction, has_alpha):
    if has_alpha:
        alpha_ref, out_ref, acc_loss_ref, acc_cnt_ref = rest
    else:
        alpha_ref = None
        out_ref, acc_loss_ref, acc_cnt_ref = rest

    step = pl.program_id(0)

    @pl.when(step == 0)
    def _():
        acc_loss_ref[...] = jnp.zeros_like(acc_loss_ref)
        acc_cnt_ref[...] = jnp.zeros_like(acc_cnt_ref)

    x = x_ref[...].astype(jnp.float32)          # (TM, C)
    y = y_ref[...]                              # (TM, 1) int32

    # log-softmax over classes (lane axis).
    m = jnp.max(x, axis=-1, keepdims=True)
    z = x - m
    lse = jnp.log(jnp.sum(jnp.exp(z), axis=-1, keepdims=True))
    log_p = z - lse                             # (TM, C)

    # One-hot gather of log_pt (and alpha_y) via a lane iota. Ignored labels
    # (e.g. -100) match no class -> contribute exactly 0.
    class_ids = jax.lax.broadcasted_iota(jnp.int32, x.shape, 1)
    onehot = (class_ids == y).astype(jnp.float32)             # (TM, C)
    log_pt = jnp.sum(log_p * onehot, axis=-1, keepdims=True)   # (TM, 1)

    if has_alpha:
        a = alpha_ref[...].astype(jnp.float32)                 # (1, C)
        alpha_y = jnp.sum(a * onehot, axis=-1, keepdims=True)  # (TM, 1)
        ce = -alpha_y * log_pt
    else:
        ce = -log_pt

    if gamma == 0.0:
        focal = 1.0
    else:
        one_minus_pt = 1.0 - jnp.exp(log_pt)
        if float(gamma).is_integer() and gamma > 0:
            focal = one_minus_pt
            for _ in range(int(gamma) - 1):
                focal = focal * one_minus_pt
        else:
            # general real-valued gamma via exp/log on the EUP; guard log(0).
            safe = jnp.maximum(one_minus_pt, 1e-30)
            focal = jnp.where(one_minus_pt > 0.0,
                              jnp.exp(gamma * jnp.log(safe)),
                              jnp.zeros_like(one_minus_pt))

    valid = (y != ignore_index).astype(jnp.float32)            # (TM, 1)
    loss = valid * (focal * ce)                                # (TM, 1)

    acc_loss_ref[...] += loss
    acc_cnt_ref[...] += valid

    @pl.when(step == pl.num_programs(0) - 1)
    def _():
        tot = jnp.sum(acc_loss_ref[...], axis=0, keepdims=True)   # (1, 1)
        cnt = jnp.sum(acc_cnt_ref[...], axis=0, keepdims=True)    # (1, 1)
        if reduction == 'mean':
            res = jnp.where(cnt > 0.0, tot / cnt, jnp.zeros_like(tot))
        else:  # 'sum'
            res = tot
        out_ref[...] = res


def focal_loss(x, y, alpha=None, gamma=0.0, reduction='mean',
               ignore_index=-100, block_rows=512):
    """Pallas-TPU FocalLoss forward. reduction in ('mean', 'sum')."""
    if reduction not in ('mean', 'sum'):
        # TODO(synk): reduction='none' (per-sample loss vector output) is not fused in-kernel.
        raise ValueError('reduction must be "mean" or "sum"')

    if x.ndim > 2:
        c = x.shape[1]
        perm = (0,) + tuple(range(2, x.ndim)) + (1,)
        x = jnp.transpose(x, perm).reshape(-1, c)
        y = y.reshape(-1)

    n, c = x.shape
    x = x.astype(jnp.float32)
    y = y.astype(jnp.int32)

    tm = min(int(block_rows), _round_up(n, 8))
    n_pad = _round_up(n, tm)
    if n_pad != n:  # padded rows are marked ignored so they contribute nothing
        x = jnp.pad(x, ((0, n_pad - n), (0, 0)))
        y = jnp.pad(y, (0, n_pad - n), constant_values=ignore_index)
    y2 = y.reshape(n_pad, 1)

    grid = (n_pad // tm,)
    has_alpha = alpha is not None

    in_specs = [
        pl.BlockSpec((tm, c), lambda i: (i, 0)),
        pl.BlockSpec((tm, 1), lambda i: (i, 0)),
    ]
    args = [x, y2]
    if has_alpha:
        in_specs.append(pl.BlockSpec((1, c), lambda i: (0, 0)))
        args.append(jnp.asarray(alpha, jnp.float32).reshape(1, c))

    kernel = functools.partial(
        _focal_loss_kernel, gamma=float(gamma), ignore_index=int(ignore_index),
        reduction=reduction, has_alpha=has_alpha)

    cost = pl.CostEstimate(
        flops=12 * n_pad * c,
        transcendentals=n_pad * (c + 2),
        bytes_accessed=n_pad * c * 4 + n_pad * 4 + 4 + (c * 4 if has_alpha else 0))

    out = pl.pallas_call(
        kernel,
        out_shape=jax.ShapeDtypeStruct((1, 1), jnp.float32),
        grid_spec=pltpu.PrefetchScalarGridSpec(
            num_scalar_prefetch=0,
            grid=grid,
            in_specs=in_specs,
            out_specs=pl.BlockSpec((1, 1), lambda i: (0, 0)),
            scratch_shapes=[pltpu.VMEM((tm, 1), jnp.float32),
                            pltpu.VMEM((tm, 1), jnp.float32)],
        ),
        compiler_params=pltpu.CompilerParams(dimension_semantics=("arbitrary",)),
        cost_estimate=cost,
    )(*args)
    return out[0, 0]


def focal_loss_reference(x, y, alpha=None, gamma=0.0, reduction='mean', ignore_index=-100):
    """Pure-JAX reference mirroring the PyTorch module."""
    if x.ndim > 2:
        c = x.shape[1]
        perm = (0,) + tuple(range(2, x.ndim)) + (1,)
        x = jnp.transpose(x, perm).reshape(-1, c)
        y = y.reshape(-1)
    valid = (y != ignore_index)
    y_safe = jnp.where(valid, y, 0)
    log_p = jax.nn.log_softmax(x.astype(jnp.float32), axis=-1)
    log_pt = jnp.take_along_axis(log_p, y_safe[:, None], axis=-1)[:, 0]
    w = jnp.asarray(alpha, jnp.float32)[y_safe] if alpha is not None else jnp.ones_like(log_pt)
    ce = -w * log_pt
    focal = (1.0 - jnp.exp(log_pt)) ** gamma
    loss = jnp.where(valid, focal * ce, 0.0)
    if reduction == 'mean':
        cnt = jnp.sum(valid.astype(jnp.float32))
        return jnp.where(cnt > 0, jnp.sum(loss) / cnt, 0.0)
    elif reduction == 'sum':
        return jnp.sum(loss)
    return loss


if __name__ == "__main__":
    key = jax.random.PRNGKey(0)
    kx, ky, ka = jax.random.split(key, 3)
    B, C, H, W = 2, 4, 16, 16
    x = jax.random.normal(kx, (B, C, H, W), jnp.float32)
    y = jax.random.randint(ky, (B, H, W), 0, C, dtype=jnp.int32)
    # Mark a few positions as ignored to exercise ignore_index handling.
    y = y.at[0, 0, :5].set(-100)

    # Case 1: module defaults (alpha=None, gamma=0.0, reduction='mean').
    out1 = jax.block_until_ready(focal_loss(x, y))
    ref1 = focal_loss_reference(x, y)
    assert jnp.allclose(out1, ref1, rtol=1e-5, atol=1e-5), (out1, ref1)

    # Case 2: per-class alpha, gamma=2.0, reduction='sum'.
    alpha = jax.random.uniform(ka, (C,), jnp.float32, minval=0.25, maxval=1.0)
    out2 = jax.block_until_ready(focal_loss(x, y, alpha=alpha, gamma=2.0, reduction='sum'))
    ref2 = focal_loss_reference(x, y, alpha=alpha, gamma=2.0, reduction='sum')
    assert jnp.allclose(out2, ref2, rtol=1e-5, atol=1e-5), (out2, ref2)

    print("KERNEL_OK")
</pallas_src>

<mosaic_0001>
module attributes {stable_mosaic.version = 11 : i64} {
  func.func @_focal_loss_kernel(%arg0: i32, %arg1: memref<512x4xf32, #tpu.memory_space<vmem>>, %arg2: memref<512x1xi32, #tpu.memory_space<vmem>>, %arg3: memref<1x1xf32, #tpu.memory_space<vmem>>, %arg4: memref<512x1xf32, #tpu.memory_space<vmem>>, %arg5: memref<512x1xf32, #tpu.memory_space<vmem>>) attributes {dimension_semantics = [#tpu.dimension_semantics<arbitrary>], iteration_bounds = array<i64: 1>, scalar_prefetch = 0 : i64, scratch_operands = 2 : i64, tpu.core_type = #tpu.core_type<tc>, window_params = [{transform_indices = @transform_0, window_bounds = array<i64: 512, 4>}, {transform_indices = @transform_1, window_bounds = array<i64: 512, 1>}, {pipeline_mode = #tpu.pipeline_mode<synchronous>, transform_indices = @transform_2, window_bounds = array<i64: 1, 1>}]} {
    %c0_i32 = arith.constant 0 : i32
    %0 = arith.cmpi eq, %arg0, %c0_i32 : i32
    %1 = arith.extui %0 : i1 to i32
    %c0_i32_0 = arith.constant 0 : i32
    %2 = arith.cmpi ne, %1, %c0_i32_0 : i32
    scf.if %2 {
      %cst_18 = arith.constant 0.000000e+00 : f32
      %41 = vector.broadcast %cst_18 : f32 to vector<512x1xf32>
      %c0_19 = arith.constant 0 : index
      %c0_20 = arith.constant 0 : index
      %42 = vector.load %arg4[%c0_19, %c0_20] : memref<512x1xf32, #tpu.memory_space<vmem>>, vector<512x1xf32>
      tpu.vector_store %arg4[%c0_19, %c0_20], %41 {strides = array<i32>} : memref<512x1xf32, #tpu.memory_space<vmem>>, vector<512x1xf32>,
      %cst_21 = arith.constant 0.000000e+00 : f32
      %43 = vector.broadcast %cst_21 : f32 to vector<512x1xf32>
      %c0_22 = arith.constant 0 : index
      %c0_23 = arith.constant 0 : index
      %44 = vector.load %arg5[%c0_22, %c0_23] : memref<512x1xf32, #tpu.memory_space<vmem>>, vector<512x1xf32>
      tpu.vector_store %arg5[%c0_22, %c0_23], %43 {strides = array<i32>} : memref<512x1xf32, #tpu.memory_space<vmem>>, vector<512x1xf32>,
    } else {
    }
    %c0 = arith.constant 0 : index
    %c0_1 = arith.constant 0 : index
    %3 = vector.load %arg1[%c0, %c0_1] : memref<512x4xf32, #tpu.memory_space<vmem>>, vector<512x4xf32>
    %c0_2 = arith.constant 0 : index
    %c0_3 = arith.constant 0 : index
    %4 = vector.load %arg2[%c0_2, %c0_3] : memref<512x1xi32, #tpu.memory_space<vmem>>, vector<512x1xi32>
    %cst = arith.constant dense<0xFF800000> : vector<512xf32>
    %5 = vector.multi_reduction <maximumf>, %3, %cst [1] : vector<512x4xf32> to vector<512xf32>
    %6 = vector.shape_cast %5 : vector<512xf32> to vector<512x1xf32>
    %7 = vector.broadcast %6 : vector<512x1xf32> to vector<512x4xf32>
    %8 = arith.subf %3, %7 : vector<512x4xf32>
    %9 = math.exp %8 : vector<512x4xf32>
    %cst_4 = arith.constant dense<0.000000e+00> : vector<512xf32>
    %10 = vector.multi_reduction <add>, %9, %cst_4 [1] : vector<512x4xf32> to vector<512xf32>
    %11 = vector.shape_cast %10 : vector<512xf32> to vector<512x1xf32>
    %12 = math.log %11 : vector<512x1xf32>
    %13 = vector.broadcast %12 : vector<512x1xf32> to vector<512x4xf32>
    %14 = arith.subf %8, %13 : vector<512x4xf32>
    %15 = tpu.iota {dimensions = array<i32: 1>} : vector<512x4xi32>
    %16 = vector.broadcast %4 : vector<512x1xi32> to vector<512x4xi32>
    %17 = arith.cmpi eq, %15, %16 : vector<512x4xi32>
    %18 = arith.extui %17 : vector<512x4xi1> to vector<512x4xi32>
    %19 = arith.sitofp %18 : vector<512x4xi32> to vector<512x4xf32>
    %20 = arith.mulf %14, %19 : vector<512x4xf32>
    %cst_5 = arith.constant dense<0.000000e+00> : vector<512xf32>
    %21 = vector.multi_reduction <add>, %20, %cst_5 [1] : vector<512x4xf32> to vector<512xf32>
    %22 = vector.shape_cast %21 : vector<512xf32> to vector<512x1xf32>
    %cst_6 = arith.constant 0.000000e+00 : f32
    %23 = vector.broadcast %cst_6 : f32 to vector<512x1xf32>
    %24 = arith.subf %23, %22 : vector<512x1xf32>
    %c-100_i32 = arith.constant -100 : i32
    %25 = vector.broadcast %c-100_i32 : i32 to vector<512x1xi32>
    %26 = arith.cmpi ne, %4, %25 : vector<512x1xi32>
    %27 = arith.extui %26 : vector<512x1xi1> to vector<512x1xi32>
    %28 = arith.sitofp %27 : vector<512x1xi32> to vector<512x1xf32>
    %cst_7 = arith.constant 1.000000e+00 : f32
    %29 = vector.broadcast %cst_7 : f32 to vector<512x1xf32>
    %30 = arith.mulf %29, %24 : vector<512x1xf32>
    %31 = arith.mulf %28, %30 : vector<512x1xf32>
    %c0_8 = arith.constant 0 : index
    %c0_9 = arith.constant 0 : index
    %32 = vector.load %arg4[%c0_8, %c0_9] : memref<512x1xf32, #tpu.memory_space<vmem>>, vector<512x1xf32>
    %33 = arith.addf %32, %31 : vector<512x1xf32>
    %c0_10 = arith.constant 0 : index
    %c0_11 = arith.constant 0 : index
    %34 = vector.load %arg4[%c0_10, %c0_11] : memref<512x1xf32, #tpu.memory_space<vmem>>, vector<512x1xf32>
    tpu.vector_store %arg4[%c0_10, %c0_11], %33 {strides = array<i32>} : memref<512x1xf32, #tpu.memory_space<vmem>>, vector<512x1xf32>,
    %c0_12 = arith.constant 0 : index
    %c0_13 = arith.constant 0 : index
    %35 = vector.load %arg5[%c0_12, %c0_13] : memref<512x1xf32, #tpu.memory_space<vmem>>, vector<512x1xf32>
    %36 = arith.addf %35, %28 : vector<512x1xf32>
    %c0_14 = arith.constant 0 : index
    %c0_15 = arith.constant 0 : index
    %37 = vector.load %arg5[%c0_14, %c0_15] : memref<512x1xf32, #tpu.memory_space<vmem>>, vector<512x1xf32>
    tpu.vector_store %arg5[%c0_14, %c0_15], %36 {strides = array<i32>} : memref<512x1xf32, #tpu.memory_space<vmem>>, vector<512x1xf32>,
    %c0_i32_16 = arith.constant 0 : i32
    %38 = arith.cmpi eq, %arg0, %c0_i32_16 : i32
    %39 = arith.extui %38 : i1 to i32
    %c0_i32_17 = arith.constant 0 : i32
    %40 = arith.cmpi ne, %39, %c0_i32_17 : i32
    scf.if %40 {
      %c0_18 = arith.constant 0 : index
      %c0_19 = arith.constant 0 : index
      %41 = vector.load %arg4[%c0_18, %c0_19] : memref<512x1xf32, #tpu.memory_space<vmem>>, vector<512x1xf32>
      %cst_20 = arith.constant dense<0.000000e+00> : vector<1xf32>
      %42 = vector.multi_reduction <add>, %41, %cst_20 [0] : vector<512x1xf32> to vector<1xf32>
      %43 = vector.shape_cast %42 : vector<1xf32> to vector<1x1xf32>
      %c0_21 = arith.constant 0 : index
      %c0_22 = arith.constant 0 : index
      %44 = vector.load %arg5[%c0_21, %c0_22] : memref<512x1xf32, #tpu.memory_space<vmem>>, vector<512x1xf32>
      %cst_23 = arith.constant dense<0.000000e+00> : vector<1xf32>
      %45 = vector.multi_reduction <add>, %44, %cst_23 [0] : vector<512x1xf32> to vector<1xf32>
      %46 = vector.shape_cast %45 : vector<1xf32> to vector<1x1xf32>
      %cst_24 = arith.constant 0.000000e+00 : f32
      %47 = vector.broadcast %cst_24 : f32 to vector<1x1xf32>
      %48 = arith.cmpf ogt, %46, %47 : vector<1x1xf32>
      %49 = arith.divf %43, %46 : vector<1x1xf32>
      %cst_25 = arith.constant 0.000000e+00 : f32
      %50 = vector.broadcast %cst_25 : f32 to vector<1x1xf32>
      %51 = arith.select %48, %49, %50 : vector<1x1xi1>, vector<1x1xf32>
      %c0_26 = arith.constant 0 : index
      %c0_27 = arith.constant 0 : index
      %52 = vector.load %arg3[%c0_26, %c0_27] : memref<1x1xf32, #tpu.memory_space<vmem>>, vector<1x1xf32>
      tpu.vector_store %arg3[%c0_26, %c0_27], %51 {strides = array<i32>} : memref<1x1xf32, #tpu.memory_space<vmem>>, vector<1x1xf32>,
    } else {
    }
    return
  }
  func.func @transform_0(%arg0: i32) -> (i32, i32) {
    %c0_i32 = arith.constant 0 : i32
    %c0_i32_0 = arith.constant 0 : i32
    return %arg0, %c0_i32 : i32, i32
  }
  func.func @transform_1(%arg0: i32) -> (i32, i32) {
    %c0_i32 = arith.constant 0 : i32
    %c0_i32_0 = arith.constant 0 : i32
    return %arg0, %c0_i32 : i32, i32
  }
  func.func @transform_2(%arg0: i32) -> (i32, i32) {
    %c0_i32 = arith.constant 0 : i32
    %c0_i32_0 = arith.constant 0 : i32
    %c0_i32_1 = arith.constant 0 : i32
    return %c0_i32, %c0_i32_0 : i32, i32
  }
}

</mosaic_0001>

<llo_original>
// kernel: tpu_custom_call.1
$region0: #{tpu_custom_call.1}
  #allocation0 [shape = 'u32[]', space=smem, size = 0x4, offset = 0x4, fixed_abs, tag = 'smem constant byte address 0x4 - core index']
  #allocation1 [shape = 'u32[144,128]{1,0:T(1,128)}', space=vmem, size = 0x12000, scoped, tag = 'internal scratch']
  #allocation2 [shape = 'f32[512,1]{1,0:T(8,128)}', space=vmem, size = 0x40000, scoped, tag = 'scratch operand']
  #allocation3 [shape = 'f32[512,1]{1,0:T(8,128)}', space=vmem, size = 0x40000, scoped, tag = 'scratch operand']
  %s0 = inlined_call_operand.vmem [shape: f32[512,4], index: 0, kind: input, shape index: {}]
  %s1 = inlined_call_operand.vmem [shape: s32[512,1], index: 1, kind: input, shape index: {}]
  %s2 = inlined_call_operand.hbm [shape: f32[1,1], index: 2, kind: output, shape index: {}]
  %s3 = sld [smem:[#allocation0]]
  $region26: #{tpu_custom_call.1} parent=0
    _
  %s5 = ssub.s32 1, %s3
  %s6 = scalar_select 0, %s5, %s3
  $region1: #{tpu_custom_call.1} parent=0
    #allocation4 [shape = 'u8[512]{0}', space=vmem, size = 0x400, scoped, tag = 'output window, operand 0, single buffered']
    #allocation5 [shape = 's32[1]{0}', space=sflag, size = 0x4, scoped, tag = 'scoped memory for tpu_custom_call.1']
    %7 = vsyncpa [#allocation5], 0
    // Predicated region
    $region2: #{tpu_custom_call.1} parent=1 // pred_check
      _
    $region3: #{tpu_custom_call.1} parent=1 // pred_check_branch
      %9 = sbr.rel (0) target = $region5
    $region4: #{tpu_custom_call.1} parent=1 // pred_region
      _
    $region5: #{tpu_custom_call.1} parent=1 // pred_fallthru
      _
    // Predicated region
    $region6: #{tpu_custom_call.1} parent=1 // pred_check
      _
    $region7: #{tpu_custom_call.1} parent=1 // pred_check_branch
      %11 = sbr.rel (0) target = $region9
    $region8: #{tpu_custom_call.1} parent=1 // pred_region
      _
    $region9: #{tpu_custom_call.1} parent=1 // pred_fallthru
      _
    %p12 = scmp.eq.s32.totalorder 0, 0
    // Predicated region
    $region10: #{tpu_custom_call.1} parent=1 // pred_check
      %p13 = pneg %p12
    $region11: #{tpu_custom_call.1} parent=1 // pred_check_branch
      %15 = sbr.rel (%p13) target = $region13
    $region12: #{tpu_custom_call.1} parent=1 // pred_region
      %vm16 = vcmask 7168
      %17 = vst.msk [vmem:[#allocation2] sm:$0xff] %vm16, 0.0
      %18 = vst.msk [vmem:[#allocation2 + $0x8] sm:$0xff] %vm16, 0.0
      %19 = vst.msk [vmem:[#allocation2 + $0x10] sm:$0xff] %vm16, 0.0
      %20 = vst.msk [vmem:[#allocation2 + $0x18] sm:$0xff] %vm16, 0.0
      %21 = vst.msk [vmem:[#allocation2 + $0x20] sm:$0xff] %vm16, 0.0
      %22 = vst.msk [vmem:[#allocation2 + $0x28] sm:$0xff] %vm16, 0.0
      %23 = vst.msk [vmem:[#allocation2 + $0x30] sm:$0xff] %vm16, 0.0
      %24 = vst.msk [vmem:[#allocation2 + $0x38] sm:$0xff] %vm16, 0.0
      %25 = vst.msk [vmem:[#allocation2 + $0x40] sm:$0xff] %vm16, 0.0
      %26 = vst.msk [vmem:[#allocation2 + $0x48] sm:$0xff] %vm16, 0.0
      %27 = vst.msk [vmem:[#allocation2 + $0x50] sm:$0xff] %vm16, 0.0
      %28 = vst.msk [vmem:[#allocation2 + $0x58] sm:$0xff] %vm16, 0.0
      %29 = vst.msk [vmem:[#allocation2 + $0x60] sm:$0xff] %vm16, 0.0
      %30 = vst.msk [vmem:[#allocation2 + $0x68] sm:$0xff] %vm16, 0.0
      %31 = vst.msk [vmem:[#allocation2 + $0x70] sm:$0xff] %vm16, 0.0
      %32 = vst.msk [vmem:[#allocation2 + $0x78] sm:$0xff] %vm16, 0.0
      %33 = vst.msk [vmem:[#allocation2 + $0x80] sm:$0xff] %vm16, 0.0
      %34 = vst.msk [vmem:[#allocation2 + $0x88] sm:$0xff] %vm16, 0.0
      %35 = vst.msk [vmem:[#allocation2 + $0x90] sm:$0xff] %vm16, 0.0
      %36 = vst.msk [vmem:[#allocation2 + $0x98] sm:$0xff] %vm16, 0.0
      %37 = vst.msk [vmem:[#allocation2 + $0xa0] sm:$0xff] %vm16, 0.0
      %38 = vst.msk [vmem:[#allocation2 + $0xa8] sm:$0xff] %vm16, 0.0
      %39 = vst.msk [vmem:[#allocation2 + $0xb0] sm:$0xff] %vm16, 0.0
      %40 = vst.msk [vmem:[#allocation2 + $0xb8] sm:$0xff] %vm16, 0.0
      %41 = vst.msk [vmem:[#allocation2 + $0xc0] sm:$0xff] %vm16, 0.0
      %42 = vst.msk [vmem:[#allocation2 + $0xc8] sm:$0xff] %vm16, 0.0
      %43 = vst.msk [vmem:[#allocation2 + $0xd0] sm:$0xff] %vm16, 0.0
      %44 = vst.msk [vmem:[#allocation2 + $0xd8] sm:$0xff] %vm16, 0.0
      %45 = vst.msk [vmem:[#allocation2 + $0xe0] sm:$0xff] %vm16, 0.0
      %46 = vst.msk [vmem:[#allocation2 + $0xe8] sm:$0xff] %vm16, 0.0
      %47 = vst.msk [vmem:[#allocation2 + $0xf0] sm:$0xff] %vm16, 0.0
      %48 = vst.msk [vmem:[#allocation2 + $0xf8] sm:$0xff] %vm16, 0.0
      %49 = vst.msk [vmem:[#allocation2 + $0x100] sm:$0xff] %vm16, 0.0
      %50 = vst.msk [vmem:[#allocation2 + $0x108] sm:$0xff] %vm16, 0.0
      %51 = vst.msk [vmem:[#allocation2 + $0x110] sm:$0xff] %vm16, 0.0
      %52 = vst.msk [vmem:[#allocation2 + $0x118] sm:$0xff] %vm16, 0.0
      %53 = vst.msk [vmem:[#allocation2 + $0x120] sm:$0xff] %vm16, 0.0
      %54 = vst.msk [vmem:[#allocation2 + $0x128] sm:$0xff] %vm16, 0.0
      %55 = vst.msk [vmem:[#allocation2 + $0x130] sm:$0xff] %vm16, 0.0
      %56 = vst.msk [vmem:[#allocation2 + $0x138] sm:$0xff] %vm16, 0.0
      %57 = vst.msk [vmem:[#allocation2 + $0x140] sm:$0xff] %vm16, 0.0
      %58 = vst.msk [vmem:[#allocation2 + $0x148] sm:$0xff] %vm16, 0.0
      %59 = vst.msk [vmem:[#allocation2 + $0x150] sm:$0xff] %vm16, 0.0
      %60 = vst.msk [vmem:[#allocation2 + $0x158] sm:$0xff] %vm16, 0.0
      %61 = vst.msk [vmem:[#allocation2 + $0x160] sm:$0xff] %vm16, 0.0
      %62 = vst.msk [vmem:[#allocation2 + $0x168] sm:$0xff] %vm16, 0.0
      %63 = vst.msk [vmem:[#allocation2 + $0x170] sm:$0xff] %vm16, 0.0
      %64 = vst.msk [vmem:[#allocation2 + $0x178] sm:$0xff] %vm16, 0.0
      %65 = vst.msk [vmem:[#allocation2 + $0x180] sm:$0xff] %vm16, 0.0
      %66 = vst.msk [vmem:[#allocation2 + $0x188] sm:$0xff] %vm16, 0.0
      %67 = vst.msk [vmem:[#allocation2 + $0x190] sm:$0xff] %vm16, 0.0
      %68 = vst.msk [vmem:[#allocation2 + $0x198] sm:$0xff] %vm16, 0.0
      %69 = vst.msk [vmem:[#allocation2 + $0x1a0] sm:$0xff] %vm16, 0.0
      %70 = vst.msk [vmem:[#allocation2 + $0x1a8] sm:$0xff] %vm16, 0.0
      %71 = vst.msk [vmem:[#allocation2 + $0x1b0] sm:$0xff] %vm16, 0.0
      %72 = vst.msk [vmem:[#allocation2 + $0x1b8] sm:$0xff] %vm16, 0.0
      %73 = vst.msk [vmem:[#allocation2 + $0x1c0] sm:$0xff] %vm16, 0.0
      %74 = vst.msk [vmem:[#allocation2 + $0x1c8] sm:$0xff] %vm16, 0.0
      %75 = vst.msk [vmem:[#allocation2 + $0x1d0] sm:$0xff] %vm16, 0.0
      %76 = vst.msk [vmem:[#allocation2 + $0x1d8] sm:$0xff] %vm16, 0.0
      %77 = vst.msk [vmem:[#allocation2 + $0x1e0] sm:$0xff] %vm16, 0.0
      %78 = vst.msk [vmem:[#allocation2 + $0x1e8] sm:$0xff] %vm16, 0.0
      %79 = vst.msk [vmem:[#allocation2 + $0x1f0] sm:$0xff] %vm16, 0.0
      %80 = vst.msk [vmem:[#allocation2 + $0x1f8] sm:$0xff] %vm16, 0.0
      %81 = vst.msk [vmem:[#allocation3] sm:$0xff] %vm16, 0.0
      %82 = vst.msk [vmem:[#allocation3 + $0x8] sm:$0xff] %vm16, 0.0
      %83 = vst.msk [vmem:[#allocation3 + $0x10] sm:$0xff] %vm16, 0.0
      %84 = vst.msk [vmem:[#allocation3 + $0x18] sm:$0xff] %vm16, 0.0
      %85 = vst.msk [vmem:[#allocation3 + $0x20] sm:$0xff] %vm16, 0.0
      %86 = vst.msk [vmem:[#allocation3 + $0x28] sm:$0xff] %vm16, 0.0
      %87 = vst.msk [vmem:[#allocation3 + $0x30] sm:$0xff] %vm16, 0.0
      %88 = vst.msk [vmem:[#allocation3 + $0x38] sm:$0xff] %vm16, 0.0
      %89 = vst.msk [vmem:[#allocation3 + $0x40] sm:$0xff] %vm16, 0.0
      %90 = vst.msk [vmem:[#allocation3 + $0x48] sm:$0xff] %vm16, 0.0
      %91 = vst.msk [vmem:[#allocation3 + $0x50] sm:$0xff] %vm16, 0.0
      %92 = vst.msk [vmem:[#allocation3 + $0x58] sm:$0xff] %vm16, 0.0
      %93 = vst.msk [vmem:[#allocation3 + $0x60] sm:$0xff] %vm16, 0.0
      %94 = vst.msk [vmem:[#allocation3 + $0x68] sm:$0xff] %vm16, 0.0
      %95 = vst.msk [vmem:[#allocation3 + $0x70] sm:$0xff] %vm16, 0.0
      %96 = vst.msk [vmem:[#allocation3 + $0x78] sm:$0xff] %vm16, 0.0
      %97 = vst.msk [vmem:[#allocation3 + $0x80] sm:$0xff] %vm16, 0.0
      %98 = vst.msk [vmem:[#allocation3 + $0x88] sm:$0xff] %vm16, 0.0
      %99 = vst.msk [vmem:[#allocation3 + $0x90] sm:$0xff] %vm16, 0.0
      %100 = vst.msk [vmem:[#allocation3 + $0x98] sm:$0xff] %vm16, 0.0
      %101 = vst.msk [vmem:[#allocation3 + $0xa0] sm:$0xff] %vm16, 0.0
      %102 = vst.msk [vmem:[#allocation3 + $0xa8] sm:$0xff] %vm16, 0.0
      %103 = vst.msk [vmem:[#allocation3 + $0xb0] sm:$0xff] %vm16, 0.0
      %104 = vst.msk [vmem:[#allocation3 + $0xb8] sm:$0xff] %vm16, 0.0
      %105 = vst.msk [vmem:[#allocation3 + $0xc0] sm:$0xff] %vm16, 0.0
      %106 = vst.msk [vmem:[#allocation3 + $0xc8] sm:$0xff] %vm16, 0.0
      %107 = vst.msk [vmem:[#allocation3 + $0xd0] sm:$0xff] %vm16, 0.0
      %108 = vst.msk [vmem:[#allocation3 + $0xd8] sm:$0xff] %vm16, 0.0
      %109 = vst.msk [vmem:[#allocation3 + $0xe0] sm:$0xff] %vm16, 0.0
      %110 = vst.msk [vmem:[#allocation3 + $0xe8] sm:$0xff] %vm16, 0.0
      %111 = vst.msk [vmem:[#allocation3 + $0xf0] sm:$0xff] %vm16, 0.0
      %112 = vst.msk [vmem:[#allocation3 + $0xf8] sm:$0xff] %vm16, 0.0
      %113 = vst.msk [vmem:[#allocation3 + $0x100] sm:$0xff] %vm16, 0.0
      %114 = vst.msk [vmem:[#allocation3 + $0x108] sm:$0xff] %vm16, 0.0
      %115 = vst.msk [vmem:[#allocation3 + $0x110] sm:$0xff] %vm16, 0.0
      %116 = vst.msk [vmem:[#allocation3 + $0x118] sm:$0xff] %vm16, 0.0
      %117 = vst.msk [vmem:[#allocation3 + $0x120] sm:$0xff] %vm16, 0.0
      %118 = vst.msk [vmem:[#allocation3 + $0x128] sm:$0xff] %vm16, 0.0
      %119 = vst.msk [vmem:[#allocation3 + $0x130] sm:$0xff] %vm16, 0.0
      %120 = vst.msk [vmem:[#allocation3 + $0x138] sm:$0xff] %vm16, 0.0
      %121 = vst.msk [vmem:[#allocation3 + $0x140] sm:$0xff] %vm16, 0.0
      %122 = vst.msk [vmem:[#allocation3 + $0x148] sm:$0xff] %vm16, 0.0
      %123 = vst.msk [vmem:[#allocation3 + $0x150] sm:$0xff] %vm16, 0.0
      %124 = vst.msk [vmem:[#allocation3 + $0x158] sm:$0xff] %vm16, 0.0
      %125 = vst.msk [vmem:[#allocation3 + $0x160] sm:$0xff] %vm16, 0.0
      %126 = vst.msk [vmem:[#allocation3 + $0x168] sm:$0xff] %vm16, 0.0
      %127 = vst.msk [vmem:[#allocation3 + $0x170] sm:$0xff] %vm16, 0.0
      %128 = vst.msk [vmem:[#allocation3 + $0x178] sm:$0xff] %vm16, 0.0
      %129 = vst.msk [vmem:[#allocation3 + $0x180] sm:$0xff] %vm16, 0.0
      %130 = vst.msk [vmem:[#allocation3 + $0x188] sm:$0xff] %vm16, 0.0
      %131 = vst.msk [vmem:[#allocation3 + $0x190] sm:$0xff] %vm16, 0.0
      %132 = vst.msk [vmem:[#allocation3 + $0x198] sm:$0xff] %vm16, 0.0
      %133 = vst.msk [vmem:[#allocation3 + $0x1a0] sm:$0xff] %vm16, 0.0
      %134 = vst.msk [vmem:[#allocation3 + $0x1a8] sm:$0xff] %vm16, 0.0
      %135 = vst.msk [vmem:[#allocation3 + $0x1b0] sm:$0xff] %vm16, 0.0
      %136 = vst.msk [vmem:[#allocation3 + $0x1b8] sm:$0xff] %vm16, 0.0
      %137 = vst.msk [vmem:[#allocation3 + $0x1c0] sm:$0xff] %vm16, 0.0
      %138 = vst.msk [vmem:[#allocation3 + $0x1c8] sm:$0xff] %vm16, 0.0
      %139 = vst.msk [vmem:[#allocation3 + $0x1d0] sm:$0xff] %vm16, 0.0
      %140 = vst.msk [vmem:[#allocation3 + $0x1d8] sm:$0xff] %vm16, 0.0
      %141 = vst.msk [vmem:[#allocation3 + $0x1e0] sm:$0xff] %vm16, 0.0
      %142 = vst.msk [vmem:[#allocation3 + $0x1e8] sm:$0xff] %vm16, 0.0
      %143 = vst.msk [vmem:[#allocation3 + $0x1f0] sm:$0xff] %vm16, 0.0
      %144 = vst.msk [vmem:[#allocation3 + $0x1f8] sm:$0xff] %vm16, 0.0
    $region13: #{tpu_custom_call.1} parent=1 // pred_fallthru
      _
    %v145 = vld [vmem:[%s0] sm:$0xff]
    %v146 = vld [vmem:[%s0 + $0x8] sm:$0xff]
    %v147 = vld [vmem:[%s0 + $0x10] sm:$0xff]
    %v148 = vld [vmem:[%s0 + $0x18] sm:$0xff]
    %v149 = vld [vmem:[%s0 + $0x20] sm:$0xff]
    %v150 = vld [vmem:[%s0 + $0x28] sm:$0xff]
    %v151 = vld [vmem:[%s0 + $0x30] sm:$0xff]
    %v152 = vld [vmem:[%s0 + $0x38] sm:$0xff]
    %v153 = vld [vmem:[%s0 + $0x40] sm:$0xff]
    %v154 = vld [vmem:[%s0 + $0x48] sm:$0xff]
    %v155 = vld [vmem:[%s0 + $0x50] sm:$0xff]
    %v156 = vld [vmem:[%s0 + $0x58] sm:$0xff]
    %v157 = vld [vmem:[%s0 + $0x60] sm:$0xff]
    %v158 = vld [vmem:[%s0 + $0x68] sm:$0xff]
    %v159 = vld [vmem:[%s0 + $0x70] sm:$0xff]
    %v160 = vld [vmem:[%s0 + $0x78] sm:$0xff]
    %v161 = vld [vmem:[%s0 + $0x80] sm:$0xff]
    %v162 = vld [vmem:[%s0 + $0x88] sm:$0xff]
    %v163 = vld [vmem:[%s0 + $0x90] sm:$0xff]
    %v164 = vld [vmem:[%s0 + $0x98] sm:$0xff]
    %v165 = vld [vmem:[%s0 + $0xa0] sm:$0xff]
    %v166 = vld [vmem:[%s0 + $0xa8] sm:$0xff]
    %v167 = vld [vmem:[%s0 + $0xb0] sm:$0xff]
    %v168 = vld [vmem:[%s0 + $0xb8] sm:$0xff]
    %v169 = vld [vmem:[%s0 + $0xc0] sm:$0xff]
    %v170 = vld [vmem:[%s0 + $0xc8] sm:$0xff]
    %v171 = vld [vmem:[%s0 + $0xd0] sm:$0xff]
    %v172 = vld [vmem:[%s0 + $0xd8] sm:$0xff]
    %v173 = vld [vmem:[%s0 + $0xe0] sm:$0xff]
    %v174 = vld [vmem:[%s0 + $0xe8] sm:$0xff]
    %v175 = vld [vmem:[%s0 + $0xf0] sm:$0xff]
    %v176 = vld [vmem:[%s0 + $0xf8] sm:$0xff]
    %v177 = vld [vmem:[%s0 + $0x100] sm:$0xff]
    %v178 = vld [vmem:[%s0 + $0x108] sm:$0xff]
    %v179 = vld [vmem:[%s0 + $0x110] sm:$0xff]
    %v180 = vld [vmem:[%s0 + $0x118] sm:$0xff]
    %v181 = vld [vmem:[%s0 + $0x120] sm:$0xff]
    %v182 = vld [vmem:[%s0 + $0x128] sm:$0xff]
    %v183 = vld [vmem:[%s0 + $0x130] sm:$0xff]
    %v184 = vld [vmem:[%s0 + $0x138] sm:$0xff]
    %v185 = vld [vmem:[%s0 + $0x140] sm:$0xff]
    %v186 = vld [vmem:[%s0 + $0x148] sm:$0xff]
    %v187 = vld [vmem:[%s0 + $0x150] sm:$0xff]
    %v188 = vld [vmem:[%s0 + $0x158] sm:$0xff]
    %v189 = vld [vmem:[%s0 + $0x160] sm:$0xff]
    %v190 = vld [vmem:[%s0 + $0x168] sm:$0xff]
    %v191 = vld [vmem:[%s0 + $0x170] sm:$0xff]
    %v192 = vld [vmem:[%s0 + $0x178] sm:$0xff]
    %v193 = vld [vmem:[%s0 + $0x180] sm:$0xff]
    %v194 = vld [vmem:[%s0 + $0x188] sm:$0xff]
    %v195 = vld [vmem:[%s0 + $0x190] sm:$0xff]
    %v196 = vld [vmem:[%s0 + $0x198] sm:$0xff]
    %v197 = vld [vmem:[%s0 + $0x1a0] sm:$0xff]
    %v198 = vld [vmem:[%s0 + $0x1a8] sm:$0xff]
    %v199 = vld [vmem:[%s0 + $0x1b0] sm:$0xff]
    %v200 = vld [vmem:[%s0 + $0x1b8] sm:$0xff]
    %v201 = vld [vmem:[%s0 + $0x1c0] sm:$0xff]
    %v202 = vld [vmem:[%s0 + $0x1c8] sm:$0xff]
    %v203 = vld [vmem:[%s0 + $0x1d0] sm:$0xff]
    %v204 = vld [vmem:[%s0 + $0x1d8] sm:$0xff]
    %v205 = vld [vmem:[%s0 + $0x1e0] sm:$0xff]
    %v206 = vld [vmem:[%s0 + $0x1e8] sm:$0xff]
    %v207 = vld [vmem:[%s0 + $0x1f0] sm:$0xff]
    %v208 = vld [vmem:[%s0 + $0x1f8] sm:$0xff]
    %v209 = vld [vmem:[%s1] sm:$0xff]
    %v210 = vld [vmem:[%s1 + $0x8] sm:$0xff]
    %v211 = vld [vmem:[%s1 + $0x10] sm:$0xff]
    %v212 = vld [vmem:[%s1 + $0x18] sm:$0xff]
    %v213 = vld [vmem:[%s1 + $0x20] sm:$0xff]
    %v214 = vld [vmem:[%s1 + $0x28] sm:$0xff]
    %v215 = vld [vmem:[%s1 + $0x30] sm:$0xff]
    %v216 = vld [vmem:[%s1 + $0x38] sm:$0xff]
    %v217 = vld [vmem:[%s1 + $0x40] sm:$0xff]
    %v218 = vld [vmem:[%s1 + $0x48] sm:$0xff]
    %v219 = vld [vmem:[%s1 + $0x50] sm:$0xff]
    %v220 = vld [vmem:[%s1 + $0x58] sm:$0xff]
    %v221 = vld [vmem:[%s1 + $0x60] sm:$0xff]
    %v222 = vld [vmem:[%s1 + $0x68] sm:$0xff]
    %v223 = vld [vmem:[%s1 + $0x70] sm:$0xff]
    %v224 = vld [vmem:[%s1 + $0x78] sm:$0xff]
    %v225 = vld [vmem:[%s1 + $0x80] sm:$0xff]
    %v226 = vld [vmem:[%s1 + $0x88] sm:$0xff]
    %v227 = vld [vmem:[%s1 + $0x90] sm:$0xff]
    %v228 = vld [vmem:[%s1 + $0x98] sm:$0xff]
    %v229 = vld [vmem:[%s1 + $0xa0] sm:$0xff]
    %v230 = vld [vmem:[%s1 + $0xa8] sm:$0xff]
    %v231 = vld [vmem:[%s1 + $0xb0] sm:$0xff]
    %v232 = vld [vmem:[%s1 + $0xb8] sm:$0xff]
    %v233 = vld [vmem:[%s1 + $0xc0] sm:$0xff]
    %v234 = vld [vmem:[%s1 + $0xc8] sm:$0xff]
    %v235 = vld [vmem:[%s1 + $0xd0] sm:$0xff]
    %v236 = vld [vmem:[%s1 + $0xd8] sm:$0xff]
    %v237 = vld [vmem:[%s1 + $0xe0] sm:$0xff]
    %v238 = vld [vmem:[%s1 + $0xe8] sm:$0xff]
    %v239 = vld [vmem:[%s1 + $0xf0] sm:$0xff]
    %v240 = vld [vmem:[%s1 + $0xf8] sm:$0xff]
    %v241 = vld [vmem:[%s1 + $0x100] sm:$0xff]
    %v242 = vld [vmem:[%s1 + $0x108] sm:$0xff]
    %v243 = vld [vmem:[%s1 + $0x110] sm:$0xff]
    %v244 = vld [vmem:[%s1 + $0x118] sm:$0xff]
    %v245 = vld [vmem:[%s1 + $0x120] sm:$0xff]
    %v246 = vld [vmem:[%s1 + $0x128] sm:$0xff]
    %v247 = vld [vmem:[%s1 + $0x130] sm:$0xff]
    %v248 = vld [vmem:[%s1 + $0x138] sm:$0xff]
    %v249 = vld [vmem:[%s1 + $0x140] sm:$0xff]
    %v250 = vld [vmem:[%s1 + $0x148] sm:$0xff]
    %v251 = vld [vmem:[%s1 + $0x150] sm:$0xff]
    %v252 = vld [vmem:[%s1 + $0x158] sm:$0xff]
    %v253 = vld [vmem:[%s1 + $0x160] sm:$0xff]
    %v254 = vld [vmem:[%s1 + $0x168] sm:$0xff]
    %v255 = vld [vmem:[%s1 + $0x170] sm:$0xff]
    %v256 = vld [vmem:[%s1 + $0x178] sm:$0xff]
    %v257 = vld [vmem:[%s1 + $0x180] sm:$0xff]
    %v258 = vld [vmem:[%s1 + $0x188] sm:$0xff]
    %v259 = vld [vmem:[%s1 + $0x190] sm:$0xff]
    %v260 = vld [vmem:[%s1 + $0x198] sm:$0xff]
    %v261 = vld [vmem:[%s1 + $0x1a0] sm:$0xff]
    %v262 = vld [vmem:[%s1 + $0x1a8] sm:$0xff]
    %v263 = vld [vmem:[%s1 + $0x1b0] sm:$0xff]
    %v264 = vld [vmem:[%s1 + $0x1b8] sm:$0xff]
    %v265 = vld [vmem:[%s1 + $0x1c0] sm:$0xff]
    %v266 = vld [vmem:[%s1 + $0x1c8] sm:$0xff]
    %v267 = vld [vmem:[%s1 + $0x1d0] sm:$0xff]
    %v268 = vld [vmem:[%s1 + $0x1d8] sm:$0xff]
    %v269 = vld [vmem:[%s1 + $0x1e0] sm:$0xff]
    %v270 = vld [vmem:[%s1 + $0x1e8] sm:$0xff]
    %v271 = vld [vmem:[%s1 + $0x1f0] sm:$0xff]
    %v272 = vld [vmem:[%s1 + $0x1f8] sm:$0xff]
    %vm273 = vcmask 31744
    %v274 = vsel %vm273, %v145, -inf
    %275 = vmax.xlane.f32.xlu0 %v274
    %v276 = vpop.xlane.xlu0 %275
    %v277 = vsel %vm273, %v146, -inf
    %278 = vmax.xlane.f32.xlu0 %v277
    %v279 = vpop.xlane.xlu0 %278
    %v280 = vsel %vm273, %v147, -inf
    %281 = vmax.xlane.f32.xlu0 %v280
    %v282 = vpop.xlane.xlu0 %281
    %v283 = vsel %vm273, %v148, -inf
    %284 = vmax.xlane.f32.xlu0 %v283
    %v285 = vpop.xlane.xlu0 %284
    %v286 = vsel %vm273, %v149, -inf
    %287 = vmax.xlane.f32.xlu0 %v286
    %v288 = vpop.xlane.xlu0 %287
    %v289 = vsel %vm273, %v150, -inf
    %290 = vmax.xlane.f32.xlu0 %v289
    %v291 = vpop.xlane.xlu0 %290
    %v292 = vsel %vm273, %v151, -inf
    %293 = vmax.xlane.f32.xlu0 %v292
    %v294 = vpop.xlane.xlu0 %293
    %v295 = vsel %vm273, %v152, -inf
    %296 = vmax.xlane.f32.xlu0 %v295
    %v297 = vpop.xlane.xlu0 %296
    %v298 = vsel %vm273, %v153, -inf
    %299 = vmax.xlane.f32.xlu0 %v298
    %v300 = vpop.xlane.xlu0 %299
    %v301 = vsel %vm273, %v154, -inf
    %302 = vmax.xlane.f32.xlu0 %v301
    %v303 = vpop.xlane.xlu0 %302
    %v304 = vsel %vm273, %v155, -inf
    %305 = vmax.xlane.f32.xlu0 %v304
    %v306 = vpop.xlane.xlu0 %305
    %v307 = vsel %vm273, %v156, -inf
    %308 = vmax.xlane.f32.xlu0 %v307
    %v309 = vpop.xlane.xlu0 %308
    %v310 = vsel %vm273, %v157, -inf
    %311 = vmax.xlane.f32.xlu0 %v310
    %v312 = vpop.xlane.xlu0 %311
    %v313 = vsel %vm273, %v158, -inf
    %314 = vmax.xlane.f32.xlu0 %v313
    %v315 = vpop.xlane.xlu0 %314
    %v316 = vsel %vm273, %v159, -inf
    %317 = vmax.xlane.f32.xlu0 %v316
    %v318 = vpop.xlane.xlu0 %317
    %v319 = vsel %vm273, %v160, -inf
    %320 = vmax.xlane.f32.xlu0 %v319
    %v321 = vpop.xlane.xlu0 %320
    %v322 = vsel %vm273, %v161, -inf
    %323 = vmax.xlane.f32.xlu0 %v322
    %v324 = vpop.xlane.xlu0 %323
    %v325 = vsel %vm273, %v162, -inf
    %326 = vmax.xlane.f32.xlu0 %v325
    %v327 = vpop.xlane.xlu0 %326
    %v328 = vsel %vm273, %v163, -inf
    %329 = vmax.xlane.f32.xlu0 %v328
    %v330 = vpop.xlane.xlu0 %329
    %v331 = vsel %vm273, %v164, -inf
    %332 = vmax.xlane.f32.xlu0 %v331
    %v333 = vpop.xlane.xlu0 %332
    %v334 = vsel %vm273, %v165, -inf
    %335 = vmax.xlane.f32.xlu0 %v334
    %v336 = vpop.xlane.xlu0 %335
    %v337 = vsel %vm273, %v166, -inf
    %338 = vmax.xlane.f32.xlu0 %v337
    %v339 = vpop.xlane.xlu0 %338
    %v340 = vsel %vm273, %v167, -inf
    %341 = vmax.xlane.f32.xlu0 %v340
    %v342 = vpop.xlane.xlu0 %341
    %v343 = vsel %vm273, %v168, -inf
    %344 = vmax.xlane.f32.xlu0 %v343
    %v345 = vpop.xlane.xlu0 %344
    %v346 = vsel %vm273, %v169, -inf
    %347 = vmax.xlane.f32.xlu0 %v346
    %v348 = vpop.xlane.xlu0 %347
    %v349 = vsel %vm273, %v170, -inf
    %350 = vmax.xlane.f32.xlu0 %v349
    %v351 = vpop.xlane.xlu0 %350
    %v352 = vsel %vm273, %v171, -inf
    %353 = vmax.xlane.f32.xlu0 %v352
    %v354 = vpop.xlane.xlu0 %353
    %v355 = vsel %vm273, %v172, -inf
    %356 = vmax.xlane.f32.xlu0 %v355
    %v357 = vpop.xlane.xlu0 %356
    %v358 = vsel %vm273, %v173, -inf
    %359 = vmax.xlane.f32.xlu0 %v358
    %v360 = vpop.xlane.xlu0 %359
    %v361 = vsel %vm273, %v174, -inf
    %362 = vmax.xlane.f32.xlu0 %v361
    %v363 = vpop.xlane.xlu0 %362
    %v364 = vsel %vm273, %v175, -inf
    %365 = vmax.xlane.f32.xlu0 %v364
    %v366 = vpop.xlane.xlu0 %365
    %v367 = vsel %vm273, %v176, -inf
    %368 = vmax.xlane.f32.xlu0 %v367
    %v369 = vpop.xlane.xlu0 %368
    %v370 = vsel %vm273, %v177, -inf
    %371 = vmax.xlane.f32.xlu0 %v370
    %v372 = vpop.xlane.xlu0 %371
    %v373 = vsel %vm273, %v178, -inf
    %374 = vmax.xlane.f32.xlu0 %v373
    %v375 = vpop.xlane.xlu0 %374
    %v376 = vsel %vm273, %v179, -inf
    %377 = vmax.xlane.f32.xlu0 %v376
    %v378 = vpop.xlane.xlu0 %377
    %v379 = vsel %vm273, %v180, -inf
    %380 = vmax.xlane.f32.xlu0 %v379
    %v381 = vpop.xlane.xlu0 %380
    %v382 = vsel %vm273, %v181, -inf
    %383 = vmax.xlane.f32.xlu0 %v382
    %v384 = vpop.xlane.xlu0 %383
    %v385 = vsel %vm273, %v182, -inf
    %386 = vmax.xlane.f32.xlu0 %v385
    %v387 = vpop.xlane.xlu0 %386
    %v388 = vsel %vm273, %v183, -inf
    %389 = vmax.xlane.f32.xlu0 %v388
    %v390 = vpop.xlane.xlu0 %389
    %v391 = vsel %vm273, %v184, -inf
    %392 = vmax.xlane.f32.xlu0 %v391
    %v393 = vpop.xlane.xlu0 %392
    %v394 = vsel %vm273, %v185, -inf
    %395 = vmax.xlane.f32.xlu0 %v394
    %v396 = vpop.xlane.xlu0 %395
    %v397 = vsel %vm273, %v186, -inf
    %398 = vmax.xlane.f32.xlu0 %v397
    %v399 = vpop.xlane.xlu0 %398
    %v400 = vsel %vm273, %v187, -inf
    %401 = vmax.xlane.f32.xlu0 %v400
    %v402 = vpop.xlane.xlu0 %401
    %v403 = vsel %vm273, %v188, -inf
    %404 = vmax.xlane.f32.xlu0 %v403
    %v405 = vpop.xlane.xlu0 %404
    %v406 = vsel %vm273, %v189, -inf
    %407 = vmax.xlane.f32.xlu0 %v406
    %v408 = vpop.xlane.xlu0 %407
    %v409 = vsel %vm273, %v190, -inf
    %410 = vmax.xlane.f32.xlu0 %v409
    %v411 = vpop.xlane.xlu0 %410
    %v412 = vsel %vm273, %v191, -inf
    %413 = vmax.xlane.f32.xlu0 %v412
    %v414 = vpop.xlane.xlu0 %413
    %v415 = vsel %vm273, %v192, -inf
    %416 = vmax.xlane.f32.xlu0 %v415
    %v417 = vpop.xlane.xlu0 %416
    %v418 = vsel %vm273, %v193, -inf
    %419 = vmax.xlane.f32.xlu0 %v418
    %v420 = vpop.xlane.xlu0 %419
    %v421 = vsel %vm273, %v194, -inf
    %422 = vmax.xlane.f32.xlu0 %v421
    %v423 = vpop.xlane.xlu0 %422
    %v424 = vsel %vm273, %v195, -inf
    %425 = vmax.xlane.f32.xlu0 %v424
    %v426 = vpop.xlane.xlu0 %425
    %v427 = vsel %vm273, %v196, -inf
    %428 = vmax.xlane.f32.xlu0 %v427
    %v429 = vpop.xlane.xlu0 %428
    %v430 = vsel %vm273, %v197, -inf
    %431 = vmax.xlane.f32.xlu0 %v430
    %v432 = vpop.xlane.xlu0 %431
    %v433 = vsel %vm273, %v198, -inf
    %434 = vmax.xlane.f32.xlu0 %v433
    %v435 = vpop.xlane.xlu0 %434
    %v436 = vsel %vm273, %v199, -inf
    %437 = vmax.xlane.f32.xlu0 %v436
    %v438 = vpop.xlane.xlu0 %437
    %v439 = vsel %vm273, %v200, -inf
    %440 = vmax.xlane.f32.xlu0 %v439
    %v441 = vpop.xlane.xlu0 %440
    %v442 = vsel %vm273, %v201, -inf
    %443 = vmax.xlane.f32.xlu0 %v442
    %v444 = vpop.xlane.xlu0 %443
    %v445 = vsel %vm273, %v202, -inf
    %446 = vmax.xlane.f32.xlu0 %v445
    %v447 = vpop.xlane.xlu0 %446
    %v448 = vsel %vm273, %v203, -inf
    %449 = vmax.xlane.f32.xlu0 %v448
    %v450 = vpop.xlane.xlu0 %449
    %v451 = vsel %vm273, %v204, -inf
    %452 = vmax.xlane.f32.xlu0 %v451
    %v453 = vpop.xlane.xlu0 %452
    %v454 = vsel %vm273, %v205, -inf
    %455 = vmax.xlane.f32.xlu0 %v454
    %v456 = vpop.xlane.xlu0 %455
    %v457 = vsel %vm273, %v206, -inf
    %458 = vmax.xlane.f32.xlu0 %v457
    %v459 = vpop.xlane.xlu0 %458
    %v460 = vsel %vm273, %v207, -inf
    %461 = vmax.xlane.f32.xlu0 %v460
    %v462 = vpop.xlane.xlu0 %461
    %v463 = vsel %vm273, %v208, -inf
    %464 = vmax.xlane.f32.xlu0 %v463
    %v465 = vpop.xlane.xlu0 %464
    %v466 = vsub.f32 %v145, %v276
    %v467 = vsub.f32 %v146, %v279
    %v468 = vsub.f32 %v147, %v282
    %v469 = vsub.f32 %v148, %v285
    %v470 = vsub.f32 %v149, %v288
    %v471 = vsub.f32 %v150, %v291
    %v472 = vsub.f32 %v151, %v294
    %v473 = vsub.f32 %v152, %v297
    %v474 = vsub.f32 %v153, %v300
    %v475 = vsub.f32 %v154, %v303
    %v476 = vsub.f32 %v155, %v306
    %v477 = vsub.f32 %v156, %v309
    %v478 = vsub.f32 %v157, %v312
    %v479 = vsub.f32 %v158, %v315
    %v480 = vsub.f32 %v159, %v318
    %v481 = vsub.f32 %v160, %v321
    %v482 = vsub.f32 %v161, %v324
    %v483 = vsub.f32 %v162, %v327
    %v484 = vsub.f32 %v163, %v330
    %v485 = vsub.f32 %v164, %v333
    %v486 = vsub.f32 %v165, %v336
    %v487 = vsub.f32 %v166, %v339
    %v488 = vsub.f32 %v167, %v342
    %v489 = vsub.f32 %v168, %v345
    %v490 = vsub.f32 %v169, %v348
    %v491 = vsub.f32 %v170, %v351
    %v492 = vsub.f32 %v171, %v354
    %v493 = vsub.f32 %v172, %v357
    %v494 = vsub.f32 %v173, %v360
    %v495 = vsub.f32 %v174, %v363
    %v496 = vsub.f32 %v175, %v366
    %v497 = vsub.f32 %v176, %v369
    %v498 = vsub.f32 %v177, %v372
    %v499 = vsub.f32 %v178, %v375
    %v500 = vsub.f32 %v179, %v378
    %v501 = vsub.f32 %v180, %v381
    %v502 = vsub.f32 %v181, %v384
    %v503 = vsub.f32 %v182, %v387
    %v504 = vsub.f32 %v183, %v390
    %v505 = vsub.f32 %v184, %v393
    %v506 = vsub.f32 %v185, %v396
    %v507 = vsub.f32 %v186, %v399
    %v508 = vsub.f32 %v187, %v402
    %v509 = vsub.f32 %v188, %v405
    %v510 = vsub.f32 %v189, %v408
    %v511 = vsub.f32 %v190, %v411
    %v512 = vsub.f32 %v191, %v414
    %v513 = vsub.f32 %v192, %v417
    %v514 = vsub.f32 %v193, %v420
    %v515 = vsub.f32 %v194, %v423
    %v516 = vsub.f32 %v195, %v426
    %v517 = vsub.f32 %v196, %v429
    %v518 = vsub.f32 %v197, %v432
    %v519 = vsub.f32 %v198, %v435
    %v520 = vsub.f32 %v199, %v438
    %v521 = vsub.f32 %v200, %v441
    %v522 = vsub.f32 %v201, %v444
    %v523 = vsub.f32 %v202, %v447
    %v524 = vsub.f32 %v203, %v450
    %v525 = vsub.f32 %v204, %v453
    %v526 = vsub.f32 %v205, %v456
    %v527 = vsub.f32 %v206, %v459
    %v528 = vsub.f32 %v207, %v462
    %v529 = vsub.f32 %v208, %v465
    %v530 = vmul.f32 %v466, 1.442695
    %v531 = vpow.pop %v530
    %v532 = vmul.f32 %v467, 1.442695
    %v533 = vpow.pop %v532
    %v534 = vmul.f32 %v468, 1.442695
    %v535 = vpow.pop %v534
    %v536 = vmul.f32 %v469, 1.442695
    %v537 = vpow.pop %v536
    %v538 = vmul.f32 %v470, 1.442695
    %v539 = vpow.pop %v538
    %v540 = vmul.f32 %v471, 1.442695
    %v541 = vpow.pop %v540
    %v542 = vmul.f32 %v472, 1.442695
    %v543 = vpow.pop %v542
    %v544 = vmul.f32 %v473, 1.442695
    %v545 = vpow.pop %v544
    %v546 = vmul.f32 %v474, 1.442695
    %v547 = vpow.pop %v546
    %v548 = vmul.f32 %v475, 1.442695
    %v549 = vpow.pop %v548
    %v550 = vmul.f32 %v476, 1.442695
    %v551 = vpow.pop %v550
    %v552 = vmul.f32 %v477, 1.442695
    %v553 = vpow.pop %v552
    %v554 = vmul.f32 %v478, 1.442695
    %v555 = vpow.pop %v554
    %v556 = vmul.f32 %v479, 1.442695
    %v557 = vpow.pop %v556
    %v558 = vmul.f32 %v480, 1.442695
    %v559 = vpow.pop %v558
    %v560 = vmul.f32 %v481, 1.442695
    %v561 = vpow.pop %v560
    %v562 = vmul.f32 %v482, 1.442695
    %v563 = vpow.pop %v562
    %v564 = vmul.f32 %v483, 1.442695
    %v565 = vpow.pop %v564
    %v566 = vmul.f32 %v484, 1.442695
    %v567 = vpow.pop %v566
    %v568 = vmul.f32 %v485, 1.442695
    %v569 = vpow.pop %v568
    %v570 = vmul.f32 %v486, 1.442695
    %v571 = vpow.pop %v570
    %v572 = vmul.f32 %v487, 1.442695
    %v573 = vpow.pop %v572
    %v574 = vmul.f32 %v488, 1.442695
    %v575 = vpow.pop %v574
    %v576 = vmul.f32 %v489, 1.442695
    %v577 = vpow.pop %v576
    %v578 = vmul.f32 %v490, 1.442695
    %v579 = vpow.pop %v578
    %v580 = vmul.f32 %v491, 1.442695
    %v581 = vpow.pop %v580
    %v582 = vmul.f32 %v492, 1.442695
    %v583 = vpow.pop %v582
    %v584 = vmul.f32 %v493, 1.442695
    %v585 = vpow.pop %v584
    %v586 = vmul.f32 %v494, 1.442695
    %v587 = vpow.pop %v586
    %v588 = vmul.f32 %v495, 1.442695
    %v589 = vpow.pop %v588
    %v590 = vmul.f32 %v496, 1.442695
    %v591 = vpow.pop %v590
    %v592 = vmul.f32 %v497, 1.442695
    %v593 = vpow.pop %v592
    %v594 = vmul.f32 %v498, 1.442695
    %v595 = vpow.pop %v594
    %v596 = vmul.f32 %v499, 1.442695
    %v597 = vpow.pop %v596
    %v598 = vmul.f32 %v500, 1.442695
    %v599 = vpow.pop %v598
    %v600 = vmul.f32 %v501, 1.442695
    %v601 = vpow.pop %v600
    %v602 = vmul.f32 %v502, 1.442695
    %v603 = vpow.pop %v602
    %v604 = vmul.f32 %v503, 1.442695
    %v605 = vpow.pop %v604
    %v606 = vmul.f32 %v504, 1.442695
    %v607 = vpow.pop %v606
    %v608 = vmul.f32 %v505, 1.442695
    %v609 = vpow.pop %v608
    %v610 = vmul.f32 %v506, 1.442695
    %v611 = vpow.pop %v610
    %v612 = vmul.f32 %v507, 1.442695
    %v613 = vpow.pop %v612
    %v614 = vmul.f32 %v508, 1.442695
    %v615 = vpow.pop %v614
    %v616 = vmul.f32 %v509, 1.442695
    %v617 = vpow.pop %v616
    %v618 = vmul.f32 %v510, 1.442695
    %v619 = vpow.pop %v618
    %v620 = vmul.f32 %v511, 1.442695
    %v621 = vpow.pop %v620
    %v622 = vmul.f32 %v512, 1.442695
    %v623 = vpow.pop %v622
    %v624 = vmul.f32 %v513, 1.442695
    %v625 = vpow.pop %v624
    %v626 = vmul.f32 %v514, 1.442695
    %v627 = vpow.pop %v626
    %v628 = vmul.f32 %v515, 1.442695
    %v629 = vpow.pop %v628
    %v630 = vmul.f32 %v516, 1.442695
    %v631 = vpow.pop %v630
    %v632 = vmul.f32 %v517, 1.442695
    %v633 = vpow.pop %v632
    %v634 = vmul.f32 %v518, 1.442695
    %v635 = vpow.pop %v634
    %v636 = vmul.f32 %v519, 1.442695
    %v637 = vpow.pop %v636
    %v638 = vmul.f32 %v520, 1.442695
    %v639 = vpow.pop %v638
    %v640 = vmul.f32 %v521, 1.442695
    %v641 = vpow.pop %v640
    %v642 = vmul.f32 %v522, 1.442695
    %v643 = vpow.pop %v642
    %v644 = vmul.f32 %v523, 1.442695
    %v645 = vpow.pop %v644
    %v646 = vmul.f32 %v524, 1.442695
    %v647 = vpow.pop %v646
    %v648 = vmul.f32 %v525, 1.442695
    %v649 = vpow.pop %v648
    %v650 = vmul.f32 %v526, 1.442695
    %v651 = vpow.pop %v650
    %v652 = vmul.f32 %v527, 1.442695
    %v653 = vpow.pop %v652
    %v654 = vmul.f32 %v528, 1.442695
    %v655 = vpow.pop %v654
    %v656 = vmul.f32 %v529, 1.442695
    %v657 = vpow.pop %v656
    %v658 = vsel %vm273, %v531, 0.0
    %659 = vadd.xlane.f32.xlu0 %v658
    %v660 = vpop.xlane.xlu0 %659
    %v661 = vsel %vm273, %v533, 0.0
    %662 = vadd.xlane.f32.xlu0 %v661
    %v663 = vpop.xlane.xlu0 %662
    %v664 = vsel %vm273, %v535, 0.0
    %665 = vadd.xlane.f32.xlu0 %v664
    %v666 = vpop.xlane.xlu0 %665
    %v667 = vsel %vm273, %v537, 0.0
    %668 = vadd.xlane.f32.xlu0 %v667
    %v669 = vpop.xlane.xlu0 %668
    %v670 = vsel %vm273, %v539, 0.0
    %671 = vadd.xlane.f32.xlu0 %v670
    %v672 = vpop.xlane.xlu0 %671
    %v673 = vsel %vm273, %v541, 0.0
    %674 = vadd.xlane.f32.xlu0 %v673
    %v675 = vpop.xlane.xlu0 %674
    %v676 = vsel %vm273, %v543, 0.0
    %677 = vadd.xlane.f32.xlu0 %v676
    %v678 = vpop.xlane.xlu0 %677
    %v679 = vsel %vm273, %v545, 0.0
    %680 = vadd.xlane.f32.xlu0 %v679
    %v681 = vpop.xlane.xlu0 %680
    %v682 = vsel %vm273, %v547, 0.0
    %683 = vadd.xlane.f32.xlu0 %v682
    %v684 = vpop.xlane.xlu0 %683
    %v685 = vsel %vm273, %v549, 0.0
    %686 = vadd.xlane.f32.xlu0 %v685
    %v687 = vpop.xlane.xlu0 %686
    %v688 = vsel %vm273, %v551, 0.0
    %689 = vadd.xlane.f32.xlu0 %v688
    %v690 = vpop.xlane.xlu0 %689
    %v691 = vsel %vm273, %v553, 0.0
    %692 = vadd.xlane.f32.xlu0 %v691
    %v693 = vpop.xlane.xlu0 %692
    %v694 = vsel %vm273, %v555, 0.0
    %695 = vadd.xlane.f32.xlu0 %v694
    %v696 = vpop.xlane.xlu0 %695
    %v697 = vsel %vm273, %v557, 0.0
    %698 = vadd.xlane.f32.xlu0 %v697
    %v699 = vpop.xlane.xlu0 %698
    %v700 = vsel %vm273, %v559, 0.0
    %701 = vadd.xlane.f32.xlu0 %v700
    %v702 = vpop.xlane.xlu0 %701
    %v703 = vsel %vm273, %v561, 0.0
    %704 = vadd.xlane.f32.xlu0 %v703
    %v705 = vpop.xlane.xlu0 %704
    %v706 = vsel %vm273, %v563, 0.0
    %707 = vadd.xlane.f32.xlu0 %v706
    %v708 = vpop.xlane.xlu0 %707
    %v709 = vsel %vm273, %v565, 0.0
    %710 = vadd.xlane.f32.xlu0 %v709
    %v711 = vpop.xlane.xlu0 %710
    %v712 = vsel %vm273, %v567, 0.0
    %713 = vadd.xlane.f32.xlu0 %v712
    %v714 = vpop.xlane.xlu0 %713
    %v715 = vsel %vm273, %v569, 0.0
    %716 = vadd.xlane.f32.xlu0 %v715
    %v717 = vpop.xlane.xlu0 %716
    %v718 = vsel %vm273, %v571, 0.0
    %719 = vadd.xlane.f32.xlu0 %v718
    %v720 = vpop.xlane.xlu0 %719
    %v721 = vsel %vm273, %v573, 0.0
    %722 = vadd.xlane.f32.xlu0 %v721
    %v723 = vpop.xlane.xlu0 %722
    %v724 = vsel %vm273, %v575, 0.0
    %725 = vadd.xlane.f32.xlu0 %v724
    %v726 = vpop.xlane.xlu0 %725
    %v727 = vsel %vm273, %v577, 0.0
    %728 = vadd.xlane.f32.xlu0 %v727
    %v729 = vpop.xlane.xlu0 %728
    %v730 = vsel %vm273, %v579, 0.0
    %731 = vadd.xlane.f32.xlu0 %v730
    %v732 = vpop.xlane.xlu0 %731
    %v733 = vsel %vm273, %v581, 0.0
    %734 = vadd.xlane.f32.xlu0 %v733
    %v735 = vpop.xlane.xlu0 %734
    %v736 = vsel %vm273, %v583, 0.0
    %737 = vadd.xlane.f32.xlu0 %v736
    %v738 = vpop.xlane.xlu0 %737
    %v739 = vsel %vm273, %v585, 0.0
    %740 = vadd.xlane.f32.xlu0 %v739
    %v741 = vpop.xlane.xlu0 %740
    %v742 = vsel %vm273, %v587, 0.0
    %743 = vadd.xlane.f32.xlu0 %v742
    %v744 = vpop.xlane.xlu0 %743
    %v745 = vsel %vm273, %v589, 0.0
    %746 = vadd.xlane.f32.xlu0 %v745
    %v747 = vpop.xlane.xlu0 %746
    %v748 = vsel %vm273, %v591, 0.0
    %749 = vadd.xlane.f32.xlu0 %v748
    %v750 = vpop.xlane.xlu0 %749
    %v751 = vsel %vm273, %v593, 0.0
    %752 = vadd.xlane.f32.xlu0 %v751
    %v753 = vpop.xlane.xlu0 %752
    %v754 = vsel %vm273, %v595, 0.0
    %755 = vadd.xlane.f32.xlu0 %v754
    %v756 = vpop.xlane.xlu0 %755
    %v757 = vsel %vm273, %v597, 0.0
    %758 = vadd.xlane.f32.xlu0 %v757
    %v759 = vpop.xlane.xlu0 %758
    %v760 = vsel %vm273, %v599, 0.0
    %761 = vadd.xlane.f32.xlu0 %v760
    %v762 = vpop.xlane.xlu0 %761
    %v763 = vsel %vm273, %v601, 0.0
    %764 = vadd.xlane.f32.xlu0 %v763
    %v765 = vpop.xlane.xlu0 %764
    %v766 = vsel %vm273, %v603, 0.0
    %767 = vadd.xlane.f32.xlu0 %v766
    %v768 = vpop.xlane.xlu0 %767
    %v769 = vsel %vm273, %v605, 0.0
    %770 = vadd.xlane.f32.xlu0 %v769
    %v771 = vpop.xlane.xlu0 %770
    %v772 = vsel %vm273, %v607, 0.0
    %773 = vadd.xlane.f32.xlu0 %v772
    %v774 = vpop.xlane.xlu0 %773
    %v775 = vsel %vm273, %v609, 0.0
    %776 = vadd.xlane.f32.xlu0 %v775
    %v777 = vpop.xlane.xlu0 %776
    %v778 = vsel %vm273, %v611, 0.0
    %779 = vadd.xlane.f32.xlu0 %v778
    %v780 = vpop.xlane.xlu0 %779
    %v781 = vsel %vm273, %v613, 0.0
    %782 = vadd.xlane.f32.xlu0 %v781
    %v783 = vpop.xlane.xlu0 %782
    %v784 = vsel %vm273, %v615, 0.0
    %785 = vadd.xlane.f32.xlu0 %v784
    %v786 = vpop.xlane.xlu0 %785
    %v787 = vsel %vm273, %v617, 0.0
    %788 = vadd.xlane.f32.xlu0 %v787
    %v789 = vpop.xlane.xlu0 %788
    %v790 = vsel %vm273, %v619, 0.0
    %791 = vadd.xlane.f32.xlu0 %v790
    %v792 = vpop.xlane.xlu0 %791
    %v793 = vsel %vm273, %v621, 0.0
    %794 = vadd.xlane.f32.xlu0 %v793
    %v795 = vpop.xlane.xlu0 %794
    %v796 = vsel %vm273, %v623, 0.0
    %797 = vadd.xlane.f32.xlu0 %v796
    %v798 = vpop.xlane.xlu0 %797
    %v799 = vsel %vm273, %v625, 0.0
    %800 = vadd.xlane.f32.xlu0 %v799
    %v801 = vpop.xlane.xlu0 %800
    %v802 = vsel %vm273, %v627, 0.0
    %803 = vadd.xlane.f32.xlu0 %v802
    %v804 = vpop.xlane.xlu0 %803
    %v805 = vsel %vm273, %v629, 0.0
    %806 = vadd.xlane.f32.xlu0 %v805
    %v807 = vpop.xlane.xlu0 %806
    %v808 = vsel %vm273, %v631, 0.0
    %809 = vadd.xlane.f32.xlu0 %v808
    %v810 = vpop.xlane.xlu0 %809
    %v811 = vsel %vm273, %v633, 0.0
    %812 = vadd.xlane.f32.xlu0 %v811
    %v813 = vpop.xlane.xlu0 %812
    %v814 = vsel %vm273, %v635, 0.0
    %815 = vadd.xlane.f32.xlu0 %v814
    %v816 = vpop.xlane.xlu0 %815
    %v817 = vsel %vm273, %v637, 0.0
    %818 = vadd.xlane.f32.xlu0 %v817
    %v819 = vpop.xlane.xlu0 %818
    %v820 = vsel %vm273, %v639, 0.0
    %821 = vadd.xlane.f32.xlu0 %v820
    %v822 = vpop.xlane.xlu0 %821
    %v823 = vsel %vm273, %v641, 0.0
    %824 = vadd.xlane.f32.xlu0 %v823
    %v825 = vpop.xlane.xlu0 %824
    %v826 = vsel %vm273, %v643, 0.0
    %827 = vadd.xlane.f32.xlu0 %v826
    %v828 = vpop.xlane.xlu0 %827
    %v829 = vsel %vm273, %v645, 0.0
    %830 = vadd.xlane.f32.xlu0 %v829
    %v831 = vpop.xlane.xlu0 %830
    %v832 = vsel %vm273, %v647, 0.0
    %833 = vadd.xlane.f32.xlu0 %v832
    %v834 = vpop.xlane.xlu0 %833
    %v835 = vsel %vm273, %v649, 0.0
    %836 = vadd.xlane.f32.xlu0 %v835
    %v837 = vpop.xlane.xlu0 %836
    %v838 = vsel %vm273, %v651, 0.0
    %839 = vadd.xlane.f32.xlu0 %v838
    %v840 = vpop.xlane.xlu0 %839
    %v841 = vsel %vm273, %v653, 0.0
    %842 = vadd.xlane.f32.xlu0 %v841
    %v843 = vpop.xlane.xlu0 %842
    %v844 = vsel %vm273, %v655, 0.0
    %845 = vadd.xlane.f32.xlu0 %v844
    %v846 = vpop.xlane.xlu0 %845
    %v847 = vsel %vm273, %v657, 0.0
    %848 = vadd.xlane.f32.xlu0 %v847
    %v849 = vpop.xlane.xlu0 %848
    %v850 = vlog2.pop %v660
    %v851 = vmul.f32 %v850, 0.6931472
    %v852 = vlog2.pop %v663
    %v853 = vmul.f32 %v852, 0.6931472
    %v854 = vlog2.pop %v666
    %v855 = vmul.f32 %v854, 0.6931472
    %v856 = vlog2.pop %v669
    %v857 = vmul.f32 %v856, 0.6931472
    %v858 = vlog2.pop %v672
    %v859 = vmul.f32 %v858, 0.6931472
    %v860 = vlog2.pop %v675
    %v861 = vmul.f32 %v860, 0.6931472
    %v862 = vlog2.pop %v678
    %v863 = vmul.f32 %v862, 0.6931472
    %v864 = vlog2.pop %v681
    %v865 = vmul.f32 %v864, 0.6931472
    %v866 = vlog2.pop %v684
    %v867 = vmul.f32 %v866, 0.6931472
    %v868 = vlog2.pop %v687
    %v869 = vmul.f32 %v868, 0.6931472
    %v870 = vlog2.pop %v690
    %v871 = vmul.f32 %v870, 0.6931472
    %v872 = vlog2.pop %v693
    %v873 = vmul.f32 %v872, 0.6931472
    %v874 = vlog2.pop %v696
    %v875 = vmul.f32 %v874, 0.6931472
    %v876 = vlog2.pop %v699
    %v877 = vmul.f32 %v876, 0.6931472
    %v878 = vlog2.pop %v702
    %v879 = vmul.f32 %v878, 0.6931472
    %v880 = vlog2.pop %v705
    %v881 = vmul.f32 %v880, 0.6931472
    %v882 = vlog2.pop %v708
    %v883 = vmul.f32 %v882, 0.6931472
    %v884 = vlog2.pop %v711
    %v885 = vmul.f32 %v884, 0.6931472
    %v886 = vlog2.pop %v714
    %v887 = vmul.f32 %v886, 0.6931472
    %v888 = vlog2.pop %v717
    %v889 = vmul.f32 %v888, 0.6931472
    %v890 = vlog2.pop %v720
    %v891 = vmul.f32 %v890, 0.6931472
    %v892 = vlog2.pop %v723
    %v893 = vmul.f32 %v892, 0.6931472
    %v894 = vlog2.pop %v726
    %v895 = vmul.f32 %v894, 0.6931472
    %v896 = vlog2.pop %v729
    %v897 = vmul.f32 %v896, 0.6931472
    %v898 = vlog2.pop %v732
    %v899 = vmul.f32 %v898, 0.6931472
    %v900 = vlog2.pop %v735
    %v901 = vmul.f32 %v900, 0.6931472
    %v902 = vlog2.pop %v738
    %v903 = vmul.f32 %v902, 0.6931472
    %v904 = vlog2.pop %v741
    %v905 = vmul.f32 %v904, 0.6931472
    %v906 = vlog2.pop %v744
    %v907 = vmul.f32 %v906, 0.6931472
    %v908 = vlog2.pop %v747
    %v909 = vmul.f32 %v908, 0.6931472
    %v910 = vlog2.pop %v750
    %v911 = vmul.f32 %v910, 0.6931472
    %v912 = vlog2.pop %v753
    %v913 = vmul.f32 %v912, 0.6931472
    %v914 = vlog2.pop %v756
    %v915 = vmul.f32 %v914, 0.6931472
    %v916 = vlog2.pop %v759
    %v917 = vmul.f32 %v916, 0.6931472
    %v918 = vlog2.pop %v762
    %v919 = vmul.f32 %v918, 0.6931472
    %v920 = vlog2.pop %v765
    %v921 = vmul.f32 %v920, 0.6931472
    %v922 = vlog2.pop %v768
    %v923 = vmul.f32 %v922, 0.6931472
    %v924 = vlog2.pop %v771
    %v925 = vmul.f32 %v924, 0.6931472
    %v926 = vlog2.pop %v774
    %v927 = vmul.f32 %v926, 0.6931472
    %v928 = vlog2.pop %v777
    %v929 = vmul.f32 %v928, 0.6931472
    %v930 = vlog2.pop %v780
    %v931 = vmul.f32 %v930, 0.6931472
    %v932 = vlog2.pop %v783
    %v933 = vmul.f32 %v932, 0.6931472
    %v934 = vlog2.pop %v786
    %v935 = vmul.f32 %v934, 0.6931472
    %v936 = vlog2.pop %v789
    %v937 = vmul.f32 %v936, 0.6931472
    %v938 = vlog2.pop %v792
    %v939 = vmul.f32 %v938, 0.6931472
    %v940 = vlog2.pop %v795
    %v941 = vmul.f32 %v940, 0.6931472
    %v942 = vlog2.pop %v798
    %v943 = vmul.f32 %v942, 0.6931472
    %v944 = vlog2.pop %v801
    %v945 = vmul.f32 %v944, 0.6931472
    %v946 = vlog2.pop %v804
    %v947 = vmul.f32 %v946, 0.6931472
    %v948 = vlog2.pop %v807
    %v949 = vmul.f32 %v948, 0.6931472
    %v950 = vlog2.pop %v810
    %v951 = vmul.f32 %v950, 0.6931472
    %v952 = vlog2.pop %v813
    %v953 = vmul.f32 %v952, 0.6931472
    %v954 = vlog2.pop %v816
    %v955 = vmul.f32 %v954, 0.6931472
    %v956 = vlog2.pop %v819
    %v957 = vmul.f32 %v956, 0.6931472
    %v958 = vlog2.pop %v822
    %v959 = vmul.f32 %v958, 0.6931472
    %v960 = vlog2.pop %v825
    %v961 = vmul.f32 %v960, 0.6931472
    %v962 = vlog2.pop %v828
    %v963 = vmul.f32 %v962, 0.6931472
    %v964 = vlog2.pop %v831
    %v965 = vmul.f32 %v964, 0.6931472
    %v966 = vlog2.pop %v834
    %v967 = vmul.f32 %v966, 0.6931472
    %v968 = vlog2.pop %v837
    %v969 = vmul.f32 %v968, 0.6931472
    %v970 = vlog2.pop %v840
    %v971 = vmul.f32 %v970, 0.6931472
    %v972 = vlog2.pop %v843
    %v973 = vmul.f32 %v972, 0.6931472
    %v974 = vlog2.pop %v846
    %v975 = vmul.f32 %v974, 0.6931472
    %v976 = vlog2.pop %v849
    %v977 = vmul.f32 %v976, 0.6931472
    %v978 = vsub.f32 %v466, %v851
    %v979 = vsub.f32 %v467, %v853
    %v980 = vsub.f32 %v468, %v855
    %v981 = vsub.f32 %v469, %v857
    %v982 = vsub.f32 %v470, %v859
    %v983 = vsub.f32 %v471, %v861
    %v984 = vsub.f32 %v472, %v863
    %v985 = vsub.f32 %v473, %v865
    %v986 = vsub.f32 %v474, %v867
    %v987 = vsub.f32 %v475, %v869
    %v988 = vsub.f32 %v476, %v871
    %v989 = vsub.f32 %v477, %v873
    %v990 = vsub.f32 %v478, %v875
    %v991 = vsub.f32 %v479, %v877
    %v992 = vsub.f32 %v480, %v879
    %v993 = vsub.f32 %v481, %v881
    %v994 = vsub.f32 %v482, %v883
    %v995 = vsub.f32 %v483, %v885
    %v996 = vsub.f32 %v484, %v887
    %v997 = vsub.f32 %v485, %v889
    %v998 = vsub.f32 %v486, %v891
    %v999 = vsub.f32 %v487, %v893
    %v1000 = vsub.f32 %v488, %v895
    %v1001 = vsub.f32 %v489, %v897
    %v1002 = vsub.f32 %v490, %v899
    %v1003 = vsub.f32 %v491, %v901
    %v1004 = vsub.f32 %v492, %v903
    %v1005 = vsub.f32 %v493, %v905
    %v1006 = vsub.f32 %v494, %v907
    %v1007 = vsub.f32 %v495, %v909
    %v1008 = vsub.f32 %v496, %v911
    %v1009 = vsub.f32 %v497, %v913
    %v1010 = vsub.f32 %v498, %v915
    %v1011 = vsub.f32 %v499, %v917
    %v1012 = vsub.f32 %v500, %v919
    %v1013 = vsub.f32 %v501, %v921
    %v1014 = vsub.f32 %v502, %v923
    %v1015 = vsub.f32 %v503, %v925
    %v1016 = vsub.f32 %v504, %v927
    %v1017 = vsub.f32 %v505, %v929
    %v1018 = vsub.f32 %v506, %v931
    %v1019 = vsub.f32 %v507, %v933
    %v1020 = vsub.f32 %v508, %v935
    %v1021 = vsub.f32 %v509, %v937
    %v1022 = vsub.f32 %v510, %v939
    %v1023 = vsub.f32 %v511, %v941
    %v1024 = vsub.f32 %v512, %v943
    %v1025 = vsub.f32 %v513, %v945
    %v1026 = vsub.f32 %v514, %v947
    %v1027 = vsub.f32 %v515, %v949
    %v1028 = vsub.f32 %v516, %v951
    %v1029 = vsub.f32 %v517, %v953
    %v1030 = vsub.f32 %v518, %v955
    %v1031 = vsub.f32 %v519, %v957
    %v1032 = vsub.f32 %v520, %v959
    %v1033 = vsub.f32 %v521, %v961
    %v1034 = vsub.f32 %v522, %v963
    %v1035 = vsub.f32 %v523, %v965
    %v1036 = vsub.f32 %v524, %v967
    %v1037 = vsub.f32 %v525, %v969
    %v1038 = vsub.f32 %v526, %v971
    %v1039 = vsub.f32 %v527, %v973
    %v1040 = vsub.f32 %v528, %v975
    %v1041 = vsub.f32 %v529, %v977
    %v1042 = vlaneseq
    %v1043 = vand.u32 %v1042, 127
    %1044 = vset.pattern.permute.xlu0 0
    %1045 = vperm.xlu0 %1044, %v209
    %v1046 = vpop.permute.xlu0 %1045
    %1047 = vset.pattern.permute.xlu0 0
    %1048 = vperm.xlu0 %1047, %v210
    %v1049 = vpop.permute.xlu0 %1048
    %1050 = vset.pattern.permute.xlu0 0
    %1051 = vperm.xlu0 %1050, %v211
    %v1052 = vpop.permute.xlu0 %1051
    %1053 = vset.pattern.permute.xlu0 0
    %1054 = vperm.xlu0 %1053, %v212
    %v1055 = vpop.permute.xlu0 %1054
    %1056 = vset.pattern.permute.xlu0 0
    %1057 = vperm.xlu0 %1056, %v213
    %v1058 = vpop.permute.xlu0 %1057
    %1059 = vset.pattern.permute.xlu0 0
    %1060 = vperm.xlu0 %1059, %v214
    %v1061 = vpop.permute.xlu0 %1060
    %1062 = vset.pattern.permute.xlu0 0
    %1063 = vperm.xlu0 %1062, %v215
    %v1064 = vpop.permute.xlu0 %1063
    %1065 = vset.pattern.permute.xlu0 0
    %1066 = vperm.xlu0 %1065, %v216
    %v1067 = vpop.permute.xlu0 %1066
    %1068 = vset.pattern.permute.xlu0 0
    %1069 = vperm.xlu0 %1068, %v217
    %v1070 = vpop.permute.xlu0 %1069
    %1071 = vset.pattern.permute.xlu0 0
    %1072 = vperm.xlu0 %1071, %v218
    %v1073 = vpop.permute.xlu0 %1072
    %1074 = vset.pattern.permute.xlu0 0
    %1075 = vperm.xlu0 %1074, %v219
    %v1076 = vpop.permute.xlu0 %1075
    %1077 = vset.pattern.permute.xlu0 0
    %1078 = vperm.xlu0 %1077, %v220
    %v1079 = vpop.permute.xlu0 %1078
    %1080 = vset.pattern.permute.xlu0 0
    %1081 = vperm.xlu0 %1080, %v221
    %v1082 = vpop.permute.xlu0 %1081
    %1083 = vset.pattern.permute.xlu0 0
    %1084 = vperm.xlu0 %1083, %v222
    %v1085 = vpop.permute.xlu0 %1084
    %1086 = vset.pattern.permute.xlu0 0
    %1087 = vperm.xlu0 %1086, %v223
    %v1088 = vpop.permute.xlu0 %1087
    %1089 = vset.pattern.permute.xlu0 0
    %1090 = vperm.xlu0 %1089, %v224
    %v1091 = vpop.permute.xlu0 %1090
    %1092 = vset.pattern.permute.xlu0 0
    %1093 = vperm.xlu0 %1092, %v225
    %v1094 = vpop.permute.xlu0 %1093
    %1095 = vset.pattern.permute.xlu0 0
    %1096 = vperm.xlu0 %1095, %v226
    %v1097 = vpop.permute.xlu0 %1096
    %1098 = vset.pattern.permute.xlu0 0
    %1099 = vperm.xlu0 %1098, %v227
    %v1100 = vpop.permute.xlu0 %1099
    %1101 = vset.pattern.permute.xlu0 0
    %1102 = vperm.xlu0 %1101, %v228
    %v1103 = vpop.permute.xlu0 %1102
    %1104 = vset.pattern.permute.xlu0 0
    %1105 = vperm.xlu0 %1104, %v229
    %v1106 = vpop.permute.xlu0 %1105
    %1107 = vset.pattern.permute.xlu0 0
    %1108 = vperm.xlu0 %1107, %v230
    %v1109 = vpop.permute.xlu0 %1108
    %1110 = vset.pattern.permute.xlu0 0
    %1111 = vperm.xlu0 %1110, %v231
    %v1112 = vpop.permute.xlu0 %1111
    %1113 = vset.pattern.permute.xlu0 0
    %1114 = vperm.xlu0 %1113, %v232
    %v1115 = vpop.permute.xlu0 %1114
    %1116 = vset.pattern.permute.xlu0 0
    %1117 = vperm.xlu0 %1116, %v233
    %v1118 = vpop.permute.xlu0 %1117
    %1119 = vset.pattern.permute.xlu0 0
    %1120 = vperm.xlu0 %1119, %v234
    %v1121 = vpop.permute.xlu0 %1120
    %1122 = vset.pattern.permute.xlu0 0
    %1123 = vperm.xlu0 %1122, %v235
    %v1124 = vpop.permute.xlu0 %1123
    %1125 = vset.pattern.permute.xlu0 0
    %1126 = vperm.xlu0 %1125, %v236
    %v1127 = vpop.permute.xlu0 %1126
    %1128 = vset.pattern.permute.xlu0 0
    %1129 = vperm.xlu0 %1128, %v237
    %v1130 = vpop.permute.xlu0 %1129
    %1131 = vset.pattern.permute.xlu0 0
    %1132 = vperm.xlu0 %1131, %v238
    %v1133 = vpop.permute.xlu0 %1132
    %1134 = vset.pattern.permute.xlu0 0
    %1135 = vperm.xlu0 %1134, %v239
    %v1136 = vpop.permute.xlu0 %1135
    %1137 = vset.pattern.permute.xlu0 0
    %1138 = vperm.xlu0 %1137, %v240
    %v1139 = vpop.permute.xlu0 %1138
    %1140 = vset.pattern.permute.xlu0 0
    %1141 = vperm.xlu0 %1140, %v241
    %v1142 = vpop.permute.xlu0 %1141
    %1143 = vset.pattern.permute.xlu0 0
    %1144 = vperm.xlu0 %1143, %v242
    %v1145 = vpop.permute.xlu0 %1144
    %1146 = vset.pattern.permute.xlu0 0
    %1147 = vperm.xlu0 %1146, %v243
    %v1148 = vpop.permute.xlu0 %1147
    %1149 = vset.pattern.permute.xlu0 0
    %1150 = vperm.xlu0 %1149, %v244
    %v1151 = vpop.permute.xlu0 %1150
    %1152 = vset.pattern.permute.xlu0 0
    %1153 = vperm.xlu0 %1152, %v245
    %v1154 = vpop.permute.xlu0 %1153
    %1155 = vset.pattern.permute.xlu0 0
    %1156 = vperm.xlu0 %1155, %v246
    %v1157 = vpop.permute.xlu0 %1156
    %1158 = vset.pattern.permute.xlu0 0
    %1159 = vperm.xlu0 %1158, %v247
    %v1160 = vpop.permute.xlu0 %1159
    %1161 = vset.pattern.permute.xlu0 0
    %1162 = vperm.xlu0 %1161, %v248
    %v1163 = vpop.permute.xlu0 %1162
    %1164 = vset.pattern.permute.xlu0 0
    %1165 = vperm.xlu0 %1164, %v249
    %v1166 = vpop.permute.xlu0 %1165
    %1167 = vset.pattern.permute.xlu0 0
    %1168 = vperm.xlu0 %1167, %v250
    %v1169 = vpop.permute.xlu0 %1168
    %1170 = vset.pattern.permute.xlu0 0
    %1171 = vperm.xlu0 %1170, %v251
    %v1172 = vpop.permute.xlu0 %1171
    %1173 = vset.pattern.permute.xlu0 0
    %1174 = vperm.xlu0 %1173, %v252
    %v1175 = vpop.permute.xlu0 %1174
    %1176 = vset.pattern.permute.xlu0 0
    %1177 = vperm.xlu0 %1176, %v253
    %v1178 = vpop.permute.xlu0 %1177
    %1179 = vset.pattern.permute.xlu0 0
    %1180 = vperm.xlu0 %1179, %v254
    %v1181 = vpop.permute.xlu0 %1180
    %1182 = vset.pattern.permute.xlu0 0
    %1183 = vperm.xlu0 %1182, %v255
    %v1184 = vpop.permute.xlu0 %1183
    %1185 = vset.pattern.permute.xlu0 0
    %1186 = vperm.xlu0 %1185, %v256
    %v1187 = vpop.permute.xlu0 %1186
    %1188 = vset.pattern.permute.xlu0 0
    %1189 = vperm.xlu0 %1188, %v257
    %v1190 = vpop.permute.xlu0 %1189
    %1191 = vset.pattern.permute.xlu0 0
    %1192 = vperm.xlu0 %1191, %v258
    %v1193 = vpop.permute.xlu0 %1192
    %1194 = vset.pattern.permute.xlu0 0
    %1195 = vperm.xlu0 %1194, %v259
    %v1196 = vpop.permute.xlu0 %1195
    %1197 = vset.pattern.permute.xlu0 0
    %1198 = vperm.xlu0 %1197, %v260
    %v1199 = vpop.permute.xlu0 %1198
    %1200 = vset.pattern.permute.xlu0 0
    %1201 = vperm.xlu0 %1200, %v261
    %v1202 = vpop.permute.xlu0 %1201
    %1203 = vset.pattern.permute.xlu0 0
    %1204 = vperm.xlu0 %1203, %v262
    %v1205 = vpop.permute.xlu0 %1204
    %1206 = vset.pattern.permute.xlu0 0
    %1207 = vperm.xlu0 %1206, %v263
    %v1208 = vpop.permute.xlu0 %1207
    %1209 = vset.pattern.permute.xlu0 0
    %1210 = vperm.xlu0 %1209, %v264
    %v1211 = vpop.permute.xlu0 %1210
    %1212 = vset.pattern.permute.xlu0 0
    %1213 = vperm.xlu0 %1212, %v265
    %v1214 = vpop.permute.xlu0 %1213
    %1215 = vset.pattern.permute.xlu0 0
    %1216 = vperm.xlu0 %1215, %v266
    %v1217 = vpop.permute.xlu0 %1216
    %1218 = vset.pattern.permute.xlu0 0
    %1219 = vperm.xlu0 %1218, %v267
    %v1220 = vpop.permute.xlu0 %1219
    %1221 = vset.pattern.permute.xlu0 0
    %1222 = vperm.xlu0 %1221, %v268
    %v1223 = vpop.permute.xlu0 %1222
    %1224 = vset.pattern.permute.xlu0 0
    %1225 = vperm.xlu0 %1224, %v269
    %v1226 = vpop.permute.xlu0 %1225
    %1227 = vset.pattern.permute.xlu0 0
    %1228 = vperm.xlu0 %1227, %v270
    %v1229 = vpop.permute.xlu0 %1228
    %1230 = vset.pattern.permute.xlu0 0
    %1231 = vperm.xlu0 %1230, %v271
    %v1232 = vpop.permute.xlu0 %1231
    %1233 = vset.pattern.permute.xlu0 0
    %1234 = vperm.xlu0 %1233, %v272
    %v1235 = vpop.permute.xlu0 %1234
    %vm1236 = vcmp.eq.s32.totalorder %v1043, %v1046
    %vm1237 = vcmp.eq.s32.totalorder %v1043, %v1049
    %vm1238 = vcmp.eq.s32.totalorder %v1043, %v1052
    %vm1239 = vcmp.eq.s32.totalorder %v1043, %v1055
    %vm1240 = vcmp.eq.s32.totalorder %v1043, %v1058
    %vm1241 = vcmp.eq.s32.totalorder %v1043, %v1061
    %vm1242 = vcmp.eq.s32.totalorder %v1043, %v1064
    %vm1243 = vcmp.eq.s32.totalorder %v1043, %v1067
    %vm1244 = vcmp.eq.s32.totalorder %v1043, %v1070
    %vm1245 = vcmp.eq.s32.totalorder %v1043, %v1073
    %vm1246 = vcmp.eq.s32.totalorder %v1043, %v1076
    %vm1247 = vcmp.eq.s32.totalorder %v1043, %v1079
    %vm1248 = vcmp.eq.s32.totalorder %v1043, %v1082
    %vm1249 = vcmp.eq.s32.totalorder %v1043, %v1085
    %vm1250 = vcmp.eq.s32.totalorder %v1043, %v1088
    %vm1251 = vcmp.eq.s32.totalorder %v1043, %v1091
    %vm1252 = vcmp.eq.s32.totalorder %v1043, %v1094
    %vm1253 = vcmp.eq.s32.totalorder %v1043, %v1097
    %vm1254 = vcmp.eq.s32.totalorder %v1043, %v1100
    %vm1255 = vcmp.eq.s32.totalorder %v1043, %v1103
    %vm1256 = vcmp.eq.s32.totalorder %v1043, %v1106
    %vm1257 = vcmp.eq.s32.totalorder %v1043, %v1109
    %vm1258 = vcmp.eq.s32.totalorder %v1043, %v1112
    %vm1259 = vcmp.eq.s32.totalorder %v1043, %v1115
    %vm1260 = vcmp.eq.s32.totalorder %v1043, %v1118
    %vm1261 = vcmp.eq.s32.totalorder %v1043, %v1121
    %vm1262 = vcmp.eq.s32.totalorder %v1043, %v1124
    %vm1263 = vcmp.eq.s32.totalorder %v1043, %v1127
    %vm1264 = vcmp.eq.s32.totalorder %v1043, %v1130
    %vm1265 = vcmp.eq.s32.totalorder %v1043, %v1133
    %vm1266 = vcmp.eq.s32.totalorder %v1043, %v1136
    %vm1267 = vcmp.eq.s32.totalorder %v1043, %v1139
    %vm1268 = vcmp.eq.s32.totalorder %v1043, %v1142
    %vm1269 = vcmp.eq.s32.totalorder %v1043, %v1145
    %vm1270 = vcmp.eq.s32.totalorder %v1043, %v1148
    %vm1271 = vcmp.eq.s32.totalorder %v1043, %v1151
    %vm1272 = vcmp.eq.s32.totalorder %v1043, %v1154
    %vm1273 = vcmp.eq.s32.totalorder %v1043, %v1157
    %vm1274 = vcmp.eq.s32.totalorder %v1043, %v1160
    %vm1275 = vcmp.eq.s32.totalorder %v1043, %v1163
    %vm1276 = vcmp.eq.s32.totalorder %v1043, %v1166
    %vm1277 = vcmp.eq.s32.totalorder %v1043, %v1169
    %vm1278 = vcmp.eq.s32.totalorder %v1043, %v1172
    %vm1279 = vcmp.eq.s32.totalorder %v1043, %v1175
    %vm1280 = vcmp.eq.s32.totalorder %v1043, %v1178
    %vm1281 = vcmp.eq.s32.totalorder %v1043, %v1181
    %vm1282 = vcmp.eq.s32.totalorder %v1043, %v1184
    %vm1283 = vcmp.eq.s32.totalorder %v1043, %v1187
    %vm1284 = vcmp.eq.s32.totalorder %v1043, %v1190
    %vm1285 = vcmp.eq.s32.totalorder %v1043, %v1193
    %vm1286 = vcmp.eq.s32.totalorder %v1043, %v1196
    %vm1287 = vcmp.eq.s32.totalorder %v1043, %v1199
    %vm1288 = vcmp.eq.s32.totalorder %v1043, %v1202
    %vm1289 = vcmp.eq.s32.totalorder %v1043, %v1205
    %vm1290 = vcmp.eq.s32.totalorder %v1043, %v1208
    %vm1291 = vcmp.eq.s32.totalorder %v1043, %v1211
    %vm1292 = vcmp.eq.s32.totalorder %v1043, %v1214
    %vm1293 = vcmp.eq.s32.totalorder %v1043, %v1217
    %vm1294 = vcmp.eq.s32.totalorder %v1043, %v1220
    %vm1295 = vcmp.eq.s32.totalorder %v1043, %v1223
    %vm1296 = vcmp.eq.s32.totalorder %v1043, %v1226
    %vm1297 = vcmp.eq.s32.totalorder %v1043, %v1229
    %vm1298 = vcmp.eq.s32.totalorder %v1043, %v1232
    %vm1299 = vcmp.eq.s32.totalorder %v1043, %v1235
    %v1300 = vsel %vm1236, 1, 0
    %v1301 = vsel %vm1237, 1, 0
    %v1302 = vsel %vm1238, 1, 0
    %v1303 = vsel %vm1239, 1, 0
    %v1304 = vsel %vm1240, 1, 0
    %v1305 = vsel %vm1241, 1, 0
    %v1306 = vsel %vm1242, 1, 0
    %v1307 = vsel %vm1243, 1, 0
    %v1308 = vsel %vm1244, 1, 0
    %v1309 = vsel %vm1245, 1, 0
    %v1310 = vsel %vm1246, 1, 0
    %v1311 = vsel %vm1247, 1, 0
    %v1312 = vsel %vm1248, 1, 0
    %v1313 = vsel %vm1249, 1, 0
    %v1314 = vsel %vm1250, 1, 0
    %v1315 = vsel %vm1251, 1, 0
    %v1316 = vsel %vm1252, 1, 0
    %v1317 = vsel %vm1253, 1, 0
    %v1318 = vsel %vm1254, 1, 0
    %v1319 = vsel %vm1255, 1, 0
    %v1320 = vsel %vm1256, 1, 0
    %v1321 = vsel %vm1257, 1, 0
    %v1322 = vsel %vm1258, 1, 0
    %v1323 = vsel %vm1259, 1, 0
    %v1324 = vsel %vm1260, 1, 0
    %v1325 = vsel %vm1261, 1, 0
    %v1326 = vsel %vm1262, 1, 0
    %v1327 = vsel %vm1263, 1, 0
    %v1328 = vsel %vm1264, 1, 0
    %v1329 = vsel %vm1265, 1, 0
    %v1330 = vsel %vm1266, 1, 0
    %v1331 = vsel %vm1267, 1, 0
    %v1332 = vsel %vm1268, 1, 0
    %v1333 = vsel %vm1269, 1, 0
    %v1334 = vsel %vm1270, 1, 0
    %v1335 = vsel %vm1271, 1, 0
    %v1336 = vsel %vm1272, 1, 0
    %v1337 = vsel %vm1273, 1, 0
    %v1338 = vsel %vm1274, 1, 0
    %v1339 = vsel %vm1275, 1, 0
    %v1340 = vsel %vm1276, 1, 0
    %v1341 = vsel %vm1277, 1, 0
    %v1342 = vsel %vm1278, 1, 0
    %v1343 = vsel %vm1279, 1, 0
    %v1344 = vsel %vm1280, 1, 0
    %v1345 = vsel %vm1281, 1, 0
    %v1346 = vsel %vm1282, 1, 0
    %v1347 = vsel %vm1283, 1, 0
    %v1348 = vsel %vm1284, 1, 0
    %v1349 = vsel %vm1285, 1, 0
    %v1350 = vsel %vm1286, 1, 0
    %v1351 = vsel %vm1287, 1, 0
    %v1352 = vsel %vm1288, 1, 0
    %v1353 = vsel %vm1289, 1, 0
    %v1354 = vsel %vm1290, 1, 0
    %v1355 = vsel %vm1291, 1, 0
    %v1356 = vsel %vm1292, 1, 0
    %v1357 = vsel %vm1293, 1, 0
    %v1358 = vsel %vm1294, 1, 0
    %v1359 = vsel %vm1295, 1, 0
    %v1360 = vsel %vm1296, 1, 0
    %v1361 = vsel %vm1297, 1, 0
    %v1362 = vsel %vm1298, 1, 0
    %v1363 = vsel %vm1299, 1, 0
    %v1364 = vcvt.s32.f32 %v1300
    %v1365 = vcvt.s32.f32 %v1301
    %v1366 = vcvt.s32.f32 %v1302
    %v1367 = vcvt.s32.f32 %v1303
    %v1368 = vcvt.s32.f32 %v1304
    %v1369 = vcvt.s32.f32 %v1305
    %v1370 = vcvt.s32.f32 %v1306
    %v1371 = vcvt.s32.f32 %v1307
    %v1372 = vcvt.s32.f32 %v1308
    %v1373 = vcvt.s32.f32 %v1309
    %v1374 = vcvt.s32.f32 %v1310
    %v1375 = vcvt.s32.f32 %v1311
    %v1376 = vcvt.s32.f32 %v1312
    %v1377 = vcvt.s32.f32 %v1313
    %v1378 = vcvt.s32.f32 %v1314
    %v1379 = vcvt.s32.f32 %v1315
    %v1380 = vcvt.s32.f32 %v1316
    %v1381 = vcvt.s32.f32 %v1317
    %v1382 = vcvt.s32.f32 %v1318
    %v1383 = vcvt.s32.f32 %v1319
    %v1384 = vcvt.s32.f32 %v1320
    %v1385 = vcvt.s32.f32 %v1321
    %v1386 = vcvt.s32.f32 %v1322
    %v1387 = vcvt.s32.f32 %v1323
    %v1388 = vcvt.s32.f32 %v1324
    %v1389 = vcvt.s32.f32 %v1325
    %v1390 = vcvt.s32.f32 %v1326
    %v1391 = vcvt.s32.f32 %v1327
    %v1392 = vcvt.s32.f32 %v1328
    %v1393 = vcvt.s32.f32 %v1329
    %v1394 = vcvt.s32.f32 %v1330
    %v1395 = vcvt.s32.f32 %v1331
    %v1396 = vcvt.s32.f32 %v1332
    %v1397 = vcvt.s32.f32 %v1333
    %v1398 = vcvt.s32.f32 %v1334
    %v1399 = vcvt.s32.f32 %v1335
    %v1400 = vcvt.s32.f32 %v1336
    %v1401 = vcvt.s32.f32 %v1337
    %v1402 = vcvt.s32.f32 %v1338
    %v1403 = vcvt.s32.f32 %v1339
    %v1404 = vcvt.s32.f32 %v1340
    %v1405 = vcvt.s32.f32 %v1341
    %v1406 = vcvt.s32.f32 %v1342
    %v1407 = vcvt.s32.f32 %v1343
    %v1408 = vcvt.s32.f32 %v1344
    %v1409 = vcvt.s32.f32 %v1345
    %v1410 = vcvt.s32.f32 %v1346
    %v1411 = vcvt.s32.f32 %v1347
    %v1412 = vcvt.s32.f32 %v1348
    %v1413 = vcvt.s32.f32 %v1349
    %v1414 = vcvt.s32.f32 %v1350
    %v1415 = vcvt.s32.f32 %v1351
    %v1416 = vcvt.s32.f32 %v1352
    %v1417 = vcvt.s32.f32 %v1353
    %v1418 = vcvt.s32.f32 %v1354
    %v1419 = vcvt.s32.f32 %v1355
    %v1420 = vcvt.s32.f32 %v1356
    %v1421 = vcvt.s32.f32 %v1357
    %v1422 = vcvt.s32.f32 %v1358
    %v1423 = vcvt.s32.f32 %v1359
    %v1424 = vcvt.s32.f32 %v1360
    %v1425 = vcvt.s32.f32 %v1361
    %v1426 = vcvt.s32.f32 %v1362
    %v1427 = vcvt.s32.f32 %v1363
    %v1428 = vmul.f32 %v978, %v1364
    %v1429 = vmul.f32 %v979, %v1365
    %v1430 = vmul.f32 %v980, %v1366
    %v1431 = vmul.f32 %v981, %v1367
    %v1432 = vmul.f32 %v982, %v1368
    %v1433 = vmul.f32 %v983, %v1369
    %v1434 = vmul.f32 %v984, %v1370
    %v1435 = vmul.f32 %v985, %v1371
    %v1436 = vmul.f32 %v986, %v1372
    %v1437 = vmul.f32 %v987, %v1373
    %v1438 = vmul.f32 %v988, %v1374
    %v1439 = vmul.f32 %v989, %v1375
    %v1440 = vmul.f32 %v990, %v1376
    %v1441 = vmul.f32 %v991, %v1377
    %v1442 = vmul.f32 %v992, %v1378
    %v1443 = vmul.f32 %v993, %v1379
    %v1444 = vmul.f32 %v994, %v1380
    %v1445 = vmul.f32 %v995, %v1381
    %v1446 = vmul.f32 %v996, %v1382
    %v1447 = vmul.f32 %v997, %v1383
    %v1448 = vmul.f32 %v998, %v1384
    %v1449 = vmul.f32 %v999, %v1385
    %v1450 = vmul.f32 %v1000, %v1386
    %v1451 = vmul.f32 %v1001, %v1387
    %v1452 = vmul.f32 %v1002, %v1388
    %v1453 = vmul.f32 %v1003, %v1389
    %v1454 = vmul.f32 %v1004, %v1390
    %v1455 = vmul.f32 %v1005, %v1391
    %v1456 = vmul.f32 %v1006, %v1392
    %v1457 = vmul.f32 %v1007, %v1393
    %v1458 = vmul.f32 %v1008, %v1394
    %v1459 = vmul.f32 %v1009, %v1395
    %v1460 = vmul.f32 %v1010, %v1396
    %v1461 = vmul.f32 %v1011, %v1397
    %v1462 = vmul.f32 %v1012, %v1398
    %v1463 = vmul.f32 %v1013, %v1399
    %v1464 = vmul.f32 %v1014, %v1400
    %v1465 = vmul.f32 %v1015, %v1401
    %v1466 = vmul.f32 %v1016, %v1402
    %v1467 = vmul.f32 %v1017, %v1403
    %v1468 = vmul.f32 %v1018, %v1404
    %v1469 = vmul.f32 %v1019, %v1405
    %v1470 = vmul.f32 %v1020, %v1406
    %v1471 = vmul.f32 %v1021, %v1407
    %v1472 = vmul.f32 %v1022, %v1408
    %v1473 = vmul.f32 %v1023, %v1409
    %v1474 = vmul.f32 %v1024, %v1410
    %v1475 = vmul.f32 %v1025, %v1411
    %v1476 = vmul.f32 %v1026, %v1412
    %v1477 = vmul.f32 %v1027, %v1413
    %v1478 = vmul.f32 %v1028, %v1414
    %v1479 = vmul.f32 %v1029, %v1415
    %v1480 = vmul.f32 %v1030, %v1416
    %v1481 = vmul.f32 %v1031, %v1417
    %v1482 = vmul.f32 %v1032, %v1418
    %v1483 = vmul.f32 %v1033, %v1419
    %v1484 = vmul.f32 %v1034, %v1420
    %v1485 = vmul.f32 %v1035, %v1421
    %v1486 = vmul.f32 %v1036, %v1422
    %v1487 = vmul.f32 %v1037, %v1423
    %v1488 = vmul.f32 %v1038, %v1424
    %v1489 = vmul.f32 %v1039, %v1425
    %v1490 = vmul.f32 %v1040, %v1426
    %v1491 = vmul.f32 %v1041, %v1427
    %v1492 = vsel %vm273, %v1428, 0.0
    %1493 = vadd.xlane.f32.xlu0 %v1492
    %v1494 = vpop.xlane.xlu0 %1493
    %v1495 = vsel %vm273, %v1429, 0.0
    %1496 = vadd.xlane.f32.xlu0 %v1495
    %v1497 = vpop.xlane.xlu0 %1496
    %v1498 = vsel %vm273, %v1430, 0.0
    %1499 = vadd.xlane.f32.xlu0 %v1498
    %v1500 = vpop.xlane.xlu0 %1499
    %v1501 = vsel %vm273, %v1431, 0.0
    %1502 = vadd.xlane.f32.xlu0 %v1501
    %v1503 = vpop.xlane.xlu0 %1502
    %v1504 = vsel %vm273, %v1432, 0.0
    %1505 = vadd.xlane.f32.xlu0 %v1504
    %v1506 = vpop.xlane.xlu0 %1505
    %v1507 = vsel %vm273, %v1433, 0.0
    %1508 = vadd.xlane.f32.xlu0 %v1507
    %v1509 = vpop.xlane.xlu0 %1508
    %v1510 = vsel %vm273, %v1434, 0.0
    %1511 = vadd.xlane.f32.xlu0 %v1510
    %v1512 = vpop.xlane.xlu0 %1511
    %v1513 = vsel %vm273, %v1435, 0.0
    %1514 = vadd.xlane.f32.xlu0 %v1513
    %v1515 = vpop.xlane.xlu0 %1514
    %v1516 = vsel %vm273, %v1436, 0.0
    %1517 = vadd.xlane.f32.xlu0 %v1516
    %v1518 = vpop.xlane.xlu0 %1517
    %v1519 = vsel %vm273, %v1437, 0.0
    %1520 = vadd.xlane.f32.xlu0 %v1519
    %v1521 = vpop.xlane.xlu0 %1520
    %v1522 = vsel %vm273, %v1438, 0.0
    %1523 = vadd.xlane.f32.xlu0 %v1522
    %v1524 = vpop.xlane.xlu0 %1523
    %v1525 = vsel %vm273, %v1439, 0.0
    %1526 = vadd.xlane.f32.xlu0 %v1525
    %v1527 = vpop.xlane.xlu0 %1526
    %v1528 = vsel %vm273, %v1440, 0.0
    %1529 = vadd.xlane.f32.xlu0 %v1528
    %v1530 = vpop.xlane.xlu0 %1529
    %v1531 = vsel %vm273, %v1441, 0.0
    %1532 = vadd.xlane.f32.xlu0 %v1531
    %v1533 = vpop.xlane.xlu0 %1532
    %v1534 = vsel %vm273, %v1442, 0.0
    %1535 = vadd.xlane.f32.xlu0 %v1534
    %v1536 = vpop.xlane.xlu0 %1535
    %v1537 = vsel %vm273, %v1443, 0.0
    %1538 = vadd.xlane.f32.xlu0 %v1537
    %v1539 = vpop.xlane.xlu0 %1538
    %v1540 = vsel %vm273, %v1444, 0.0
    %1541 = vadd.xlane.f32.xlu0 %v1540
    %v1542 = vpop.xlane.xlu0 %1541
    %v1543 = vsel %vm273, %v1445, 0.0
    %1544 = vadd.xlane.f32.xlu0 %v1543
    %v1545 = vpop.xlane.xlu0 %1544
    %v1546 = vsel %vm273, %v1446, 0.0
    %1547 = vadd.xlane.f32.xlu0 %v1546
    %v1548 = vpop.xlane.xlu0 %1547
    %v1549 = vsel %vm273, %v1447, 0.0
    %1550 = vadd.xlane.f32.xlu0 %v1549
    %v1551 = vpop.xlane.xlu0 %1550
    %v1552 = vsel %vm273, %v1448, 0.0
    %1553 = vadd.xlane.f32.xlu0 %v1552
    %v1554 = vpop.xlane.xlu0 %1553
    %v1555 = vsel %vm273, %v1449, 0.0
    %1556 = vadd.xlane.f32.xlu0 %v1555
    %v1557 = vpop.xlane.xlu0 %1556
    %v1558 = vsel %vm273, %v1450, 0.0
    %1559 = vadd.xlane.f32.xlu0 %v1558
    %v1560 = vpop.xlane.xlu0 %1559
    %v1561 = vsel %vm273, %v1451, 0.0
    %1562 = vadd.xlane.f32.xlu0 %v1561
    %v1563 = vpop.xlane.xlu0 %1562
    %v1564 = vsel %vm273, %v1452, 0.0
    %1565 = vadd.xlane.f32.xlu0 %v1564
    %v1566 = vpop.xlane.xlu0 %1565
    %v1567 = vsel %vm273, %v1453, 0.0
    %1568 = vadd.xlane.f32.xlu0 %v1567
    %v1569 = vpop.xlane.xlu0 %1568
    %v1570 = vsel %vm273, %v1454, 0.0
    %1571 = vadd.xlane.f32.xlu0 %v1570
    %v1572 = vpop.xlane.xlu0 %1571
    %v1573 = vsel %vm273, %v1455, 0.0
    %1574 = vadd.xlane.f32.xlu0 %v1573
    %v1575 = vpop.xlane.xlu0 %1574
    %v1576 = vsel %vm273, %v1456, 0.0
    %1577 = vadd.xlane.f32.xlu0 %v1576
    %v1578 = vpop.xlane.xlu0 %1577
    %v1579 = vsel %vm273, %v1457, 0.0
    %1580 = vadd.xlane.f32.xlu0 %v1579
    %v1581 = vpop.xlane.xlu0 %1580
    %v1582 = vsel %vm273, %v1458, 0.0
    %1583 = vadd.xlane.f32.xlu0 %v1582
    %v1584 = vpop.xlane.xlu0 %1583
    %v1585 = vsel %vm273, %v1459, 0.0
    %1586 = vadd.xlane.f32.xlu0 %v1585
    %v1587 = vpop.xlane.xlu0 %1586
    %v1588 = vsel %vm273, %v1460, 0.0
    %1589 = vadd.xlane.f32.xlu0 %v1588
    %v1590 = vpop.xlane.xlu0 %1589
    %v1591 = vsel %vm273, %v1461, 0.0
    %1592 = vadd.xlane.f32.xlu0 %v1591
    %v1593 = vpop.xlane.xlu0 %1592
    %v1594 = vsel %vm273, %v1462, 0.0
    %1595 = vadd.xlane.f32.xlu0 %v1594
    %v1596 = vpop.xlane.xlu0 %1595
    %v1597 = vsel %vm273, %v1463, 0.0
    %1598 = vadd.xlane.f32.xlu0 %v1597
    %v1599 = vpop.xlane.xlu0 %1598
    %v1600 = vsel %vm273, %v1464, 0.0
    %1601 = vadd.xlane.f32.xlu0 %v1600
    %v1602 = vpop.xlane.xlu0 %1601
    %v1603 = vsel %vm273, %v1465, 0.0
    %1604 = vadd.xlane.f32.xlu0 %v1603
    %v1605 = vpop.xlane.xlu0 %1604
    %v1606 = vsel %vm273, %v1466, 0.0
    %1607 = vadd.xlane.f32.xlu0 %v1606
    %v1608 = vpop.xlane.xlu0 %1607
    %v1609 = vsel %vm273, %v1467, 0.0
    %1610 = vadd.xlane.f32.xlu0 %v1609
    %v1611 = vpop.xlane.xlu0 %1610
    %v1612 = vsel %vm273, %v1468, 0.0
    %1613 = vadd.xlane.f32.xlu0 %v1612
    %v1614 = vpop.xlane.xlu0 %1613
    %v1615 = vsel %vm273, %v1469, 0.0
    %1616 = vadd.xlane.f32.xlu0 %v1615
    %v1617 = vpop.xlane.xlu0 %1616
    %v1618 = vsel %vm273, %v1470, 0.0
    %1619 = vadd.xlane.f32.xlu0 %v1618
    %v1620 = vpop.xlane.xlu0 %1619
    %v1621 = vsel %vm273, %v1471, 0.0
    %1622 = vadd.xlane.f32.xlu0 %v1621
    %v1623 = vpop.xlane.xlu0 %1622
    %v1624 = vsel %vm273, %v1472, 0.0
    %1625 = vadd.xlane.f32.xlu0 %v1624
    %v1626 = vpop.xlane.xlu0 %1625
    %v1627 = vsel %vm273, %v1473, 0.0
    %1628 = vadd.xlane.f32.xlu0 %v1627
    %v1629 = vpop.xlane.xlu0 %1628
    %v1630 = vsel %vm273, %v1474, 0.0
    %1631 = vadd.xlane.f32.xlu0 %v1630
    %v1632 = vpop.xlane.xlu0 %1631
    %v1633 = vsel %vm273, %v1475, 0.0
    %1634 = vadd.xlane.f32.xlu0 %v1633
    %v1635 = vpop.xlane.xlu0 %1634
    %v1636 = vsel %vm273, %v1476, 0.0
    %1637 = vadd.xlane.f32.xlu0 %v1636
    %v1638 = vpop.xlane.xlu0 %1637
    %v1639 = vsel %vm273, %v1477, 0.0
    %1640 = vadd.xlane.f32.xlu0 %v1639
    %v1641 = vpop.xlane.xlu0 %1640
    %v1642 = vsel %vm273, %v1478, 0.0
    %1643 = vadd.xlane.f32.xlu0 %v1642
    %v1644 = vpop.xlane.xlu0 %1643
    %v1645 = vsel %vm273, %v1479, 0.0
    %1646 = vadd.xlane.f32.xlu0 %v1645
    %v1647 = vpop.xlane.xlu0 %1646
    %v1648 = vsel %vm273, %v1480, 0.0
    %1649 = vadd.xlane.f32.xlu0 %v1648
    %v1650 = vpop.xlane.xlu0 %1649
    %v1651 = vsel %vm273, %v1481, 0.0
    %1652 = vadd.xlane.f32.xlu0 %v1651
    %v1653 = vpop.xlane.xlu0 %1652
    %v1654 = vsel %vm273, %v1482, 0.0
    %1655 = vadd.xlane.f32.xlu0 %v1654
    %v1656 = vpop.xlane.xlu0 %1655
    %v1657 = vsel %vm273, %v1483, 0.0
    %1658 = vadd.xlane.f32.xlu0 %v1657
    %v1659 = vpop.xlane.xlu0 %1658
    %v1660 = vsel %vm273, %v1484, 0.0
    %1661 = vadd.xlane.f32.xlu0 %v1660
    %v1662 = vpop.xlane.xlu0 %1661
    %v1663 = vsel %vm273, %v1485, 0.0
    %1664 = vadd.xlane.f32.xlu0 %v1663
    %v1665 = vpop.xlane.xlu0 %1664
    %v1666 = vsel %vm273, %v1486, 0.0
    %1667 = vadd.xlane.f32.xlu0 %v1666
    %v1668 = vpop.xlane.xlu0 %1667
    %v1669 = vsel %vm273, %v1487, 0.0
    %1670 = vadd.xlane.f32.xlu0 %v1669
    %v1671 = vpop.xlane.xlu0 %1670
    %v1672 = vsel %vm273, %v1488, 0.0
    %1673 = vadd.xlane.f32.xlu0 %v1672
    %v1674 = vpop.xlane.xlu0 %1673
    %v1675 = vsel %vm273, %v1489, 0.0
    %1676 = vadd.xlane.f32.xlu0 %v1675
    %v1677 = vpop.xlane.xlu0 %1676
    %v1678 = vsel %vm273, %v1490, 0.0
    %1679 = vadd.xlane.f32.xlu0 %v1678
    %v1680 = vpop.xlane.xlu0 %1679
    %v1681 = vsel %vm273, %v1491, 0.0
    %1682 = vadd.xlane.f32.xlu0 %v1681
    %v1683 = vpop.xlane.xlu0 %1682
    %v1684 = vsub.f32 0.0, %v1494
    %v1685 = vsub.f32 0.0, %v1497
    %v1686 = vsub.f32 0.0, %v1500
    %v1687 = vsub.f32 0.0, %v1503
    %v1688 = vsub.f32 0.0, %v1506
    %v1689 = vsub.f32 0.0, %v1509
    %v1690 = vsub.f32 0.0, %v1512
    %v1691 = vsub.f32 0.0, %v1515
    %v1692 = vsub.f32 0.0, %v1518
    %v1693 = vsub.f32 0.0, %v1521
    %v1694 = vsub.f32 0.0, %v1524
    %v1695 = vsub.f32 0.0, %v1527
    %v1696 = vsub.f32 0.0, %v1530
    %v1697 = vsub.f32 0.0, %v1533
    %v1698 = vsub.f32 0.0, %v1536
    %v1699 = vsub.f32 0.0, %v1539
    %v1700 = vsub.f32 0.0, %v1542
    %v1701 = vsub.f32 0.0, %v1545
    %v1702 = vsub.f32 0.0, %v1548
    %v1703 = vsub.f32 0.0, %v1551
    %v1704 = vsub.f32 0.0, %v1554
    %v1705 = vsub.f32 0.0, %v1557
    %v1706 = vsub.f32 0.0, %v1560
    %v1707 = vsub.f32 0.0, %v1563
    %v1708 = vsub.f32 0.0, %v1566
    %v1709 = vsub.f32 0.0, %v1569
    %v1710 = vsub.f32 0.0, %v1572
    %v1711 = vsub.f32 0.0, %v1575
    %v1712 = vsub.f32 0.0, %v1578
    %v1713 = vsub.f32 0.0, %v1581
    %v1714 = vsub.f32 0.0, %v1584
    %v1715 = vsub.f32 0.0, %v1587
    %v1716 = vsub.f32 0.0, %v1590
    %v1717 = vsub.f32 0.0, %v1593
    %v1718 = vsub.f32 0.0, %v1596
    %v1719 = vsub.f32 0.0, %v1599
    %v1720 = vsub.f32 0.0, %v1602
    %v1721 = vsub.f32 0.0, %v1605
    %v1722 = vsub.f32 0.0, %v1608
    %v1723 = vsub.f32 0.0, %v1611
    %v1724 = vsub.f32 0.0, %v1614
    %v1725 = vsub.f32 0.0, %v1617
    %v1726 = vsub.f32 0.0, %v1620
    %v1727 = vsub.f32 0.0, %v1623
    %v1728 = vsub.f32 0.0, %v1626
    %v1729 = vsub.f32 0.0, %v1629
    %v1730 = vsub.f32 0.0, %v1632
    %v1731 = vsub.f32 0.0, %v1635
    %v1732 = vsub.f32 0.0, %v1638
    %v1733 = vsub.f32 0.0, %v1641
    %v1734 = vsub.f32 0.0, %v1644
    %v1735 = vsub.f32 0.0, %v1647
    %v1736 = vsub.f32 0.0, %v1650
    %v1737 = vsub.f32 0.0, %v1653
    %v1738 = vsub.f32 0.0, %v1656
    %v1739 = vsub.f32 0.0, %v1659
    %v1740 = vsub.f32 0.0, %v1662
    %v1741 = vsub.f32 0.0, %v1665
    %v1742 = vsub.f32 0.0, %v1668
    %v1743 = vsub.f32 0.0, %v1671
    %v1744 = vsub.f32 0.0, %v1674
    %v1745 = vsub.f32 0.0, %v1677
    %v1746 = vsub.f32 0.0, %v1680
    %v1747 = vsub.f32 0.0, %v1683
    %vm1748 = vcmp.ne.s32.totalorder %v209, 4294967196
    %vm1749 = vcmp.ne.s32.totalorder %v210, 4294967196
    %vm1750 = vcmp.ne.s32.totalorder %v211, 4294967196
    %vm1751 = vcmp.ne.s32.totalorder %v212, 4294967196
    %vm1752 = vcmp.ne.s32.totalorder %v213, 4294967196
    %vm1753 = vcmp.ne.s32.totalorder %v214, 4294967196
    %vm1754 = vcmp.ne.s32.totalorder %v215, 4294967196
    %vm1755 = vcmp.ne.s32.totalorder %v216, 4294967196
    %vm1756 = vcmp.ne.s32.totalorder %v217, 4294967196
    %vm1757 = vcmp.ne.s32.totalorder %v218, 4294967196
    %vm1758 = vcmp.ne.s32.totalorder %v219, 4294967196
    %vm1759 = vcmp.ne.s32.totalorder %v220, 4294967196
    %vm1760 = vcmp.ne.s32.totalorder %v221, 4294967196
    %vm1761 = vcmp.ne.s32.totalorder %v222, 4294967196
    %vm1762 = vcmp.ne.s32.totalorder %v223, 4294967196
    %vm1763 = vcmp.ne.s32.totalorder %v224, 4294967196
    %vm1764 = vcmp.ne.s32.totalorder %v225, 4294967196
    %vm1765 = vcmp.ne.s32.totalorder %v226, 4294967196
    %vm1766 = vcmp.ne.s32.totalorder %v227, 4294967196
    %vm1767 = vcmp.ne.s32.totalorder %v228, 4294967196
    %vm1768 = vcmp.ne.s32.totalorder %v229, 4294967196
    %vm1769 = vcmp.ne.s32.totalorder %v230, 4294967196
    %vm1770 = vcmp.ne.s32.totalorder %v231, 4294967196
    %vm1771 = vcmp.ne.s32.totalorder %v232, 4294967196
    %vm1772 = vcmp.ne.s32.totalorder %v233, 4294967196
    %vm1773 = vcmp.ne.s32.totalorder %v234, 4294967196
    %vm1774 = vcmp.ne.s32.totalorder %v235, 4294967196
    %vm1775 = vcmp.ne.s32.totalorder %v236, 4294967196
    %vm1776 = vcmp.ne.s32.totalorder %v237, 4294967196
    %vm1777 = vcmp.ne.s32.totalorder %v238, 4294967196
    %vm1778 = vcmp.ne.s32.totalorder %v239, 4294967196
    %vm1779 = vcmp.ne.s32.totalorder %v240, 4294967196
    %vm1780 = vcmp.ne.s32.totalorder %v241, 4294967196
    %vm1781 = vcmp.ne.s32.totalorder %v242, 4294967196
    %vm1782 = vcmp.ne.s32.totalorder %v243, 4294967196
    %vm1783 = vcmp.ne.s32.totalorder %v244, 4294967196
    %vm1784 = vcmp.ne.s32.totalorder %v245, 4294967196
    %vm1785 = vcmp.ne.s32.totalorder %v246, 4294967196
    %vm1786 = vcmp.ne.s32.totalorder %v247, 4294967196
    %vm1787 = vcmp.ne.s32.totalorder %v248, 4294967196
    %vm1788 = vcmp.ne.s32.totalorder %v249, 4294967196
    %vm1789 = vcmp.ne.s32.totalorder %v250, 4294967196
    %vm1790 = vcmp.ne.s32.totalorder %v251, 4294967196
    %vm1791 = vcmp.ne.s32.totalorder %v252, 4294967196
    %vm1792 = vcmp.ne.s32.totalorder %v253, 4294967196
    %vm1793 = vcmp.ne.s32.totalorder %v254, 4294967196
    %vm1794 = vcmp.ne.s32.totalorder %v255, 4294967196
    %vm1795 = vcmp.ne.s32.totalorder %v256, 4294967196
    %vm1796 = vcmp.ne.s32.totalorder %v257, 4294967196
    %vm1797 = vcmp.ne.s32.totalorder %v258, 4294967196
    %vm1798 = vcmp.ne.s32.totalorder %v259, 4294967196
    %vm1799 = vcmp.ne.s32.totalorder %v260, 4294967196
    %vm1800 = vcmp.ne.s32.totalorder %v261, 4294967196
    %vm1801 = vcmp.ne.s32.totalorder %v262, 4294967196
    %vm1802 = vcmp.ne.s32.totalorder %v263, 4294967196
    %vm1803 = vcmp.ne.s32.totalorder %v264, 4294967196
    %vm1804 = vcmp.ne.s32.totalorder %v265, 4294967196
    %vm1805 = vcmp.ne.s32.totalorder %v266, 4294967196
    %vm1806 = vcmp.ne.s32.totalorder %v267, 4294967196
    %vm1807 = vcmp.ne.s32.totalorder %v268, 4294967196
    %vm1808 = vcmp.ne.s32.totalorder %v269, 4294967196
    %vm1809 = vcmp.ne.s32.totalorder %v270, 4294967196
    %vm1810 = vcmp.ne.s32.totalorder %v271, 4294967196
    %vm1811 = vcmp.ne.s32.totalorder %v272, 4294967196
    %v1812 = vsel %vm1748, 1, 0
    %v1813 = vsel %vm1749, 1, 0
    %v1814 = vsel %vm1750, 1, 0
    %v1815 = vsel %vm1751, 1, 0
    %v1816 = vsel %vm1752, 1, 0
    %v1817 = vsel %vm1753, 1, 0
    %v1818 = vsel %vm1754, 1, 0
    %v1819 = vsel %vm1755, 1, 0
    %v1820 = vsel %vm1756, 1, 0
    %v1821 = vsel %vm1757, 1, 0
    %v1822 = vsel %vm1758, 1, 0
    %v1823 = vsel %vm1759, 1, 0
    %v1824 = vsel %vm1760, 1, 0
    %v1825 = vsel %vm1761, 1, 0
    %v1826 = vsel %vm1762, 1, 0
    %v1827 = vsel %vm1763, 1, 0
    %v1828 = vsel %vm1764, 1, 0
    %v1829 = vsel %vm1765, 1, 0
    %v1830 = vsel %vm1766, 1, 0
    %v1831 = vsel %vm1767, 1, 0
    %v1832 = vsel %vm1768, 1, 0
    %v1833 = vsel %vm1769, 1, 0
    %v1834 = vsel %vm1770, 1, 0
    %v1835 = vsel %vm1771, 1, 0
    %v1836 = vsel %vm1772, 1, 0
    %v1837 = vsel %vm1773, 1, 0
    %v1838 = vsel %vm1774, 1, 0
    %v1839 = vsel %vm1775, 1, 0
    %v1840 = vsel %vm1776, 1, 0
    %v1841 = vsel %vm1777, 1, 0
    %v1842 = vsel %vm1778, 1, 0
    %v1843 = vsel %vm1779, 1, 0
    %v1844 = vsel %vm1780, 1, 0
    %v1845 = vsel %vm1781, 1, 0
    %v1846 = vsel %vm1782, 1, 0
    %v1847 = vsel %vm1783, 1, 0
    %v1848 = vsel %vm1784, 1, 0
    %v1849 = vsel %vm1785, 1, 0
    %v1850 = vsel %vm1786, 1, 0
    %v1851 = vsel %vm1787, 1, 0
    %v1852 = vsel %vm1788, 1, 0
    %v1853 = vsel %vm1789, 1, 0
    %v1854 = vsel %vm1790, 1, 0
    %v1855 = vsel %vm1791, 1, 0
    %v1856 = vsel %vm1792, 1, 0
    %v1857 = vsel %vm1793, 1, 0
    %v1858 = vsel %vm1794, 1, 0
    %v1859 = vsel %vm1795, 1, 0
    %v1860 = vsel %vm1796, 1, 0
    %v1861 = vsel %vm1797, 1, 0
    %v1862 = vsel %vm1798, 1, 0
    %v1863 = vsel %vm1799, 1, 0
    %v1864 = vsel %vm1800, 1, 0
    %v1865 = vsel %vm1801, 1, 0
    %v1866 = vsel %vm1802, 1, 0
    %v1867 = vsel %vm1803, 1, 0
    %v1868 = vsel %vm1804, 1, 0
    %v1869 = vsel %vm1805, 1, 0
    %v1870 = vsel %vm1806, 1, 0
    %v1871 = vsel %vm1807, 1, 0
    %v1872 = vsel %vm1808, 1, 0
    %v1873 = vsel %vm1809, 1, 0
    %v1874 = vsel %vm1810, 1, 0
    %v1875 = vsel %vm1811, 1, 0
    %v1876 = vcvt.s32.f32 %v1812
    %v1877 = vcvt.s32.f32 %v1813
    %v1878 = vcvt.s32.f32 %v1814
    %v1879 = vcvt.s32.f32 %v1815
    %v1880 = vcvt.s32.f32 %v1816
    %v1881 = vcvt.s32.f32 %v1817
    %v1882 = vcvt.s32.f32 %v1818
    %v1883 = vcvt.s32.f32 %v1819
    %v1884 = vcvt.s32.f32 %v1820
    %v1885 = vcvt.s32.f32 %v1821
    %v1886 = vcvt.s32.f32 %v1822
    %v1887 = vcvt.s32.f32 %v1823
    %v1888 = vcvt.s32.f32 %v1824
    %v1889 = vcvt.s32.f32 %v1825
    %v1890 = vcvt.s32.f32 %v1826
    %v1891 = vcvt.s32.f32 %v1827
    %v1892 = vcvt.s32.f32 %v1828
    %v1893 = vcvt.s32.f32 %v1829
    %v1894 = vcvt.s32.f32 %v1830
    %v1895 = vcvt.s32.f32 %v1831
    %v1896 = vcvt.s32.f32 %v1832
    %v1897 = vcvt.s32.f32 %v1833
    %v1898 = vcvt.s32.f32 %v1834
    %v1899 = vcvt.s32.f32 %v1835
    %v1900 = vcvt.s32.f32 %v1836
    %v1901 = vcvt.s32.f32 %v1837
    %v1902 = vcvt.s32.f32 %v1838
    %v1903 = vcvt.s32.f32 %v1839
    %v1904 = vcvt.s32.f32 %v1840
    %v1905 = vcvt.s32.f32 %v1841
    %v1906 = vcvt.s32.f32 %v1842
    %v1907 = vcvt.s32.f32 %v1843
    %v1908 = vcvt.s32.f32 %v1844
    %v1909 = vcvt.s32.f32 %v1845
    %v1910 = vcvt.s32.f32 %v1846
    %v1911 = vcvt.s32.f32 %v1847
    %v1912 = vcvt.s32.f32 %v1848
    %v1913 = vcvt.s32.f32 %v1849
    %v1914 = vcvt.s32.f32 %v1850
    %v1915 = vcvt.s32.f32 %v1851
    %v1916 = vcvt.s32.f32 %v1852
    %v1917 = vcvt.s32.f32 %v1853
    %v1918 = vcvt.s32.f32 %v1854
    %v1919 = vcvt.s32.f32 %v1855
    %v1920 = vcvt.s32.f32 %v1856
    %v1921 = vcvt.s32.f32 %v1857
    %v1922 = vcvt.s32.f32 %v1858
    %v1923 = vcvt.s32.f32 %v1859
    %v1924 = vcvt.s32.f32 %v1860
    %v1925 = vcvt.s32.f32 %v1861
    %v1926 = vcvt.s32.f32 %v1862
    %v1927 = vcvt.s32.f32 %v1863
    %v1928 = vcvt.s32.f32 %v1864
    %v1929 = vcvt.s32.f32 %v1865
    %v1930 = vcvt.s32.f32 %v1866
    %v1931 = vcvt.s32.f32 %v1867
    %v1932 = vcvt.s32.f32 %v1868
    %v1933 = vcvt.s32.f32 %v1869
    %v1934 = vcvt.s32.f32 %v1870
    %v1935 = vcvt.s32.f32 %v1871
    %v1936 = vcvt.s32.f32 %v1872
    %v1937 = vcvt.s32.f32 %v1873
    %v1938 = vcvt.s32.f32 %v1874
    %v1939 = vcvt.s32.f32 %v1875
    %v1940 = vmul.f32 %v1876, %v1684
    %v1941 = vmul.f32 %v1877, %v1685
    %v1942 = vmul.f32 %v1878, %v1686
    %v1943 = vmul.f32 %v1879, %v1687
    %v1944 = vmul.f32 %v1880, %v1688
    %v1945 = vmul.f32 %v1881, %v1689
    %v1946 = vmul.f32 %v1882, %v1690
    %v1947 = vmul.f32 %v1883, %v1691
    %v1948 = vmul.f32 %v1884, %v1692
    %v1949 = vmul.f32 %v1885, %v1693
    %v1950 = vmul.f32 %v1886, %v1694
    %v1951 = vmul.f32 %v1887, %v1695
    %v1952 = vmul.f32 %v1888, %v1696
    %v1953 = vmul.f32 %v1889, %v1697
    %v1954 = vmul.f32 %v1890, %v1698
    %v1955 = vmul.f32 %v1891, %v1699
    %v1956 = vmul.f32 %v1892, %v1700
    %v1957 = vmul.f32 %v1893, %v1701
    %v1958 = vmul.f32 %v1894, %v1702
    %v1959 = vmul.f32 %v1895, %v1703
    %v1960 = vmul.f32 %v1896, %v1704
    %v1961 = vmul.f32 %v1897, %v1705
    %v1962 = vmul.f32 %v1898, %v1706
    %v1963 = vmul.f32 %v1899, %v1707
    %v1964 = vmul.f32 %v1900, %v1708
    %v1965 = vmul.f32 %v1901, %v1709
    %v1966 = vmul.f32 %v1902, %v1710
    %v1967 = vmul.f32 %v1903, %v1711
    %v1968 = vmul.f32 %v1904, %v1712
    %v1969 = vmul.f32 %v1905, %v1713
    %v1970 = vmul.f32 %v1906, %v1714
    %v1971 = vmul.f32 %v1907, %v1715
    %v1972 = vmul.f32 %v1908, %v1716
    %v1973 = vmul.f32 %v1909, %v1717
    %v1974 = vmul.f32 %v1910, %v1718
    %v1975 = vmul.f32 %v1911, %v1719
    %v1976 = vmul.f32 %v1912, %v1720
    %v1977 = vmul.f32 %v1913, %v1721
    %v1978 = vmul.f32 %v1914, %v1722
    %v1979 = vmul.f32 %v1915, %v1723
    %v1980 = vmul.f32 %v1916, %v1724
    %v1981 = vmul.f32 %v1917, %v1725
    %v1982 = vmul.f32 %v1918, %v1726
    %v1983 = vmul.f32 %v1919, %v1727
    %v1984 = vmul.f32 %v1920, %v1728
    %v1985 = vmul.f32 %v1921, %v1729
    %v1986 = vmul.f32 %v1922, %v1730
    %v1987 = vmul.f32 %v1923, %v1731
    %v1988 = vmul.f32 %v1924, %v1732
    %v1989 = vmul.f32 %v1925, %v1733
    %v1990 = vmul.f32 %v1926, %v1734
    %v1991 = vmul.f32 %v1927, %v1735
    %v1992 = vmul.f32 %v1928, %v1736
    %v1993 = vmul.f32 %v1929, %v1737
    %v1994 = vmul.f32 %v1930, %v1738
    %v1995 = vmul.f32 %v1931, %v1739
    %v1996 = vmul.f32 %v1932, %v1740
    %v1997 = vmul.f32 %v1933, %v1741
    %v1998 = vmul.f32 %v1934, %v1742
    %v1999 = vmul.f32 %v1935, %v1743
    %v2000 = vmul.f32 %v1936, %v1744
    %v2001 = vmul.f32 %v1937, %v1745
    %v2002 = vmul.f32 %v1938, %v1746
    %v2003 = vmul.f32 %v1939, %v1747
    %v2004 = vld [vmem:[#allocation2] sm:$0xff]
    %v2005 = vld [vmem:[#allocation2 + $0x8] sm:$0xff]
    %v2006 = vld [vmem:[#allocation2 + $0x10] sm:$0xff]
    %v2007 = vld [vmem:[#allocation2 + $0x18] sm:$0xff]
    %v2008 = vld [vmem:[#allocation2 + $0x20] sm:$0xff]
    %v2009 = vld [vmem:[#allocation2 + $0x28] sm:$0xff]
    %v2010 = vld [vmem:[#allocation2 + $0x30] sm:$0xff]
    %v2011 = vld [vmem:[#allocation2 + $0x38] sm:$0xff]
    %v2012 = vld [vmem:[#allocation2 + $0x40] sm:$0xff]
    %v2013 = vld [vmem:[#allocation2 + $0x48] sm:$0xff]
    %v2014 = vld [vmem:[#allocation2 + $0x50] sm:$0xff]
    %v2015 = vld [vmem:[#allocation2 + $0x58] sm:$0xff]
    %v2016 = vld [vmem:[#allocation2 + $0x60] sm:$0xff]
    %v2017 = vld [vmem:[#allocation2 + $0x68] sm:$0xff]
    %v2018 = vld [vmem:[#allocation2 + $0x70] sm:$0xff]
    %v2019 = vld [vmem:[#allocation2 + $0x78] sm:$0xff]
    %v2020 = vld [vmem:[#allocation2 + $0x80] sm:$0xff]
    %v2021 = vld [vmem:[#allocation2 + $0x88] sm:$0xff]
    %v2022 = vld [vmem:[#allocation2 + $0x90] sm:$0xff]
    %v2023 = vld [vmem:[#allocation2 + $0x98] sm:$0xff]
    %v2024 = vld [vmem:[#allocation2 + $0xa0] sm:$0xff]
    %v2025 = vld [vmem:[#allocation2 + $0xa8] sm:$0xff]
    %v2026 = vld [vmem:[#allocation2 + $0xb0] sm:$0xff]
    %v2027 = vld [vmem:[#allocation2 + $0xb8] sm:$0xff]
    %v2028 = vld [vmem:[#allocation2 + $0xc0] sm:$0xff]
    %v2029 = vld [vmem:[#allocation2 + $0xc8] sm:$0xff]
    %v2030 = vld [vmem:[#allocation2 + $0xd0] sm:$0xff]
    %v2031 = vld [vmem:[#allocation2 + $0xd8] sm:$0xff]
    %v2032 = vld [vmem:[#allocation2 + $0xe0] sm:$0xff]
    %v2033 = vld [vmem:[#allocation2 + $0xe8] sm:$0xff]
    %v2034 = vld [vmem:[#allocation2 + $0xf0] sm:$0xff]
    %v2035 = vld [vmem:[#allocation2 + $0xf8] sm:$0xff]
    %v2036 = vld [vmem:[#allocation2 + $0x100] sm:$0xff]
    %v2037 = vld [vmem:[#allocation2 + $0x108] sm:$0xff]
    %v2038 = vld [vmem:[#allocation2 + $0x110] sm:$0xff]
    %v2039 = vld [vmem:[#allocation2 + $0x118] sm:$0xff]
    %v2040 = vld [vmem:[#allocation2 + $0x120] sm:$0xff]
    %v2041 = vld [vmem:[#allocation2 + $0x128] sm:$0xff]
    %v2042 = vld [vmem:[#allocation2 + $0x130] sm:$0xff]
    %v2043 = vld [vmem:[#allocation2 + $0x138] sm:$0xff]
    %v2044 = vld [vmem:[#allocation2 + $0x140] sm:$0xff]
    %v2045 = vld [vmem:[#allocation2 + $0x148] sm:$0xff]
    %v2046 = vld [vmem:[#allocation2 + $0x150] sm:$0xff]
    %v2047 = vld [vmem:[#allocation2 + $0x158] sm:$0xff]
    %v2048 = vld [vmem:[#allocation2 + $0x160] sm:$0xff]
    %v2049 = vld [vmem:[#allocation2 + $0x168] sm:$0xff]
    %v2050 = vld [vmem:[#allocation2 + $0x170] sm:$0xff]
    %v2051 = vld [vmem:[#allocation2 + $0x178] sm:$0xff]
    %v2052 = vld [vmem:[#allocation2 + $0x180] sm:$0xff]
    %v2053 = vld [vmem:[#allocation2 + $0x188] sm:$0xff]
    %v2054 = vld [vmem:[#allocation2 + $0x190] sm:$0xff]
    %v2055 = vld [vmem:[#allocation2 + $0x198] sm:$0xff]
    %v2056 = vld [vmem:[#allocation2 + $0x1a0] sm:$0xff]
    %v2057 = vld [vmem:[#allocation2 + $0x1a8] sm:$0xff]
    %v2058 = vld [vmem:[#allocation2 + $0x1b0] sm:$0xff]
    %v2059 = vld [vmem:[#allocation2 + $0x1b8] sm:$0xff]
    %v2060 = vld [vmem:[#allocation2 + $0x1c0] sm:$0xff]
    %v2061 = vld [vmem:[#allocation2 + $0x1c8] sm:$0xff]
    %v2062 = vld [vmem:[#allocation2 + $0x1d0] sm:$0xff]
    %v2063 = vld [vmem:[#allocation2 + $0x1d8] sm:$0xff]
    %v2064 = vld [vmem:[#allocation2 + $0x1e0] sm:$0xff]
    %v2065 = vld [vmem:[#allocation2 + $0x1e8] sm:$0xff]
    %v2066 = vld [vmem:[#allocation2 + $0x1f0] sm:$0xff]
    %v2067 = vld [vmem:[#allocation2 + $0x1f8] sm:$0xff]
    %v2068 = vadd.f32 %v2004, %v1940
    %v2069 = vadd.f32 %v2005, %v1941
    %v2070 = vadd.f32 %v2006, %v1942
    %v2071 = vadd.f32 %v2007, %v1943
    %v2072 = vadd.f32 %v2008, %v1944
    %v2073 = vadd.f32 %v2009, %v1945
    %v2074 = vadd.f32 %v2010, %v1946
    %v2075 = vadd.f32 %v2011, %v1947
    %v2076 = vadd.f32 %v2012, %v1948
    %v2077 = vadd.f32 %v2013, %v1949
    %v2078 = vadd.f32 %v2014, %v1950
    %v2079 = vadd.f32 %v2015, %v1951
    %v2080 = vadd.f32 %v2016, %v1952
    %v2081 = vadd.f32 %v2017, %v1953
    %v2082 = vadd.f32 %v2018, %v1954
    %v2083 = vadd.f32 %v2019, %v1955
    %v2084 = vadd.f32 %v2020, %v1956
    %v2085 = vadd.f32 %v2021, %v1957
    %v2086 = vadd.f32 %v2022, %v1958
    %v2087 = vadd.f32 %v2023, %v1959
    %v2088 = vadd.f32 %v2024, %v1960
    %v2089 = vadd.f32 %v2025, %v1961
    %v2090 = vadd.f32 %v2026, %v1962
    %v2091 = vadd.f32 %v2027, %v1963
    %v2092 = vadd.f32 %v2028, %v1964
    %v2093 = vadd.f32 %v2029, %v1965
    %v2094 = vadd.f32 %v2030, %v1966
    %v2095 = vadd.f32 %v2031, %v1967
    %v2096 = vadd.f32 %v2032, %v1968
    %v2097 = vadd.f32 %v2033, %v1969
    %v2098 = vadd.f32 %v2034, %v1970
    %v2099 = vadd.f32 %v2035, %v1971
    %v2100 = vadd.f32 %v2036, %v1972
    %v2101 = vadd.f32 %v2037, %v1973
    %v2102 = vadd.f32 %v2038, %v1974
    %v2103 = vadd.f32 %v2039, %v1975
    %v2104 = vadd.f32 %v2040, %v1976
    %v2105 = vadd.f32 %v2041, %v1977
    %v2106 = vadd.f32 %v2042, %v1978
    %v2107 = vadd.f32 %v2043, %v1979
    %v2108 = vadd.f32 %v2044, %v1980
    %v2109 = vadd.f32 %v2045, %v1981
    %v2110 = vadd.f32 %v2046, %v1982
    %v2111 = vadd.f32 %v2047, %v1983
    %v2112 = vadd.f32 %v2048, %v1984
    %v2113 = vadd.f32 %v2049, %v1985
    %v2114 = vadd.f32 %v2050, %v1986
    %v2115 = vadd.f32 %v2051, %v1987
    %v2116 = vadd.f32 %v2052, %v1988
    %v2117 = vadd.f32 %v2053, %v1989
    %v2118 = vadd.f32 %v2054, %v1990
    %v2119 = vadd.f32 %v2055, %v1991
    %v2120 = vadd.f32 %v2056, %v1992
    %v2121 = vadd.f32 %v2057, %v1993
    %v2122 = vadd.f32 %v2058, %v1994
    %v2123 = vadd.f32 %v2059, %v1995
    %v2124 = vadd.f32 %v2060, %v1996
    %v2125 = vadd.f32 %v2061, %v1997
    %v2126 = vadd.f32 %v2062, %v1998
    %v2127 = vadd.f32 %v2063, %v1999
    %v2128 = vadd.f32 %v2064, %v2000
    %v2129 = vadd.f32 %v2065, %v2001
    %v2130 = vadd.f32 %v2066, %v2002
    %v2131 = vadd.f32 %v2067, %v2003
    %vm2132 = vcmask 7168
    %2133 = vst.msk [vmem:[#allocation2] sm:$0xff] %vm2132, %v2068
    %2134 = vst.msk [vmem:[#allocation2 + $0x8] sm:$0xff] %vm2132, %v2069
    %2135 = vst.msk [vmem:[#allocation2 + $0x10] sm:$0xff] %vm2132, %v2070
    %2136 = vst.msk [vmem:[#allocation2 + $0x18] sm:$0xff] %vm2132, %v2071
    %2137 = vst.msk [vmem:[#allocation2 + $0x20] sm:$0xff] %vm2132, %v2072
    %2138 = vst.msk [vmem:[#allocation2 + $0x28] sm:$0xff] %vm2132, %v2073
    %2139 = vst.msk [vmem:[#allocation2 + $0x30] sm:$0xff] %vm2132, %v2074
    %2140 = vst.msk [vmem:[#allocation2 + $0x38] sm:$0xff] %vm2132, %v2075
    %2141 = vst.msk [vmem:[#allocation2 + $0x40] sm:$0xff] %vm2132, %v2076
    %2142 = vst.msk [vmem:[#allocation2 + $0x48] sm:$0xff] %vm2132, %v2077
    %2143 = vst.msk [vmem:[#allocation2 + $0x50] sm:$0xff] %vm2132, %v2078
    %2144 = vst.msk [vmem:[#allocation2 + $0x58] sm:$0xff] %vm2132, %v2079
    %2145 = vst.msk [vmem:[#allocation2 + $0x60] sm:$0xff] %vm2132, %v2080
    %2146 = vst.msk [vmem:[#allocation2 + $0x68] sm:$0xff] %vm2132, %v2081
    %2147 = vst.msk [vmem:[#allocation2 + $0x70] sm:$0xff] %vm2132, %v2082
    %2148 = vst.msk [vmem:[#allocation2 + $0x78] sm:$0xff] %vm2132, %v2083
    %2149 = vst.msk [vmem:[#allocation2 + $0x80] sm:$0xff] %vm2132, %v2084
    %2150 = vst.msk [vmem:[#allocation2 + $0x88] sm:$0xff] %vm2132, %v2085
    %2151 = vst.msk [vmem:[#allocation2 + $0x90] sm:$0xff] %vm2132, %v2086
    %2152 = vst.msk [vmem:[#allocation2 + $0x98] sm:$0xff] %vm2132, %v2087
    %2153 = vst.msk [vmem:[#allocation2 + $0xa0] sm:$0xff] %vm2132, %v2088
    %2154 = vst.msk [vmem:[#allocation2 + $0xa8] sm:$0xff] %vm2132, %v2089
    %2155 = vst.msk [vmem:[#allocation2 + $0xb0] sm:$0xff] %vm2132, %v2090
    %2156 = vst.msk [vmem:[#allocation2 + $0xb8] sm:$0xff] %vm2132, %v2091
    %2157 = vst.msk [vmem:[#allocation2 + $0xc0] sm:$0xff] %vm2132, %v2092
    %2158 = vst.msk [vmem:[#allocation2 + $0xc8] sm:$0xff] %vm2132, %v2093
    %2159 = vst.msk [vmem:[#allocation2 + $0xd0] sm:$0xff] %vm2132, %v2094
    %2160 = vst.msk [vmem:[#allocation2 + $0xd8] sm:$0xff] %vm2132, %v2095
    %2161 = vst.msk [vmem:[#allocation2 + $0xe0] sm:$0xff] %vm2132, %v2096
    %2162 = vst.msk [vmem:[#allocation2 + $0xe8] sm:$0xff] %vm2132, %v2097
    %2163 = vst.msk [vmem:[#allocation2 + $0xf0] sm:$0xff] %vm2132, %v2098
    %2164 = vst.msk [vmem:[#allocation2 + $0xf8] sm:$0xff] %vm2132, %v2099
    %2165 = vst.msk [vmem:[#allocation2 + $0x100] sm:$0xff] %vm2132, %v2100
    %2166 = vst.msk [vmem:[#allocation2 + $0x108] sm:$0xff] %vm2132, %v2101
    %2167 = vst.msk [vmem:[#allocation2 + $0x110] sm:$0xff] %vm2132, %v2102
    %2168 = vst.msk [vmem:[#allocation2 + $0x118] sm:$0xff] %vm2132, %v2103
    %2169 = vst.msk [vmem:[#allocation2 + $0x120] sm:$0xff] %vm2132, %v2104
    %2170 = vst.msk [vmem:[#allocation2 + $0x128] sm:$0xff] %vm2132, %v2105
    %2171 = vst.msk [vmem:[#allocation2 + $0x130] sm:$0xff] %vm2132, %v2106
    %2172 = vst.msk [vmem:[#allocation2 + $0x138] sm:$0xff] %vm2132, %v2107
    %2173 = vst.msk [vmem:[#allocation2 + $0x140] sm:$0xff] %vm2132, %v2108
    %2174 = vst.msk [vmem:[#allocation2 + $0x148] sm:$0xff] %vm2132, %v2109
    %2175 = vst.msk [vmem:[#allocation2 + $0x150] sm:$0xff] %vm2132, %v2110
    %2176 = vst.msk [vmem:[#allocation2 + $0x158] sm:$0xff] %vm2132, %v2111
    %2177 = vst.msk [vmem:[#allocation2 + $0x160] sm:$0xff] %vm2132, %v2112
    %2178 = vst.msk [vmem:[#allocation2 + $0x168] sm:$0xff] %vm2132, %v2113
    %2179 = vst.msk [vmem:[#allocation2 + $0x170] sm:$0xff] %vm2132, %v2114
    %2180 = vst.msk [vmem:[#allocation2 + $0x178] sm:$0xff] %vm2132, %v2115
    %2181 = vst.msk [vmem:[#allocation2 + $0x180] sm:$0xff] %vm2132, %v2116
    %2182 = vst.msk [vmem:[#allocation2 + $0x188] sm:$0xff] %vm2132, %v2117
    %2183 = vst.msk [vmem:[#allocation2 + $0x190] sm:$0xff] %vm2132, %v2118
    %2184 = vst.msk [vmem:[#allocation2 + $0x198] sm:$0xff] %vm2132, %v2119
    %2185 = vst.msk [vmem:[#allocation2 + $0x1a0] sm:$0xff] %vm2132, %v2120
    %2186 = vst.msk [vmem:[#allocation2 + $0x1a8] sm:$0xff] %vm2132, %v2121
    %2187 = vst.msk [vmem:[#allocation2 + $0x1b0] sm:$0xff] %vm2132, %v2122
    %2188 = vst.msk [vmem:[#allocation2 + $0x1b8] sm:$0xff] %vm2132, %v2123
    %2189 = vst.msk [vmem:[#allocation2 + $0x1c0] sm:$0xff] %vm2132, %v2124
    %2190 = vst.msk [vmem:[#allocation2 + $0x1c8] sm:$0xff] %vm2132, %v2125
    %2191 = vst.msk [vmem:[#allocation2 + $0x1d0] sm:$0xff] %vm2132, %v2126
    %2192 = vst.msk [vmem:[#allocation2 + $0x1d8] sm:$0xff] %vm2132, %v2127
    %2193 = vst.msk [vmem:[#allocation2 + $0x1e0] sm:$0xff] %vm2132, %v2128
    %2194 = vst.msk [vmem:[#allocation2 + $0x1e8] sm:$0xff] %vm2132, %v2129
    %2195 = vst.msk [vmem:[#allocation2 + $0x1f0] sm:$0xff] %vm2132, %v2130
    %2196 = vst.msk [vmem:[#allocation2 + $0x1f8] sm:$0xff] %vm2132, %v2131
    %v2197 = vld [vmem:[#allocation3] sm:$0xff]
    %v2198 = vld [vmem:[#allocation3 + $0x8] sm:$0xff]
    %v2199 = vld [vmem:[#allocation3 + $0x10] sm:$0xff]
    %v2200 = vld [vmem:[#allocation3 + $0x18] sm:$0xff]
    %v2201 = vld [vmem:[#allocation3 + $0x20] sm:$0xff]
    %v2202 = vld [vmem:[#allocation3 + $0x28] sm:$0xff]
    %v2203 = vld [vmem:[#allocation3 + $0x30] sm:$0xff]
    %v2204 = vld [vmem:[#allocation3 + $0x38] sm:$0xff]
    %v2205 = vld [vmem:[#allocation3 + $0x40] sm:$0xff]
    %v2206 = vld [vmem:[#allocation3 + $0x48] sm:$0xff]
    %v2207 = vld [vmem:[#allocation3 + $0x50] sm:$0xff]
    %v2208 = vld [vmem:[#allocation3 + $0x58] sm:$0xff]
    %v2209 = vld [vmem:[#allocation3 + $0x60] sm:$0xff]
    %v2210 = vld [vmem:[#allocation3 + $0x68] sm:$0xff]
    %v2211 = vld [vmem:[#allocation3 + $0x70] sm:$0xff]
    %v2212 = vld [vmem:[#allocation3 + $0x78] sm:$0xff]
    %v2213 = vld [vmem:[#allocation3 + $0x80] sm:$0xff]
    %v2214 = vld [vmem:[#allocation3 + $0x88] sm:$0xff]
    %v2215 = vld [vmem:[#allocation3 + $0x90] sm:$0xff]
    %v2216 = vld [vmem:[#allocation3 + $0x98] sm:$0xff]
    %v2217 = vld [vmem:[#allocation3 + $0xa0] sm:$0xff]
    %v2218 = vld [vmem:[#allocation3 + $0xa8] sm:$0xff]
    %v2219 = vld [vmem:[#allocation3 + $0xb0] sm:$0xff]
    %v2220 = vld [vmem:[#allocation3 + $0xb8] sm:$0xff]
    %v2221 = vld [vmem:[#allocation3 + $0xc0] sm:$0xff]
    %v2222 = vld [vmem:[#allocation3 + $0xc8] sm:$0xff]
    %v2223 = vld [vmem:[#allocation3 + $0xd0] sm:$0xff]
    %v2224 = vld [vmem:[#allocation3 + $0xd8] sm:$0xff]
    %v2225 = vld [vmem:[#allocation3 + $0xe0] sm:$0xff]
    %v2226 = vld [vmem:[#allocation3 + $0xe8] sm:$0xff]
    %v2227 = vld [vmem:[#allocation3 + $0xf0] sm:$0xff]
    %v2228 = vld [vmem:[#allocation3 + $0xf8] sm:$0xff]
    %v2229 = vld [vmem:[#allocation3 + $0x100] sm:$0xff]
    %v2230 = vld [vmem:[#allocation3 + $0x108] sm:$0xff]
    %v2231 = vld [vmem:[#allocation3 + $0x110] sm:$0xff]
    %v2232 = vld [vmem:[#allocation3 + $0x118] sm:$0xff]
    %v2233 = vld [vmem:[#allocation3 + $0x120] sm:$0xff]
    %v2234 = vld [vmem:[#allocation3 + $0x128] sm:$0xff]
    %v2235 = vld [vmem:[#allocation3 + $0x130] sm:$0xff]
    %v2236 = vld [vmem:[#allocation3 + $0x138] sm:$0xff]
    %v2237 = vld [vmem:[#allocation3 + $0x140] sm:$0xff]
    %v2238 = vld [vmem:[#allocation3 + $0x148] sm:$0xff]
    %v2239 = vld [vmem:[#allocation3 + $0x150] sm:$0xff]
    %v2240 = vld [vmem:[#allocation3 + $0x158] sm:$0xff]
    %v2241 = vld [vmem:[#allocation3 + $0x160] sm:$0xff]
    %v2242 = vld [vmem:[#allocation3 + $0x168] sm:$0xff]
    %v2243 = vld [vmem:[#allocation3 + $0x170] sm:$0xff]
    %v2244 = vld [vmem:[#allocation3 + $0x178] sm:$0xff]
    %v2245 = vld [vmem:[#allocation3 + $0x180] sm:$0xff]
    %v2246 = vld [vmem:[#allocation3 + $0x188] sm:$0xff]
    %v2247 = vld [vmem:[#allocation3 + $0x190] sm:$0xff]
    %v2248 = vld [vmem:[#allocation3 + $0x198] sm:$0xff]
    %v2249 = vld [vmem:[#allocation3 + $0x1a0] sm:$0xff]
    %v2250 = vld [vmem:[#allocation3 + $0x1a8] sm:$0xff]
    %v2251 = vld [vmem:[#allocation3 + $0x1b0] sm:$0xff]
    %v2252 = vld [vmem:[#allocation3 + $0x1b8] sm:$0xff]
    %v2253 = vld [vmem:[#allocation3 + $0x1c0] sm:$0xff]
    %v2254 = vld [vmem:[#allocation3 + $0x1c8] sm:$0xff]
    %v2255 = vld [vmem:[#allocation3 + $0x1d0] sm:$0xff]
    %v2256 = vld [vmem:[#allocation3 + $0x1d8] sm:$0xff]
    %v2257 = vld [vmem:[#allocation3 + $0x1e0] sm:$0xff]
    %v2258 = vld [vmem:[#allocation3 + $0x1e8] sm:$0xff]
    %v2259 = vld [vmem:[#allocation3 + $0x1f0] sm:$0xff]
    %v2260 = vld [vmem:[#allocation3 + $0x1f8] sm:$0xff]
    %v2261 = vadd.f32 %v2197, %v1876
    %v2262 = vadd.f32 %v2198, %v1877
    %v2263 = vadd.f32 %v2199, %v1878
    %v2264 = vadd.f32 %v2200, %v1879
    %v2265 = vadd.f32 %v2201, %v1880
    %v2266 = vadd.f32 %v2202, %v1881
    %v2267 = vadd.f32 %v2203, %v1882
    %v2268 = vadd.f32 %v2204, %v1883
    %v2269 = vadd.f32 %v2205, %v1884
    %v2270 = vadd.f32 %v2206, %v1885
    %v2271 = vadd.f32 %v2207, %v1886
    %v2272 = vadd.f32 %v2208, %v1887
    %v2273 = vadd.f32 %v2209, %v1888
    %v2274 = vadd.f32 %v2210, %v1889
    %v2275 = vadd.f32 %v2211, %v1890
    %v2276 = vadd.f32 %v2212, %v1891
    %v2277 = vadd.f32 %v2213, %v1892
    %v2278 = vadd.f32 %v2214, %v1893
    %v2279 = vadd.f32 %v2215, %v1894
    %v2280 = vadd.f32 %v2216, %v1895
    %v2281 = vadd.f32 %v2217, %v1896
    %v2282 = vadd.f32 %v2218, %v1897
    %v2283 = vadd.f32 %v2219, %v1898
    %v2284 = vadd.f32 %v2220, %v1899
    %v2285 = vadd.f32 %v2221, %v1900
    %v2286 = vadd.f32 %v2222, %v1901
    %v2287 = vadd.f32 %v2223, %v1902
    %v2288 = vadd.f32 %v2224, %v1903
    %v2289 = vadd.f32 %v2225, %v1904
    %v2290 = vadd.f32 %v2226, %v1905
    %v2291 = vadd.f32 %v2227, %v1906
    %v2292 = vadd.f32 %v2228, %v1907
    %v2293 = vadd.f32 %v2229, %v1908
    %v2294 = vadd.f32 %v2230, %v1909
    %v2295 = vadd.f32 %v2231, %v1910
    %v2296 = vadd.f32 %v2232, %v1911
    %v2297 = vadd.f32 %v2233, %v1912
    %v2298 = vadd.f32 %v2234, %v1913
    %v2299 = vadd.f32 %v2235, %v1914
    %v2300 = vadd.f32 %v2236, %v1915
    %v2301 = vadd.f32 %v2237, %v1916
    %v2302 = vadd.f32 %v2238, %v1917
    %v2303 = vadd.f32 %v2239, %v1918
    %v2304 = vadd.f32 %v2240, %v1919
    %v2305 = vadd.f32 %v2241, %v1920
    %v2306 = vadd.f32 %v2242, %v1921
    %v2307 = vadd.f32 %v2243, %v1922
    %v2308 = vadd.f32 %v2244, %v1923
    %v2309 = vadd.f32 %v2245, %v1924
    %v2310 = vadd.f32 %v2246, %v1925
    %v2311 = vadd.f32 %v2247, %v1926
    %v2312 = vadd.f32 %v2248, %v1927
    %v2313 = vadd.f32 %v2249, %v1928
    %v2314 = vadd.f32 %v2250, %v1929
    %v2315 = vadd.f32 %v2251, %v1930
    %v2316 = vadd.f32 %v2252, %v1931
    %v2317 = vadd.f32 %v2253, %v1932
    %v2318 = vadd.f32 %v2254, %v1933
    %v2319 = vadd.f32 %v2255, %v1934
    %v2320 = vadd.f32 %v2256, %v1935
    %v2321 = vadd.f32 %v2257, %v1936
    %v2322 = vadd.f32 %v2258, %v1937
    %v2323 = vadd.f32 %v2259, %v1938
    %v2324 = vadd.f32 %v2260, %v1939
    %2325 = vst.msk [vmem:[#allocation3] sm:$0xff] %vm2132, %v2261
    %2326 = vst.msk [vmem:[#allocation3 + $0x8] sm:$0xff] %vm2132, %v2262
    %2327 = vst.msk [vmem:[#allocation3 + $0x10] sm:$0xff] %vm2132, %v2263
    %2328 = vst.msk [vmem:[#allocation3 + $0x18] sm:$0xff] %vm2132, %v2264
    %2329 = vst.msk [vmem:[#allocation3 + $0x20] sm:$0xff] %vm2132, %v2265
    %2330 = vst.msk [vmem:[#allocation3 + $0x28] sm:$0xff] %vm2132, %v2266
    %2331 = vst.msk [vmem:[#allocation3 + $0x30] sm:$0xff] %vm2132, %v2267
    %2332 = vst.msk [vmem:[#allocation3 + $0x38] sm:$0xff] %vm2132, %v2268
    %2333 = vst.msk [vmem:[#allocation3 + $0x40] sm:$0xff] %vm2132, %v2269
    %2334 = vst.msk [vmem:[#allocation3 + $0x48] sm:$0xff] %vm2132, %v2270
    %2335 = vst.msk [vmem:[#allocation3 + $0x50] sm:$0xff] %vm2132, %v2271
    %2336 = vst.msk [vmem:[#allocation3 + $0x58] sm:$0xff] %vm2132, %v2272
    %2337 = vst.msk [vmem:[#allocation3 + $0x60] sm:$0xff] %vm2132, %v2273
    %2338 = vst.msk [vmem:[#allocation3 + $0x68] sm:$0xff] %vm2132, %v2274
    %2339 = vst.msk [vmem:[#allocation3 + $0x70] sm:$0xff] %vm2132, %v2275
    %2340 = vst.msk [vmem:[#allocation3 + $0x78] sm:$0xff] %vm2132, %v2276
    %2341 = vst.msk [vmem:[#allocation3 + $0x80] sm:$0xff] %vm2132, %v2277
    %2342 = vst.msk [vmem:[#allocation3 + $0x88] sm:$0xff] %vm2132, %v2278
    %2343 = vst.msk [vmem:[#allocation3 + $0x90] sm:$0xff] %vm2132, %v2279
    %2344 = vst.msk [vmem:[#allocation3 + $0x98] sm:$0xff] %vm2132, %v2280
    %2345 = vst.msk [vmem:[#allocation3 + $0xa0] sm:$0xff] %vm2132, %v2281
    %2346 = vst.msk [vmem:[#allocation3 + $0xa8] sm:$0xff] %vm2132, %v2282
    %2347 = vst.msk [vmem:[#allocation3 + $0xb0] sm:$0xff] %vm2132, %v2283
    %2348 = vst.msk [vmem:[#allocation3 + $0xb8] sm:$0xff] %vm2132, %v2284
    %2349 = vst.msk [vmem:[#allocation3 + $0xc0] sm:$0xff] %vm2132, %v2285
    %2350 = vst.msk [vmem:[#allocation3 + $0xc8] sm:$0xff] %vm2132, %v2286
    %2351 = vst.msk [vmem:[#allocation3 + $0xd0] sm:$0xff] %vm2132, %v2287
    %2352 = vst.msk [vmem:[#allocation3 + $0xd8] sm:$0xff] %vm2132, %v2288
    %2353 = vst.msk [vmem:[#allocation3 + $0xe0] sm:$0xff] %vm2132, %v2289
    %2354 = vst.msk [vmem:[#allocation3 + $0xe8] sm:$0xff] %vm2132, %v2290
    %2355 = vst.msk [vmem:[#allocation3 + $0xf0] sm:$0xff] %vm2132, %v2291
    %2356 = vst.msk [vmem:[#allocation3 + $0xf8] sm:$0xff] %vm2132, %v2292
    %2357 = vst.msk [vmem:[#allocation3 + $0x100] sm:$0xff] %vm2132, %v2293
    %2358 = vst.msk [vmem:[#allocation3 + $0x108] sm:$0xff] %vm2132, %v2294
    %2359 = vst.msk [vmem:[#allocation3 + $0x110] sm:$0xff] %vm2132, %v2295
    %2360 = vst.msk [vmem:[#allocation3 + $0x118] sm:$0xff] %vm2132, %v2296
    %2361 = vst.msk [vmem:[#allocation3 + $0x120] sm:$0xff] %vm2132, %v2297
    %2362 = vst.msk [vmem:[#allocation3 + $0x128] sm:$0xff] %vm2132, %v2298
    %2363 = vst.msk [vmem:[#allocation3 + $0x130] sm:$0xff] %vm2132, %v2299
    %2364 = vst.msk [vmem:[#allocation3 + $0x138] sm:$0xff] %vm2132, %v2300
    %2365 = vst.msk [vmem:[#allocation3 + $0x140] sm:$0xff] %vm2132, %v2301
    %2366 = vst.msk [vmem:[#allocation3 + $0x148] sm:$0xff] %vm2132, %v2302
    %2367 = vst.msk [vmem:[#allocation3 + $0x150] sm:$0xff] %vm2132, %v2303
    %2368 = vst.msk [vmem:[#allocation3 + $0x158] sm:$0xff] %vm2132, %v2304
    %2369 = vst.msk [vmem:[#allocation3 + $0x160] sm:$0xff] %vm2132, %v2305
    %2370 = vst.msk [vmem:[#allocation3 + $0x168] sm:$0xff] %vm2132, %v2306
    %2371 = vst.msk [vmem:[#allocation3 + $0x170] sm:$0xff] %vm2132, %v2307
    %2372 = vst.msk [vmem:[#allocation3 + $0x178] sm:$0xff] %vm2132, %v2308
    %2373 = vst.msk [vmem:[#allocation3 + $0x180] sm:$0xff] %vm2132, %v2309
    %2374 = vst.msk [vmem:[#allocation3 + $0x188] sm:$0xff] %vm2132, %v2310
    %2375 = vst.msk [vmem:[#allocation3 + $0x190] sm:$0xff] %vm2132, %v2311
    %2376 = vst.msk [vmem:[#allocation3 + $0x198] sm:$0xff] %vm2132, %v2312
    %2377 = vst.msk [vmem:[#allocation3 + $0x1a0] sm:$0xff] %vm2132, %v2313
    %2378 = vst.msk [vmem:[#allocation3 + $0x1a8] sm:$0xff] %vm2132, %v2314
    %2379 = vst.msk [vmem:[#allocation3 + $0x1b0] sm:$0xff] %vm2132, %v2315
    %2380 = vst.msk [vmem:[#allocation3 + $0x1b8] sm:$0xff] %vm2132, %v2316
    %2381 = vst.msk [vmem:[#allocation3 + $0x1c0] sm:$0xff] %vm2132, %v2317
    %2382 = vst.msk [vmem:[#allocation3 + $0x1c8] sm:$0xff] %vm2132, %v2318
    %2383 = vst.msk [vmem:[#allocation3 + $0x1d0] sm:$0xff] %vm2132, %v2319
    %2384 = vst.msk [vmem:[#allocation3 + $0x1d8] sm:$0xff] %vm2132, %v2320
    %2385 = vst.msk [vmem:[#allocation3 + $0x1e0] sm:$0xff] %vm2132, %v2321
    %2386 = vst.msk [vmem:[#allocation3 + $0x1e8] sm:$0xff] %vm2132, %v2322
    %2387 = vst.msk [vmem:[#allocation3 + $0x1f0] sm:$0xff] %vm2132, %v2323
    %2388 = vst.msk [vmem:[#allocation3 + $0x1f8] sm:$0xff] %vm2132, %v2324
    // Predicated region
    $region14: #{tpu_custom_call.1} parent=1 // pred_check
      %p2389 = pneg %p12
    $region15: #{tpu_custom_call.1} parent=1 // pred_check_branch
      %2391 = sbr.rel (%p2389) target = $region17
    $region16: #{tpu_custom_call.1} parent=1 // pred_region
      %v2392 = vld [vmem:[#allocation2] sm:$0xff]
      %v2393 = vld [vmem:[#allocation2 + $0x8] sm:$0xff]
      %v2394 = vld [vmem:[#allocation2 + $0x10] sm:$0xff]
      %v2395 = vld [vmem:[#allocation2 + $0x18] sm:$0xff]
      %v2396 = vld [vmem:[#allocation2 + $0x20] sm:$0xff]
      %v2397 = vld [vmem:[#allocation2 + $0x28] sm:$0xff]
      %v2398 = vld [vmem:[#allocation2 + $0x30] sm:$0xff]
      %v2399 = vld [vmem:[#allocation2 + $0x38] sm:$0xff]
      %v2400 = vld [vmem:[#allocation2 + $0x40] sm:$0xff]
      %v2401 = vld [vmem:[#allocation2 + $0x48] sm:$0xff]
      %v2402 = vld [vmem:[#allocation2 + $0x50] sm:$0xff]
      %v2403 = vld [vmem:[#allocation2 + $0x58] sm:$0xff]
      %v2404 = vld [vmem:[#allocation2 + $0x60] sm:$0xff]
      %v2405 = vld [vmem:[#allocation2 + $0x68] sm:$0xff]
      %v2406 = vld [vmem:[#allocation2 + $0x70] sm:$0xff]
      %v2407 = vld [vmem:[#allocation2 + $0x78] sm:$0xff]
      %v2408 = vld [vmem:[#allocation2 + $0x80] sm:$0xff]
      %v2409 = vld [vmem:[#allocation2 + $0x88] sm:$0xff]
      %v2410 = vld [vmem:[#allocation2 + $0x90] sm:$0xff]
      %v2411 = vld [vmem:[#allocation2 + $0x98] sm:$0xff]
      %v2412 = vld [vmem:[#allocation2 + $0xa0] sm:$0xff]
      %v2413 = vld [vmem:[#allocation2 + $0xa8] sm:$0xff]
      %v2414 = vld [vmem:[#allocation2 + $0xb0] sm:$0xff]
      %v2415 = vld [vmem:[#allocation2 + $0xb8] sm:$0xff]
      %v2416 = vld [vmem:[#allocation2 + $0xc0] sm:$0xff]
      %v2417 = vld [vmem:[#allocation2 + $0xc8] sm:$0xff]
      %v2418 = vld [vmem:[#allocation2 + $0xd0] sm:$0xff]
      %v2419 = vld [vmem:[#allocation2 + $0xd8] sm:$0xff]
      %v2420 = vld [vmem:[#allocation2 + $0xe0] sm:$0xff]
      %v2421 = vld [vmem:[#allocation2 + $0xe8] sm:$0xff]
      %v2422 = vld [vmem:[#allocation2 + $0xf0] sm:$0xff]
      %v2423 = vld [vmem:[#allocation2 + $0xf8] sm:$0xff]
      %v2424 = vld [vmem:[#allocation2 + $0x100] sm:$0xff]
      %v2425 = vld [vmem:[#allocation2 + $0x108] sm:$0xff]
      %v2426 = vld [vmem:[#allocation2 + $0x110] sm:$0xff]
      %v2427 = vld [vmem:[#allocation2 + $0x118] sm:$0xff]
      %v2428 = vld [vmem:[#allocation2 + $0x120] sm:$0xff]
      %v2429 = vld [vmem:[#allocation2 + $0x128] sm:$0xff]
      %v2430 = vld [vmem:[#allocation2 + $0x130] sm:$0xff]
      %v2431 = vld [vmem:[#allocation2 + $0x138] sm:$0xff]
      %v2432 = vld [vmem:[#allocation2 + $0x140] sm:$0xff]
      %v2433 = vld [vmem:[#allocation2 + $0x148] sm:$0xff]
      %v2434 = vld [vmem:[#allocation2 + $0x150] sm:$0xff]
      %v2435 = vld [vmem:[#allocation2 + $0x158] sm:$0xff]
      %v2436 = vld [vmem:[#allocation2 + $0x160] sm:$0xff]
      %v2437 = vld [vmem:[#allocation2 + $0x168] sm:$0xff]
      %v2438 = vld [vmem:[#allocation2 + $0x170] sm:$0xff]
      %v2439 = vld [vmem:[#allocation2 + $0x178] sm:$0xff]
      %v2440 = vld [vmem:[#allocation2 + $0x180] sm:$0xff]
      %v2441 = vld [vmem:[#allocation2 + $0x188] sm:$0xff]
      %v2442 = vld [vmem:[#allocation2 + $0x190] sm:$0xff]
      %v2443 = vld [vmem:[#allocation2 + $0x198] sm:$0xff]
      %v2444 = vld [vmem:[#allocation2 + $0x1a0] sm:$0xff]
      %v2445 = vld [vmem:[#allocation2 + $0x1a8] sm:$0xff]
      %v2446 = vld [vmem:[#allocation2 + $0x1b0] sm:$0xff]
      %v2447 = vld [vmem:[#allocation2 + $0x1b8] sm:$0xff]
      %v2448 = vld [vmem:[#allocation2 + $0x1c0] sm:$0xff]
      %v2449 = vld [vmem:[#allocation2 + $0x1c8] sm:$0xff]
      %v2450 = vld [vmem:[#allocation2 + $0x1d0] sm:$0xff]
      %v2451 = vld [vmem:[#allocation2 + $0x1d8] sm:$0xff]
      %v2452 = vld [vmem:[#allocation2 + $0x1e0] sm:$0xff]
      %v2453 = vld [vmem:[#allocation2 + $0x1e8] sm:$0xff]
      %v2454 = vld [vmem:[#allocation2 + $0x1f0] sm:$0xff]
      %v2455 = vld [vmem:[#allocation2 + $0x1f8] sm:$0xff]
      %v2456 = vsel %vm2132, %v2392, 0.0
      %v2457 = vsel %vm2132, %v2393, 0.0
      %v2458 = vadd.f32 %v2456, %v2457
      %v2459 = vsel %vm2132, %v2394, 0.0
      %v2460 = vadd.f32 %v2458, %v2459
      %v2461 = vsel %vm2132, %v2395, 0.0
      %v2462 = vadd.f32 %v2460, %v2461
      %v2463 = vsel %vm2132, %v2396, 0.0
      %v2464 = vadd.f32 %v2462, %v2463
      %v2465 = vsel %vm2132, %v2397, 0.0
      %v2466 = vadd.f32 %v2464, %v2465
      %v2467 = vsel %vm2132, %v2398, 0.0
      %v2468 = vadd.f32 %v2466, %v2467
      %v2469 = vsel %vm2132, %v2399, 0.0
      %v2470 = vadd.f32 %v2468, %v2469
      %v2471 = vsel %vm2132, %v2400, 0.0
      %v2472 = vadd.f32 %v2470, %v2471
      %v2473 = vsel %vm2132, %v2401, 0.0
      %v2474 = vadd.f32 %v2472, %v2473
      %v2475 = vsel %vm2132, %v2402, 0.0
      %v2476 = vadd.f32 %v2474, %v2475
      %v2477 = vsel %vm2132, %v2403, 0.0
      %v2478 = vadd.f32 %v2476, %v2477
      %v2479 = vsel %vm2132, %v2404, 0.0
      %v2480 = vadd.f32 %v2478, %v2479
      %v2481 = vsel %vm2132, %v2405, 0.0
      %v2482 = vadd.f32 %v2480, %v2481
      %v2483 = vsel %vm2132, %v2406, 0.0
      %v2484 = vadd.f32 %v2482, %v2483
      %v2485 = vsel %vm2132, %v2407, 0.0
      %v2486 = vadd.f32 %v2484, %v2485
      %v2487 = vsel %vm2132, %v2408, 0.0
      %v2488 = vadd.f32 %v2486, %v2487
      %v2489 = vsel %vm2132, %v2409, 0.0
      %v2490 = vadd.f32 %v2488, %v2489
      %v2491 = vsel %vm2132, %v2410, 0.0
      %v2492 = vadd.f32 %v2490, %v2491
      %v2493 = vsel %vm2132, %v2411, 0.0
      %v2494 = vadd.f32 %v2492, %v2493
      %v2495 = vsel %vm2132, %v2412, 0.0
      %v2496 = vadd.f32 %v2494, %v2495
      %v2497 = vsel %vm2132, %v2413, 0.0
      %v2498 = vadd.f32 %v2496, %v2497
      %v2499 = vsel %vm2132, %v2414, 0.0
      %v2500 = vadd.f32 %v2498, %v2499
      %v2501 = vsel %vm2132, %v2415, 0.0
      %v2502 = vadd.f32 %v2500, %v2501
      %v2503 = vsel %vm2132, %v2416, 0.0
      %v2504 = vadd.f32 %v2502, %v2503
      %v2505 = vsel %vm2132, %v2417, 0.0
      %v2506 = vadd.f32 %v2504, %v2505
      %v2507 = vsel %vm2132, %v2418, 0.0
      %v2508 = vadd.f32 %v2506, %v2507
      %v2509 = vsel %vm2132, %v2419, 0.0
      %v2510 = vadd.f32 %v2508, %v2509
      %v2511 = vsel %vm2132, %v2420, 0.0
      %v2512 = vadd.f32 %v2510, %v2511
      %v2513 = vsel %vm2132, %v2421, 0.0
      %v2514 = vadd.f32 %v2512, %v2513
      %v2515 = vsel %vm2132, %v2422, 0.0
      %v2516 = vadd.f32 %v2514, %v2515
      %v2517 = vsel %vm2132, %v2423, 0.0
      %v2518 = vadd.f32 %v2516, %v2517
      %v2519 = vsel %vm2132, %v2424, 0.0
      %v2520 = vadd.f32 %v2518, %v2519
      %v2521 = vsel %vm2132, %v2425, 0.0
      %v2522 = vadd.f32 %v2520, %v2521
      %v2523 = vsel %vm2132, %v2426, 0.0
      %v2524 = vadd.f32 %v2522, %v2523
      %v2525 = vsel %vm2132, %v2427, 0.0
      %v2526 = vadd.f32 %v2524, %v2525
      %v2527 = vsel %vm2132, %v2428, 0.0
      %v2528 = vadd.f32 %v2526, %v2527
      %v2529 = vsel %vm2132, %v2429, 0.0
      %v2530 = vadd.f32 %v2528, %v2529
      %v2531 = vsel %vm2132, %v2430, 0.0
      %v2532 = vadd.f32 %v2530, %v2531
      %v2533 = vsel %vm2132, %v2431, 0.0
      %v2534 = vadd.f32 %v2532, %v2533
      %v2535 = vsel %vm2132, %v2432, 0.0
      %v2536 = vadd.f32 %v2534, %v2535
      %v2537 = vsel %vm2132, %v2433, 0.0
      %v2538 = vadd.f32 %v2536, %v2537
      %v2539 = vsel %vm2132, %v2434, 0.0
      %v2540 = vadd.f32 %v2538, %v2539
      %v2541 = vsel %vm2132, %v2435, 0.0
      %v2542 = vadd.f32 %v2540, %v2541
      %v2543 = vsel %vm2132, %v2436, 0.0
      %v2544 = vadd.f32 %v2542, %v2543
      %v2545 = vsel %vm2132, %v2437, 0.0
      %v2546 = vadd.f32 %v2544, %v2545
      %v2547 = vsel %vm2132, %v2438, 0.0
      %v2548 = vadd.f32 %v2546, %v2547
      %v2549 = vsel %vm2132, %v2439, 0.0
      %v2550 = vadd.f32 %v2548, %v2549
      %v2551 = vsel %vm2132, %v2440, 0.0
      %v2552 = vadd.f32 %v2550, %v2551
      %v2553 = vsel %vm2132, %v2441, 0.0
      %v2554 = vadd.f32 %v2552, %v2553
      %v2555 = vsel %vm2132, %v2442, 0.0
      %v2556 = vadd.f32 %v2554, %v2555
      %v2557 = vsel %vm2132, %v2443, 0.0
      %v2558 = vadd.f32 %v2556, %v2557
      %v2559 = vsel %vm2132, %v2444, 0.0
      %v2560 = vadd.f32 %v2558, %v2559
      %v2561 = vsel %vm2132, %v2445, 0.0
      %v2562 = vadd.f32 %v2560, %v2561
      %v2563 = vsel %vm2132, %v2446, 0.0
      %v2564 = vadd.f32 %v2562, %v2563
      %v2565 = vsel %vm2132, %v2447, 0.0
      %v2566 = vadd.f32 %v2564, %v2565
      %v2567 = vsel %vm2132, %v2448, 0.0
      %v2568 = vadd.f32 %v2566, %v2567
      %v2569 = vsel %vm2132, %v2449, 0.0
      %v2570 = vadd.f32 %v2568, %v2569
      %v2571 = vsel %vm2132, %v2450, 0.0
      %v2572 = vadd.f32 %v2570, %v2571
      %v2573 = vsel %vm2132, %v2451, 0.0
      %v2574 = vadd.f32 %v2572, %v2573
      %v2575 = vsel %vm2132, %v2452, 0.0
      %v2576 = vadd.f32 %v2574, %v2575
      %v2577 = vsel %vm2132, %v2453, 0.0
      %v2578 = vadd.f32 %v2576, %v2577
      %v2579 = vsel %vm2132, %v2454, 0.0
      %v2580 = vadd.f32 %v2578, %v2579
      %v2581 = vsel %vm2132, %v2455, 0.0
      %v2582 = vadd.f32 %v2580, %v2581
      %v2583 = vrot.slane %v2582, 4
      %v2584 = vadd.f32 %v2582, %v2583
      %v2585 = vrot.slane %v2584, 2
      %v2586 = vadd.f32 %v2584, %v2585
      %v2587 = vrot.slane %v2586, 1
      %v2588 = vadd.f32 %v2586, %v2587
      %v2589 = vld [vmem:[#allocation3] sm:$0xff]
      %v2590 = vld [vmem:[#allocation3 + $0x8] sm:$0xff]
      %v2591 = vld [vmem:[#allocation3 + $0x10] sm:$0xff]
      %v2592 = vld [vmem:[#allocation3 + $0x18] sm:$0xff]
      %v2593 = vld [vmem:[#allocation3 + $0x20] sm:$0xff]
      %v2594 = vld [vmem:[#allocation3 + $0x28] sm:$0xff]
      %v2595 = vld [vmem:[#allocation3 + $0x30] sm:$0xff]
      %v2596 = vld [vmem:[#allocation3 + $0x38] sm:$0xff]
      %v2597 = vld [vmem:[#allocation3 + $0x40] sm:$0xff]
      %v2598 = vld [vmem:[#allocation3 + $0x48] sm:$0xff]
      %v2599 = vld [vmem:[#allocation3 + $0x50] sm:$0xff]
      %v2600 = vld [vmem:[#allocation3 + $0x58] sm:$0xff]
      %v2601 = vld [vmem:[#allocation3 + $0x60] sm:$0xff]
      %v2602 = vld [vmem:[#allocation3 + $0x68] sm:$0xff]
      %v2603 = vld [vmem:[#allocation3 + $0x70] sm:$0xff]
      %v2604 = vld [vmem:[#allocation3 + $0x78] sm:$0xff]
      %v2605 = vld [vmem:[#allocation3 + $0x80] sm:$0xff]
      %v2606 = vld [vmem:[#allocation3 + $0x88] sm:$0xff]
      %v2607 = vld [vmem:[#allocation3 + $0x90] sm:$0xff]
      %v2608 = vld [vmem:[#allocation3 + $0x98] sm:$0xff]
      %v2609 = vld [vmem:[#allocation3 + $0xa0] sm:$0xff]
      %v2610 = vld [vmem:[#allocation3 + $0xa8] sm:$0xff]
      %v2611 = vld [vmem:[#allocation3 + $0xb0] sm:$0xff]
      %v2612 = vld [vmem:[#allocation3 + $0xb8] sm:$0xff]
      %v2613 = vld [vmem:[#allocation3 + $0xc0] sm:$0xff]
      %v2614 = vld [vmem:[#allocation3 + $0xc8] sm:$0xff]
      %v2615 = vld [vmem:[#allocation3 + $0xd0] sm:$0xff]
      %v2616 = vld [vmem:[#allocation3 + $0xd8] sm:$0xff]
      %v2617 = vld [vmem:[#allocation3 + $0xe0] sm:$0xff]
      %v2618 = vld [vmem:[#allocation3 + $0xe8] sm:$0xff]
      %v2619 = vld [vmem:[#allocation3 + $0xf0] sm:$0xff]
      %v2620 = vld [vmem:[#allocation3 + $0xf8] sm:$0xff]
      %v2621 = vld [vmem:[#allocation3 + $0x100] sm:$0xff]
      %v2622 = vld [vmem:[#allocation3 + $0x108] sm:$0xff]
      %v2623 = vld [vmem:[#allocation3 + $0x110] sm:$0xff]
      %v2624 = vld [vmem:[#allocation3 + $0x118] sm:$0xff]
      %v2625 = vld [vmem:[#allocation3 + $0x120] sm:$0xff]
      %v2626 = vld [vmem:[#allocation3 + $0x128] sm:$0xff]
      %v2627 = vld [vmem:[#allocation3 + $0x130] sm:$0xff]
      %v2628 = vld [vmem:[#allocation3 + $0x138] sm:$0xff]
      %v2629 = vld [vmem:[#allocation3 + $0x140] sm:$0xff]
      %v2630 = vld [vmem:[#allocation3 + $0x148] sm:$0xff]
      %v2631 = vld [vmem:[#allocation3 + $0x150] sm:$0xff]
      %v2632 = vld [vmem:[#allocation3 + $0x158] sm:$0xff]
      %v2633 = vld [vmem:[#allocation3 + $0x160] sm:$0xff]
      %v2634 = vld [vmem:[#allocation3 + $0x168] sm:$0xff]
      %v2635 = vld [vmem:[#allocation3 + $0x170] sm:$0xff]
      %v2636 = vld [vmem:[#allocation3 + $0x178] sm:$0xff]
      %v2637 = vld [vmem:[#allocation3 + $0x180] sm:$0xff]
      %v2638 = vld [vmem:[#allocation3 + $0x188] sm:$0xff]
      %v2639 = vld [vmem:[#allocation3 + $0x190] sm:$0xff]
      %v2640 = vld [vmem:[#allocation3 + $0x198] sm:$0xff]
      %v2641 = vld [vmem:[#allocation3 + $0x1a0] sm:$0xff]
      %v2642 = vld [vmem:[#allocation3 + $0x1a8] sm:$0xff]
      %v2643 = vld [vmem:[#allocation3 + $0x1b0] sm:$0xff]
      %v2644 = vld [vmem:[#allocation3 + $0x1b8] sm:$0xff]
      %v2645 = vld [vmem:[#allocation3 + $0x1c0] sm:$0xff]
      %v2646 = vld [vmem:[#allocation3 + $0x1c8] sm:$0xff]
      %v2647 = vld [vmem:[#allocation3 + $0x1d0] sm:$0xff]
      %v2648 = vld [vmem:[#allocation3 + $0x1d8] sm:$0xff]
      %v2649 = vld [vmem:[#allocation3 + $0x1e0] sm:$0xff]
      %v2650 = vld [vmem:[#allocation3 + $0x1e8] sm:$0xff]
      %v2651 = vld [vmem:[#allocation3 + $0x1f0] sm:$0xff]
      %v2652 = vld [vmem:[#allocation3 + $0x1f8] sm:$0xff]
      %v2653 = vsel %vm2132, %v2589, 0.0
      %v2654 = vsel %vm2132, %v2590, 0.0
      %v2655 = vadd.f32 %v2653, %v2654
      %v2656 = vsel %vm2132, %v2591, 0.0
      %v2657 = vadd.f32 %v2655, %v2656
      %v2658 = vsel %vm2132, %v2592, 0.0
      %v2659 = vadd.f32 %v2657, %v2658
      %v2660 = vsel %vm2132, %v2593, 0.0
      %v2661 = vadd.f32 %v2659, %v2660
      %v2662 = vsel %vm2132, %v2594, 0.0
      %v2663 = vadd.f32 %v2661, %v2662
      %v2664 = vsel %vm2132, %v2595, 0.0
      %v2665 = vadd.f32 %v2663, %v2664
      %v2666 = vsel %vm2132, %v2596, 0.0
      %v2667 = vadd.f32 %v2665, %v2666
      %v2668 = vsel %vm2132, %v2597, 0.0
      %v2669 = vadd.f32 %v2667, %v2668
      %v2670 = vsel %vm2132, %v2598, 0.0
      %v2671 = vadd.f32 %v2669, %v2670
      %v2672 = vsel %vm2132, %v2599, 0.0
      %v2673 = vadd.f32 %v2671, %v2672
      %v2674 = vsel %vm2132, %v2600, 0.0
      %v2675 = vadd.f32 %v2673, %v2674
      %v2676 = vsel %vm2132, %v2601, 0.0
      %v2677 = vadd.f32 %v2675, %v2676
      %v2678 = vsel %vm2132, %v2602, 0.0
      %v2679 = vadd.f32 %v2677, %v2678
      %v2680 = vsel %vm2132, %v2603, 0.0
      %v2681 = vadd.f32 %v2679, %v2680
      %v2682 = vsel %vm2132, %v2604, 0.0
      %v2683 = vadd.f32 %v2681, %v2682
      %v2684 = vsel %vm2132, %v2605, 0.0
      %v2685 = vadd.f32 %v2683, %v2684
      %v2686 = vsel %vm2132, %v2606, 0.0
      %v2687 = vadd.f32 %v2685, %v2686
      %v2688 = vsel %vm2132, %v2607, 0.0
      %v2689 = vadd.f32 %v2687, %v2688
      %v2690 = vsel %vm2132, %v2608, 0.0
      %v2691 = vadd.f32 %v2689, %v2690
      %v2692 = vsel %vm2132, %v2609, 0.0
      %v2693 = vadd.f32 %v2691, %v2692
      %v2694 = vsel %vm2132, %v2610, 0.0
      %v2695 = vadd.f32 %v2693, %v2694
      %v2696 = vsel %vm2132, %v2611, 0.0
      %v2697 = vadd.f32 %v2695, %v2696
      %v2698 = vsel %vm2132, %v2612, 0.0
      %v2699 = vadd.f32 %v2697, %v2698
      %v2700 = vsel %vm2132, %v2613, 0.0
      %v2701 = vadd.f32 %v2699, %v2700
      %v2702 = vsel %vm2132, %v2614, 0.0
      %v2703 = vadd.f32 %v2701, %v2702
      %v2704 = vsel %vm2132, %v2615, 0.0
      %v2705 = vadd.f32 %v2703, %v2704
      %v2706 = vsel %vm2132, %v2616, 0.0
      %v2707 = vadd.f32 %v2705, %v2706
      %v2708 = vsel %vm2132, %v2617, 0.0
      %v2709 = vadd.f32 %v2707, %v2708
      %v2710 = vsel %vm2132, %v2618, 0.0
      %v2711 = vadd.f32 %v2709, %v2710
      %v2712 = vsel %vm2132, %v2619, 0.0
      %v2713 = vadd.f32 %v2711, %v2712
      %v2714 = vsel %vm2132, %v2620, 0.0
      %v2715 = vadd.f32 %v2713, %v2714
      %v2716 = vsel %vm2132, %v2621, 0.0
      %v2717 = vadd.f32 %v2715, %v2716
      %v2718 = vsel %vm2132, %v2622, 0.0
      %v2719 = vadd.f32 %v2717, %v2718
      %v2720 = vsel %vm2132, %v2623, 0.0
      %v2721 = vadd.f32 %v2719, %v2720
      %v2722 = vsel %vm2132, %v2624, 0.0
      %v2723 = vadd.f32 %v2721, %v2722
      %v2724 = vsel %vm2132, %v2625, 0.0
      %v2725 = vadd.f32 %v2723, %v2724
      %v2726 = vsel %vm2132, %v2626, 0.0
      %v2727 = vadd.f32 %v2725, %v2726
      %v2728 = vsel %vm2132, %v2627, 0.0
      %v2729 = vadd.f32 %v2727, %v2728
      %v2730 = vsel %vm2132, %v2628, 0.0
      %v2731 = vadd.f32 %v2729, %v2730
      %v2732 = vsel %vm2132, %v2629, 0.0
      %v2733 = vadd.f32 %v2731, %v2732
      %v2734 = vsel %vm2132, %v2630, 0.0
      %v2735 = vadd.f32 %v2733, %v2734
      %v2736 = vsel %vm2132, %v2631, 0.0
      %v2737 = vadd.f32 %v2735, %v2736
      %v2738 = vsel %vm2132, %v2632, 0.0
      %v2739 = vadd.f32 %v2737, %v2738
      %v2740 = vsel %vm2132, %v2633, 0.0
      %v2741 = vadd.f32 %v2739, %v2740
      %v2742 = vsel %vm2132, %v2634, 0.0
      %v2743 = vadd.f32 %v2741, %v2742
      %v2744 = vsel %vm2132, %v2635, 0.0
      %v2745 = vadd.f32 %v2743, %v2744
      %v2746 = vsel %vm2132, %v2636, 0.0
      %v2747 = vadd.f32 %v2745, %v2746
      %v2748 = vsel %vm2132, %v2637, 0.0
      %v2749 = vadd.f32 %v2747, %v2748
      %v2750 = vsel %vm2132, %v2638, 0.0
      %v2751 = vadd.f32 %v2749, %v2750
      %v2752 = vsel %vm2132, %v2639, 0.0
      %v2753 = vadd.f32 %v2751, %v2752
      %v2754 = vsel %vm2132, %v2640, 0.0
      %v2755 = vadd.f32 %v2753, %v2754
      %v2756 = vsel %vm2132, %v2641, 0.0
      %v2757 = vadd.f32 %v2755, %v2756
      %v2758 = vsel %vm2132, %v2642, 0.0
      %v2759 = vadd.f32 %v2757, %v2758
      %v2760 = vsel %vm2132, %v2643, 0.0
      %v2761 = vadd.f32 %v2759, %v2760
      %v2762 = vsel %vm2132, %v2644, 0.0
      %v2763 = vadd.f32 %v2761, %v2762
      %v2764 = vsel %vm2132, %v2645, 0.0
      %v2765 = vadd.f32 %v2763, %v2764
      %v2766 = vsel %vm2132, %v2646, 0.0
      %v2767 = vadd.f32 %v2765, %v2766
      %v2768 = vsel %vm2132, %v2647, 0.0
      %v2769 = vadd.f32 %v2767, %v2768
      %v2770 = vsel %vm2132, %v2648, 0.0
      %v2771 = vadd.f32 %v2769, %v2770
      %v2772 = vsel %vm2132, %v2649, 0.0
      %v2773 = vadd.f32 %v2771, %v2772
      %v2774 = vsel %vm2132, %v2650, 0.0
      %v2775 = vadd.f32 %v2773, %v2774
      %v2776 = vsel %vm2132, %v2651, 0.0
      %v2777 = vadd.f32 %v2775, %v2776
      %v2778 = vsel %vm2132, %v2652, 0.0
      %v2779 = vadd.f32 %v2777, %v2778
      %v2780 = vrot.slane %v2779, 4
      %v2781 = vadd.f32 %v2779, %v2780
      %v2782 = vrot.slane %v2781, 2
      %v2783 = vadd.f32 %v2781, %v2782
      %v2784 = vrot.slane %v2783, 1
      %v2785 = vadd.f32 %v2783, %v2784
      %vm2786 = vcmp.gt.f32.partialorder %v2785, 0.0
      %v2787 = vrcp.pop %v2785
      %v2788 = vmul.f32 %v2588, %v2787
      %v2789 = vsel %vm2786, %v2788, 0.0
      %vm2790 = vcmask 0
      %2791 = vst.msk [vmem:[#allocation4] sm:$0x1] %vm2790, %v2789
    $region17: #{tpu_custom_call.1} parent=1 // pred_fallthru
      _
    // Predicated region
    $region18: #{tpu_custom_call.1} parent=1 // pred_check
      _
    $region19: #{tpu_custom_call.1} parent=1 // pred_check_branch
      %2793 = sbr.rel (0) target = $region21
    $region20: #{tpu_custom_call.1} parent=1 // pred_region
      %s2795 = ssub.s32 16, 16
      %2796 = vsyncadd [#allocation5], %s2795
      %s2798 = sshll.u32 [#allocation4], 4
      %s2799 = int_to_ptr.vmem [resolvable:$true] %s2798
      %2801 = dma.vmem_to_hbm [thread:$0]  %s2799, 16, %s2, [#allocation5]
    $region21: #{tpu_custom_call.1} parent=1 // pred_fallthru
      _
    // Predicated region
    $region22: #{tpu_custom_call.1} parent=1 // pred_check
      _
    $region23: #{tpu_custom_call.1} parent=1 // pred_check_branch
      %2803 = sbr.rel (0) target = $region25
    $region24: #{tpu_custom_call.1} parent=1 // pred_region
      %2804 = dma.done [#allocation5], 16
    $region25: #{tpu_custom_call.1} parent=1 // pred_fallthru
      _
    %2805 = vsyncpa [#allocation5], 1

</llo_original>
